<compile_context>
chip_gen: v7x
topology: tpu7x:2x2x1
jax: 0.10.0
libtpu: 0.0.40
codegen_flags: <defaults>
</compile_context>

<pallas_src>
import jax
import jax.numpy as jnp
from jax.experimental import pallas as pl
from jax.experimental.pallas import tpu as pltpu


# ----------------------------- Pallas kernels ------------------------------

def _conv_prelu_kernel(alpha_ref, a_ref, w_ref, o_ref):
    # y = PReLU( rows @ W1 )   -- first conv1 application
    y = jnp.dot(a_ref[...], w_ref[...], preferred_element_type=jnp.float32)
    al = alpha_ref[0]
    y = jnp.where(y > 0, y, al * y)
    o_ref[...] = y.astype(o_ref.dtype)


def _conv_res_se_kernel(alpha_ref, a_ref, w_ref, x_ref, w2_ref, w3_ref, o_ref):
    # One grid step == one full image (H*W rows), so the global average pool
    # and the squeeze-excitation branch can be computed on the VMEM-resident
    # tile and the gating multiply fused into the same kernel.
    al = alpha_ref[0]

    # second conv1 (no activation), scale 0.1 and residual add with x
    y = jnp.dot(a_ref[...], w_ref[...], preferred_element_type=jnp.float32)
    res1 = y * 0.1 + x_ref[...]                               # (HW, C) f32

    # AdaptiveAvgPool2d(1)  ->  (1, C)
    pooled = jnp.mean(res1, axis=0, keepdims=True)

    # conv2 (1x1, C->4): h[j] = sum_c pooled[c] * W2[j, c]
    h = jnp.sum(pooled * w2_ref[...], axis=1, keepdims=True)  # (4, 1)
    h = jnp.where(h > 0, h, al * h)                           # act1 (PReLU)

    # conv3 (1x1, 4->C): g[c] = sum_j h[j] * W3m[j, c]
    g = jnp.sum(h * w3_ref[...], axis=0, keepdims=True)       # (1, C)

    # Sigmoid on the EUP
    gate = pl.reciprocal(1.0 + jnp.exp(-g), approx=True)      # (1, C)

    # channel-wise gating of res1
    o_ref[...] = (res1 * gate).astype(o_ref.dtype)


# ------------------------------ kernel wrappers ------------------------------

_VMEM_LIMIT = 32 * 1024 * 1024


def _conv_prelu(rows, w, alpha, tile_m):
    M, K = rows.shape
    Kc, C = w.shape
    assert Kc == K and M % tile_m == 0
    grid = (M // tile_m,)
    ce = pl.CostEstimate(flops=2 * M * K * C, transcendentals=0,
                         bytes_accessed=M * K * 2 + K * C * 2 + M * C * 2)
    return pl.pallas_call(
        _conv_prelu_kernel,
        out_shape=jax.ShapeDtypeStruct((M, C), jnp.bfloat16),
        grid=grid,
        in_specs=[pl.BlockSpec(memory_space=pltpu.MemorySpace.SMEM),
                  pl.BlockSpec((tile_m, K), lambda i: (i, 0)),
                  pl.BlockSpec((K, C), lambda i: (0, 0))],
        out_specs=pl.BlockSpec((tile_m, C), lambda i: (i, 0)),
        compiler_params=pltpu.CompilerParams(
            dimension_semantics=("parallel",),
            vmem_limit_bytes=_VMEM_LIMIT),
        cost_estimate=ce,
    )(alpha, rows, w)


def _conv_res_se(rows, w, x_rows, w2m, w3m, alpha, hw):
    M, K = rows.shape
    Kc, C = w.shape
    assert Kc == K and M % hw == 0
    n_img = M // hw
    ce = pl.CostEstimate(flops=2 * M * K * C + 6 * M * C,
                         transcendentals=n_img * C,
                         bytes_accessed=M * K * 2 + K * C * 2 + 2 * M * C * 4)
    return pl.pallas_call(
        _conv_res_se_kernel,
        out_shape=jax.ShapeDtypeStruct((M, C), jnp.float32),
        grid=(n_img,),
        in_specs=[pl.BlockSpec(memory_space=pltpu.MemorySpace.SMEM),
                  pl.BlockSpec((hw, K), lambda i: (i, 0)),
                  pl.BlockSpec((K, C), lambda i: (0, 0)),
                  pl.BlockSpec((hw, C), lambda i: (i, 0)),
                  pl.BlockSpec((4, C), lambda i: (0, 0)),
                  pl.BlockSpec((4, C), lambda i: (0, 0))],
        out_specs=pl.BlockSpec((hw, C), lambda i: (i, 0)),
        compiler_params=pltpu.CompilerParams(
            dimension_semantics=("parallel",),
            vmem_limit_bytes=_VMEM_LIMIT),
        cost_estimate=ce,
    )(alpha, rows, w, x_rows, w2m, w3m)


# --------------------------------- XLA glue ----------------------------------

def _im2col3x3(x_nhwc):
    """3x3 / pad 1 / stride 1 patch rows: (N,H,W,C) -> (N*H*W, 9*C) bf16.
    Column order is (kh, kw) major, channel minor (matches the weight reshape)."""
    N, H, W, C = x_nhwc.shape
    xp = jnp.pad(x_nhwc, ((0, 0), (1, 1), (1, 1), (0, 0)))
    cols = [xp[:, kh:kh + H, kw:kw + W, :] for kh in range(3) for kw in range(3)]
    rows = jnp.concatenate(cols, axis=-1)              # (N, H, W, 9C)
    return rows.reshape(N * H * W, 9 * C).astype(jnp.bfloat16)


def resnet_block_forward(x, params):
    """x: (N, C, H, W) f32 (NCHW, PyTorch layout). Returns NCHW f32."""
    N, C, H, W = x.shape
    HW = H * W
    M = N * HW
    assert HW % 8 == 0

    alpha = jnp.reshape(jnp.asarray(params['alpha'], jnp.float32), (1,))

    # boundary transpose NCHW -> NHWC (done once)
    x_nhwc = jnp.transpose(x, (0, 2, 3, 1))
    x_rows = x_nhwc.reshape(M, C)                                # residual, f32

    # weights reshaped for row-matmul form (bf16 for the MXU)
    w1m = jnp.transpose(params['W1'], (2, 3, 1, 0)).reshape(9 * C, C)
    w1m = w1m.astype(jnp.bfloat16)
    w2m = params['W2'].reshape(4, C).astype(jnp.float32)         # (4, C)
    w3m = params['W3'].reshape(C, 4).T.astype(jnp.float32)       # (4, C)

    # Kernel A: conv1 + PReLU  (bf16 rows out, halves HBM traffic)
    rows_x = _im2col3x3(x_nhwc)
    y1 = _conv_prelu(rows_x, w1m, alpha, tile_m=HW)              # (M, C) bf16

    # Kernel B: conv1 again + *0.1 + x + avgpool + SE gate, fully fused
    rows_y1 = _im2col3x3(y1.reshape(N, H, W, C))
    out_rows = _conv_res_se(rows_y1, w1m, x_rows, w2m, w3m, alpha, HW)

    # boundary transpose NHWC -> NCHW
    return jnp.transpose(out_rows.reshape(N, H, W, C), (0, 3, 1, 2))


# ------------------------- Pure-JAX reference (check) ------------------------

def _ref_forward(x, p):
    a = jnp.asarray(p['alpha'], jnp.float32)
    prelu = lambda v: jnp.where(v > 0, v, a * v)
    dn = ('NCHW', 'OIHW', 'NCHW')

    def conv(v, w, pad):
        return jax.lax.conv_general_dilated(v, w, (1, 1), [(pad, pad)] * 2,
                                            dimension_numbers=dn)

    out = prelu(conv(x, p['W1'], 1))
    out = conv(out, p['W1'], 1) * 0.1 + x
    res1 = out
    pooled = jnp.mean(out, axis=(2, 3), keepdims=True)           # (N, C, 1, 1)
    s = prelu(conv(pooled, p['W2'], 0))
    s = conv(s, p['W3'], 0)
    s = jax.nn.sigmoid(s)
    return s * res1


# ---------------------------------- main --------------------------------------

if __name__ == "__main__":
    key = jax.random.PRNGKey(0)
    ks = jax.random.split(key, 4)
    N, C, H, W = 2, 128, 16, 16        # num_filter = 128 (lane-dense channels)
    x = jax.random.normal(ks[0], (N, C, H, W), jnp.float32)

    params = {
        'W1': jax.random.normal(ks[1], (C, C, 3, 3), jnp.float32) * 0.05,   # conv1
        'W2': jax.random.normal(ks[2], (4, C, 1, 1), jnp.float32) * 0.50,   # conv2
        'W3': jax.random.normal(ks[3], (C, 4, 1, 1), jnp.float32) * 0.50,   # conv3
        'alpha': 0.25,                                                      # PReLU
    }

    out = jax.jit(resnet_block_forward)(x, params)
    out = jax.block_until_ready(out)
    assert out.shape == (N, C, H, W), out.shape

    ref = _ref_forward(x, params)
    rel_err = float(jnp.max(jnp.abs(out - ref)) / (jnp.max(jnp.abs(ref)) + 1e-9))
    assert rel_err < 2e-2, f"mismatch vs reference: rel_err={rel_err}"

    print("KERNEL_OK")
</pallas_src>

<mosaic_0001>
module attributes {stable_mosaic.version = 11 : i64} {
  func.func @_conv_prelu_kernel(%arg0: i32, %arg1: memref<1xf32, #tpu.memory_space<smem>>, %arg2: memref<256x1152xbf16, #tpu.memory_space<vmem>>, %arg3: memref<1152x128xbf16, #tpu.memory_space<vmem>>, %arg4: memref<256x128xbf16, #tpu.memory_space<vmem>>) attributes {dimension_semantics = [#tpu.dimension_semantics<parallel>], iteration_bounds = array<i64: 2>, scalar_prefetch = 0 : i64, scratch_operands = 0 : i64, tpu.core_type = #tpu.core_type<tc>, window_params = [{transform_indices = @transform_0, window_bounds = array<i64: 1>}, {transform_indices = @transform_1, window_bounds = array<i64: 256, 1152>}, {pipeline_mode = #tpu.pipeline_mode<synchronous>, transform_indices = @transform_2, window_bounds = array<i64: 1152, 128>}, {transform_indices = @transform_3, window_bounds = array<i64: 256, 128>}]} {
    %c0 = arith.constant 0 : index
    %c0_0 = arith.constant 0 : index
    %0 = vector.load %arg2[%c0, %c0_0] : memref<256x1152xbf16, #tpu.memory_space<vmem>>, vector<256x1152xbf16>
    %c0_1 = arith.constant 0 : index
    %c0_2 = arith.constant 0 : index
    %1 = vector.load %arg3[%c0_1, %c0_2] : memref<1152x128xbf16, #tpu.memory_space<vmem>>, vector<1152x128xbf16>
    %cst = arith.constant dense<0.000000e+00> : vector<256x128xf32>
    %2 = tpu.matmul %0, %1, %cst {dimension_numbers = #tpu.dot_dimension_numbers<[1], [0], [0], [1], [0, 0, 1, 1], [], []>} : vector<256x1152xbf16>, vector<1152x128xbf16>, vector<256x128xf32> -> vector<256x128xf32>
    %c0_3 = arith.constant 0 : index
    %3 = memref.load %arg1[%c0_3] : memref<1xf32, #tpu.memory_space<smem>>
    %cst_4 = arith.constant 0.000000e+00 : f32
    %4 = vector.broadcast %cst_4 : f32 to vector<256x128xf32>
    %5 = arith.cmpf ogt, %2, %4 : vector<256x128xf32>
    %6 = vector.broadcast %3 : f32 to vector<256x128xf32>
    %7 = arith.mulf %6, %2 : vector<256x128xf32>
    %8 = arith.select %5, %2, %7 : vector<256x128xi1>, vector<256x128xf32>
    %9 = arith.truncf %8 : vector<256x128xf32> to vector<256x128xbf16>
    %c0_5 = arith.constant 0 : index
    %c0_6 = arith.constant 0 : index
    %10 = vector.load %arg4[%c0_5, %c0_6] : memref<256x128xbf16, #tpu.memory_space<vmem>>, vector<256x128xbf16>
    tpu.vector_store %arg4[%c0_5, %c0_6], %9 {strides = array<i32>} : memref<256x128xbf16, #tpu.memory_space<vmem>>, vector<256x128xbf16>,
    return
  }
  func.func @transform_0(%arg0: i32) -> i32 {
    %c0_i32 = arith.constant 0 : i32
    %c0_i32_0 = arith.constant 0 : i32
    return %c0_i32 : i32
  }
  func.func @transform_1(%arg0: i32) -> (i32, i32) {
    %c0_i32 = arith.constant 0 : i32
    %c0_i32_0 = arith.constant 0 : i32
    return %arg0, %c0_i32 : i32, i32
  }
  func.func @transform_2(%arg0: i32) -> (i32, i32) {
    %c0_i32 = arith.constant 0 : i32
    %c0_i32_0 = arith.constant 0 : i32
    %c0_i32_1 = arith.constant 0 : i32
    return %c0_i32, %c0_i32_0 : i32, i32
  }
  func.func @transform_3(%arg0: i32) -> (i32, i32) {
    %c0_i32 = arith.constant 0 : i32
    %c0_i32_0 = arith.constant 0 : i32
    return %arg0, %c0_i32 : i32, i32
  }
}

module attributes {stable_mosaic.version = 11 : i64} {
  func.func @_conv_res_se_kernel(%arg0: i32, %arg1: memref<1xf32, #tpu.memory_space<smem>>, %arg2: memref<256x1152xbf16, #tpu.memory_space<vmem>>, %arg3: memref<1152x128xbf16, #tpu.memory_space<vmem>>, %arg4: memref<256x128xf32, #tpu.memory_space<vmem>>, %arg5: memref<4x128xf32, #tpu.memory_space<vmem>>, %arg6: memref<4x128xf32, #tpu.memory_space<vmem>>, %arg7: memref<256x128xf32, #tpu.memory_space<vmem>>) attributes {dimension_semantics = [#tpu.dimension_semantics<parallel>], iteration_bounds = array<i64: 2>, scalar_prefetch = 0 : i64, scratch_operands = 0 : i64, tpu.core_type = #tpu.core_type<tc>, window_params = [{transform_indices = @transform_0, window_bounds = array<i64: 1>}, {transform_indices = @transform_1, window_bounds = array<i64: 256, 1152>}, {pipeline_mode = #tpu.pipeline_mode<synchronous>, transform_indices = @transform_2, window_bounds = array<i64: 1152, 128>}, {transform_indices = @transform_3, window_bounds = array<i64: 256, 128>}, {pipeline_mode = #tpu.pipeline_mode<synchronous>, transform_indices = @transform_4, window_bounds = array<i64: 4, 128>}, {pipeline_mode = #tpu.pipeline_mode<synchronous>, transform_indices = @transform_5, window_bounds = array<i64: 4, 128>}, {transform_indices = @transform_6, window_bounds = array<i64: 256, 128>}]} {
    %c0 = arith.constant 0 : index
    %0 = memref.load %arg1[%c0] : memref<1xf32, #tpu.memory_space<smem>>
    %c0_0 = arith.constant 0 : index
    %c0_1 = arith.constant 0 : index
    %1 = vector.load %arg2[%c0_0, %c0_1] : memref<256x1152xbf16, #tpu.memory_space<vmem>>, vector<256x1152xbf16>
    %c0_2 = arith.constant 0 : index
    %c0_3 = arith.constant 0 : index
    %2 = vector.load %arg3[%c0_2, %c0_3] : memref<1152x128xbf16, #tpu.memory_space<vmem>>, vector<1152x128xbf16>
    %cst = arith.constant dense<0.000000e+00> : vector<256x128xf32>
    %3 = tpu.matmul %1, %2, %cst {dimension_numbers = #tpu.dot_dimension_numbers<[1], [0], [0], [1], [0, 0, 1, 1], [], []>} : vector<256x1152xbf16>, vector<1152x128xbf16>, vector<256x128xf32> -> vector<256x128xf32>
    %cst_4 = arith.constant 1.000000e-01 : f32
    %4 = vector.broadcast %cst_4 : f32 to vector<256x128xf32>
    %5 = arith.mulf %3, %4 : vector<256x128xf32>
    %c0_5 = arith.constant 0 : index
    %c0_6 = arith.constant 0 : index
    %6 = vector.load %arg4[%c0_5, %c0_6] : memref<256x128xf32, #tpu.memory_space<vmem>>, vector<256x128xf32>
    %7 = arith.addf %5, %6 : vector<256x128xf32>
    %cst_7 = arith.constant dense<0.000000e+00> : vector<128xf32>
    %8 = vector.multi_reduction <add>, %7, %cst_7 [0] : vector<256x128xf32> to vector<128xf32>
    %9 = vector.shape_cast %8 : vector<128xf32> to vector<1x128xf32>
    %cst_8 = arith.constant 2.560000e+02 : f32
    %10 = vector.broadcast %cst_8 : f32 to vector<1x128xf32>
    %11 = arith.divf %9, %10 : vector<1x128xf32>
    %c0_9 = arith.constant 0 : index
    %c0_10 = arith.constant 0 : index
    %12 = vector.load %arg5[%c0_9, %c0_10] : memref<4x128xf32, #tpu.memory_space<vmem>>, vector<4x128xf32>
    %13 = vector.broadcast %11 : vector<1x128xf32> to vector<4x128xf32>
    %14 = arith.mulf %13, %12 : vector<4x128xf32>
    %cst_11 = arith.constant dense<0.000000e+00> : vector<4xf32>
    %15 = vector.multi_reduction <add>, %14, %cst_11 [1] : vector<4x128xf32> to vector<4xf32>
    %16 = vector.shape_cast %15 : vector<4xf32> to vector<4x1xf32>
    %cst_12 = arith.constant 0.000000e+00 : f32
    %17 = vector.broadcast %cst_12 : f32 to vector<4x1xf32>
    %18 = arith.cmpf ogt, %16, %17 : vector<4x1xf32>
    %19 = vector.broadcast %0 : f32 to vector<4x1xf32>
    %20 = arith.mulf %19, %16 : vector<4x1xf32>
    %21 = arith.select %18, %16, %20 : vector<4x1xi1>, vector<4x1xf32>
    %c0_13 = arith.constant 0 : index
    %c0_14 = arith.constant 0 : index
    %22 = vector.load %arg6[%c0_13, %c0_14] : memref<4x128xf32, #tpu.memory_space<vmem>>, vector<4x128xf32>
    %23 = vector.broadcast %21 : vector<4x1xf32> to vector<4x128xf32>
    %24 = arith.mulf %23, %22 : vector<4x128xf32>
    %cst_15 = arith.constant dense<0.000000e+00> : vector<128xf32>
    %25 = vector.multi_reduction <add>, %24, %cst_15 [0] : vector<4x128xf32> to vector<128xf32>
    %26 = vector.shape_cast %25 : vector<128xf32> to vector<1x128xf32>
    %cst_16 = arith.constant 0.000000e+00 : f32
    %27 = vector.broadcast %cst_16 : f32 to vector<1x128xf32>
    %28 = arith.subf %27, %26 : vector<1x128xf32>
    %29 = math.exp %28 : vector<1x128xf32>
    %cst_17 = arith.constant 1.000000e+00 : f32
    %30 = vector.broadcast %cst_17 : f32 to vector<1x128xf32>
    %31 = arith.addf %30, %29 : vector<1x128xf32>
    %32 = tpu.reciprocal %31 {approx = true} : vector<1x128xf32> -> vector<1x128xf32>
    %33 = vector.broadcast %32 : vector<1x128xf32> to vector<256x128xf32>
    %34 = arith.mulf %7, %33 : vector<256x128xf32>
    %c0_18 = arith.constant 0 : index
    %c0_19 = arith.constant 0 : index
    %35 = vector.load %arg7[%c0_18, %c0_19] : memref<256x128xf32, #tpu.memory_space<vmem>>, vector<256x128xf32>
    tpu.vector_store %arg7[%c0_18, %c0_19], %34 {strides = array<i32>} : memref<256x128xf32, #tpu.memory_space<vmem>>, vector<256x128xf32>,
    return
  }
  func.func @transform_0(%arg0: i32) -> i32 {
    %c0_i32 = arith.constant 0 : i32
    %c0_i32_0 = arith.constant 0 : i32
    return %c0_i32 : i32
  }
  func.func @transform_1(%arg0: i32) -> (i32, i32) {
    %c0_i32 = arith.constant 0 : i32
    %c0_i32_0 = arith.constant 0 : i32
    return %arg0, %c0_i32 : i32, i32
  }
  func.func @transform_2(%arg0: i32) -> (i32, i32) {
    %c0_i32 = arith.constant 0 : i32
    %c0_i32_0 = arith.constant 0 : i32
    %c0_i32_1 = arith.constant 0 : i32
    return %c0_i32, %c0_i32_0 : i32, i32
  }
  func.func @transform_3(%arg0: i32) -> (i32, i32) {
    %c0_i32 = arith.constant 0 : i32
    %c0_i32_0 = arith.constant 0 : i32
    return %arg0, %c0_i32 : i32, i32
  }
  func.func @transform_4(%arg0: i32) -> (i32, i32) {
    %c0_i32 = arith.constant 0 : i32
    %c0_i32_0 = arith.constant 0 : i32
    %c0_i32_1 = arith.constant 0 : i32
    return %c0_i32, %c0_i32_0 : i32, i32
  }
  func.func @transform_5(%arg0: i32) -> (i32, i32) {
    %c0_i32 = arith.constant 0 : i32
    %c0_i32_0 = arith.constant 0 : i32
    %c0_i32_1 = arith.constant 0 : i32
    return %c0_i32, %c0_i32_0 : i32, i32
  }
  func.func @transform_6(%arg0: i32) -> (i32, i32) {
    %c0_i32 = arith.constant 0 : i32
    %c0_i32_0 = arith.constant 0 : i32
    return %arg0, %c0_i32 : i32, i32
  }
}

</mosaic_0001>

<llo_original>
// kernel: resnet_block_forward.2
$region0: #{resnet_block_forward.2}
  #allocation0 [shape = 'u32[]', space=smem, size = 0x4, offset = 0x4, fixed_abs, tag = 'smem constant byte address 0x4 - core index']
  #allocation1 [shape = 'u32[144,128]{1,0:T(1,128)}', space=vmem, size = 0x12000, scoped, tag = 'internal scratch']
  #allocation2 [shape = 'f32[1]{0:T(128)S(6)}', space=smem, size = 0x200, scoped, tag = 'scoped memory for resnet_block_forward.2']
  %s0 = inlined_call_operand.<no memory space> [shape: f32[1], index: 0, kind: input, shape index: {}]
  %s1 = inlined_call_operand.vmem [shape: bf16[512,1152], index: 1, kind: input, shape index: {}]
  %s2 = inlined_call_operand.vmem [shape: bf16[1152,128], index: 2, kind: input, shape index: {}]
  %s3 = inlined_call_operand.vmem [shape: bf16[512,128], index: 3, kind: output, shape index: {}]
  %s4 = sld [smem:[#allocation0]]
  $region45: #{resnet_block_forward.2} parent=0
    _
  %s6 = ssub.s32 1, %s4
  %s7 = scalar_select 0, %s6, %s4
  %8 = sst [smem:[#allocation2]] %s0
  loop: start=0, step=1, limit=4
  $region2: #{resnet_block_forward.2} parent=0 // loop_pre_header
    _
  $region3: #{resnet_block_forward.2} parent=0 // loop_header
    %s10 = sphi 0, %s14
    %p11 = scmp.ge.s32.totalorder %s10, 4
    %s18 = sphi 0, %s18
    %s20 = sphi 0, %s18
    %s21 = sphi 0, %s20
    %s35 = sphi 0, %s21
    %s41 = sphi 0, %s43
    %s44 = sphi 0, %s41
    %s45 = sphi 0, %s44
    %s61 = sphi 0, %s45
    %s65 = sphi 0, %s65
    %s67 = sphi 0, %s65
    %s68 = sphi 0, %s67
    %s82 = sphi 0, %s68
    %s88 = sphi 0, %s90
    %s91 = sphi 0, %s88
    %s92 = sphi 0, %s91
    %s108 = sphi 0, %s92
  $region4: #{resnet_block_forward.2} parent=0 // loop_header_branch
    %13 = sbr.rel (%p11) target = $region8
  $region5: #{resnet_block_forward.2} parent=0 // loop_body
    %s15 = ssub.s32 %s10, 1
    %s16 = ssub.s32 %s10, 2
    %s17 = sadd.s32 %s10, 1
    %s19 = sadd.s32 %s18, 1
    %p22 = scmp.eq.s32.totalorder %s10, 1
    %p23 = scmp.ne.s32.totalorder %s18, %s20
    %p24 = scmp.eq.s32.totalorder %s10, 0
    %p25 = por %p23, %p24
    %p26 = scmp.ne.s32.totalorder %s18, %s20
    %p27 = scmp.eq.s32.totalorder %s15, 1
    %p28 = por %p26, %p27
    %p29 = scmp.ne.s32.totalorder %s20, %s21
    %p30 = scmp.eq.s32.totalorder %s15, 0
    %p31 = por %p29, %p30
    %p32 = scmp.ne.s32.totalorder %s20, %s21
    %p33 = scmp.eq.s32.totalorder %s16, 1
    %p34 = por %p32, %p33
    %p36 = scmp.ne.s32.totalorder %s21, %s35
    %p37 = scmp.eq.s32.totalorder %s16, 0
    %p38 = por %p36, %p37
    %s39 = ssub.s32 %s10, %s17
    %p40 = scmp.eq.s32.totalorder %s39, 0
    %s42 = sadd.s32 %s41, 1
    %s43 = scalar_select %p40, %s41, %s42
    %p46 = pneg %p40
    %p47 = scmp.eq.s32.totalorder %s10, 1
    %p48 = por %p46, %p47
    %p49 = scmp.ne.s32.totalorder %s41, %s44
    %p50 = scmp.eq.s32.totalorder %s10, 0
    %p51 = por %p49, %p50
    %p52 = scmp.ne.s32.totalorder %s41, %s44
    %p53 = scmp.eq.s32.totalorder %s15, 1
    %p54 = por %p52, %p53
    %p55 = scmp.ne.s32.totalorder %s44, %s45
    %p56 = scmp.eq.s32.totalorder %s15, 0
    %p57 = por %p55, %p56
    %p58 = scmp.ne.s32.totalorder %s44, %s45
    %p59 = scmp.eq.s32.totalorder %s16, 1
    %p60 = por %p58, %p59
    %p62 = scmp.ne.s32.totalorder %s45, %s61
    %p63 = scmp.eq.s32.totalorder %s16, 0
    %p64 = por %p62, %p63
    %s66 = sadd.s32 %s65, 1
    %p69 = scmp.eq.s32.totalorder %s10, 1
    %p70 = scmp.ne.s32.totalorder %s65, %s67
    %p71 = scmp.eq.s32.totalorder %s10, 0
    %p72 = por %p70, %p71
    %p73 = scmp.ne.s32.totalorder %s65, %s67
    %p74 = scmp.eq.s32.totalorder %s15, 1
    %p75 = por %p73, %p74
    %p76 = scmp.ne.s32.totalorder %s67, %s68
    %p77 = scmp.eq.s32.totalorder %s15, 0
    %p78 = por %p76, %p77
    %p79 = scmp.ne.s32.totalorder %s67, %s68
    %p80 = scmp.eq.s32.totalorder %s16, 1
    %p81 = por %p79, %p80
    %p83 = scmp.ne.s32.totalorder %s68, %s82
    %p84 = scmp.eq.s32.totalorder %s16, 0
    %p85 = por %p83, %p84
    %s86 = ssub.s32 %s10, %s17
    %p87 = scmp.eq.s32.totalorder %s86, 0
    %s89 = sadd.s32 %s88, 1
    %s90 = scalar_select %p87, %s88, %s89
    %p93 = pneg %p87
    %p94 = scmp.eq.s32.totalorder %s10, 1
    %p95 = por %p93, %p94
    %p96 = scmp.ne.s32.totalorder %s88, %s91
    %p97 = scmp.eq.s32.totalorder %s10, 0
    %p98 = por %p96, %p97
    %p99 = scmp.ne.s32.totalorder %s88, %s91
    %p100 = scmp.eq.s32.totalorder %s15, 1
    %p101 = por %p99, %p100
    %p102 = scmp.ne.s32.totalorder %s91, %s92
    %p103 = scmp.eq.s32.totalorder %s15, 0
    %p104 = por %p102, %p103
    %p105 = scmp.ne.s32.totalorder %s91, %s92
    %p106 = scmp.eq.s32.totalorder %s16, 1
    %p107 = por %p105, %p106
    %p109 = scmp.ne.s32.totalorder %s92, %s108
    %p110 = scmp.eq.s32.totalorder %s16, 0
    %p111 = por %p109, %p110
    %p112 = scmp.le.s32.totalorder 1, %s10
    %p113 = scmp.lt.s32.totalorder %s10, 3
    %p114 = pnand %p112, %p113
    %p115 = pneg %p114
    // Predicated region
    $region9: #{resnet_block_forward.2} parent=5 // pred_check
      _
    $region10: #{resnet_block_forward.2} parent=5 // pred_check_branch
      %117 = sbr.rel (%p114) target = $region12
    $region11: #{resnet_block_forward.2} parent=5 // pred_region
      %s118 = ssub.s32 %s10, 1
      // Predicated region
      $region13: #{resnet_block_forward.2} parent=11 // pred_check
        %p119 = pneg %p31
      $region14: #{resnet_block_forward.2} parent=11 // pred_check_branch
        %121 = sbr.rel (%p119) target = $region16
      $region15: #{resnet_block_forward.2} parent=11 // pred_region
        _
      $region16: #{resnet_block_forward.2} parent=11 // pred_fallthru
        _
      // Predicated region
      $region17: #{resnet_block_forward.2} parent=11 // pred_check
        %p122 = pneg %p78
      $region18: #{resnet_block_forward.2} parent=11 // pred_check_branch
        %124 = sbr.rel (%p122) target = $region20
      $region19: #{resnet_block_forward.2} parent=11 // pred_region
        _
      $region20: #{resnet_block_forward.2} parent=11 // pred_fallthru
        _
    $region12: #{resnet_block_forward.2} parent=5 // pred_fallthru
      _
    %p125 = scmp.lt.s32.totalorder %s10, 2
    // Predicated region
    $region21: #{resnet_block_forward.2} parent=5 // pred_check
      %p126 = pneg %p125
    $region22: #{resnet_block_forward.2} parent=5 // pred_check_branch
      %128 = sbr.rel (%p126) target = $region24
    $region23: #{resnet_block_forward.2} parent=5 // pred_region
      // Predicated region
      $region25: #{resnet_block_forward.2} parent=23 // pred_check
        %p129 = pneg %p51
      $region26: #{resnet_block_forward.2} parent=23 // pred_check_branch
        %131 = sbr.rel (%p129) target = $region28
      $region27: #{resnet_block_forward.2} parent=23 // pred_region
        %s132 = smul.u32 32, %s10
        %p133 = scmp.lt.s32.totalorder %s132, 63
        %s134 = scalar_select %p133, %s132, 63
        %s135 = smul.addr %s134, 9
        %s136 = smul.addr %s135, 4
        %s137 = scalar_lea.vmem %s1, %s136
        %s138 = smul.u32 32, %s10
      $region28: #{resnet_block_forward.2} parent=23 // pred_fallthru
        _
    $region24: #{resnet_block_forward.2} parent=5 // pred_fallthru
      _
    %p139 = scmp.le.s32.totalorder 1, %s10
    %p140 = scmp.lt.s32.totalorder %s10, 3
    %p141 = pnand %p139, %p140
    %p142 = pneg %p141
    // Predicated region
    $region29: #{resnet_block_forward.2} parent=5 // pred_check
      _
    $region30: #{resnet_block_forward.2} parent=5 // pred_check_branch
      %144 = sbr.rel (%p141) target = $region32
    $region31: #{resnet_block_forward.2} parent=5 // pred_region
      %s145 = ssub.s32 %s10, 1
      %p146 = pneg %p31
      %p147 = pneg %p28
      %s148 = smul.u32 32, %s15
      %p149 = scmp.lt.s32.totalorder %s148, 63
      %s150 = scalar_select %p149, %s148, 63
      %s151 = smul.addr %s150, 9
      %s152 = smul.addr %s151, 4
      %s153 = scalar_lea.vmem %s1, %s152
      %p154 = pneg %p57
      %p155 = pneg %p54
      %p156 = pneg %p78
      %p157 = pneg %p75
      %p158 = pneg %p104
      %p159 = pneg %p101
      %s160 = smul.u32 32, %s15
      %p161 = scmp.lt.s32.totalorder %s160, 63
      %s162 = scalar_select %p161, %s160, 63
      %s163 = smul.addr %s162, 4
      %s164 = scalar_lea.vmem %s3, %s163
      %s165 = smul.u32 32, %s15
      %p166 = scmp.lt.s32.totalorder %s165, 63
      %s167 = scalar_select %p166, %s165, 63
      %s168 = smul.addr %s167, 9
      %s169 = smul.addr %s168, 4
      %s170 = scalar_lea.vmem %s1, %s169
      %s171 = smul.u32 32, %s15
      %s172 = smul.u32 32, %s15
      %p173 = scmp.lt.s32.totalorder %s172, 63
      %s174 = scalar_select %p173, %s172, 63
      %s175 = smul.addr %s174, 4
      %s176 = scalar_lea.vmem %s3, %s175
      %s177 = smul.u32 32, %s15
      %v179 = vld [vmem:[%s170] sm:$0xff]
      %v180 = vld [vmem:[%s170 + $0x8] sm:$0xff]
      %v181 = vld [vmem:[%s170 + $0x10] sm:$0xff]
      %v182 = vld [vmem:[%s170 + $0x18] sm:$0xff]
      %v183 = vld [vmem:[%s170 + $0x20] sm:$0xf]
      %v184 = vld [vmem:[%s170 + $0x24] sm:$0xff]
      %v185 = vld [vmem:[%s170 + $0x2c] sm:$0xff]
      %v186 = vld [vmem:[%s170 + $0x34] sm:$0xff]
      %v187 = vld [vmem:[%s170 + $0x3c] sm:$0xff]
      %v188 = vld [vmem:[%s170 + $0x44] sm:$0xf]
      %v189 = vld [vmem:[%s170 + $0x48] sm:$0xff]
      %v190 = vld [vmem:[%s170 + $0x50] sm:$0xff]
      %v191 = vld [vmem:[%s170 + $0x58] sm:$0xff]
      %v192 = vld [vmem:[%s170 + $0x60] sm:$0xff]
      %v193 = vld [vmem:[%s170 + $0x68] sm:$0xf]
      %v194 = vld [vmem:[%s170 + $0x6c] sm:$0xff]
      %v195 = vld [vmem:[%s170 + $0x74] sm:$0xff]
      %v196 = vld [vmem:[%s170 + $0x7c] sm:$0xff]
      %v197 = vld [vmem:[%s170 + $0x84] sm:$0xff]
      %v198 = vld [vmem:[%s170 + $0x8c] sm:$0xf]
      %v199 = vld [vmem:[%s170 + $0x90] sm:$0xff]
      %v200 = vld [vmem:[%s170 + $0x98] sm:$0xff]
      %v201 = vld [vmem:[%s170 + $0xa0] sm:$0xff]
      %v202 = vld [vmem:[%s170 + $0xa8] sm:$0xff]
      %v203 = vld [vmem:[%s170 + $0xb0] sm:$0xf]
      %v204 = vld [vmem:[%s170 + $0xb4] sm:$0xff]
      %v205 = vld [vmem:[%s170 + $0xbc] sm:$0xff]
      %v206 = vld [vmem:[%s170 + $0xc4] sm:$0xff]
      %v207 = vld [vmem:[%s170 + $0xcc] sm:$0xff]
      %v208 = vld [vmem:[%s170 + $0xd4] sm:$0xf]
      %v209 = vld [vmem:[%s170 + $0xd8] sm:$0xff]
      %v210 = vld [vmem:[%s170 + $0xe0] sm:$0xff]
      %v211 = vld [vmem:[%s170 + $0xe8] sm:$0xff]
      %v212 = vld [vmem:[%s170 + $0xf0] sm:$0xff]
      %v213 = vld [vmem:[%s170 + $0xf8] sm:$0xf]
      %v214 = vld [vmem:[%s170 + $0xfc] sm:$0xff]
      %v215 = vld [vmem:[%s170 + $0x104] sm:$0xff]
      %v216 = vld [vmem:[%s170 + $0x10c] sm:$0xff]
      %v217 = vld [vmem:[%s170 + $0x114] sm:$0xff]
      %v218 = vld [vmem:[%s170 + $0x11c] sm:$0xf]
      %v219 = vld [vmem:[%s170 + $0x120] sm:$0xff]
      %v220 = vld [vmem:[%s170 + $0x128] sm:$0xff]
      %v221 = vld [vmem:[%s170 + $0x130] sm:$0xff]
      %v222 = vld [vmem:[%s170 + $0x138] sm:$0xff]
      %v223 = vld [vmem:[%s170 + $0x140] sm:$0xf]
      %v224 = vld [vmem:[%s170 + $0x144] sm:$0xff]
      %v225 = vld [vmem:[%s170 + $0x14c] sm:$0xff]
      %v226 = vld [vmem:[%s170 + $0x154] sm:$0xff]
      %v227 = vld [vmem:[%s170 + $0x15c] sm:$0xff]
      %v228 = vld [vmem:[%s170 + $0x164] sm:$0xf]
      %v229 = vld [vmem:[%s170 + $0x168] sm:$0xff]
      %v230 = vld [vmem:[%s170 + $0x170] sm:$0xff]
      %v231 = vld [vmem:[%s170 + $0x178] sm:$0xff]
      %v232 = vld [vmem:[%s170 + $0x180] sm:$0xff]
      %v233 = vld [vmem:[%s170 + $0x188] sm:$0xf]
      %v234 = vld [vmem:[%s170 + $0x18c] sm:$0xff]
      %v235 = vld [vmem:[%s170 + $0x194] sm:$0xff]
      %v236 = vld [vmem:[%s170 + $0x19c] sm:$0xff]
      %v237 = vld [vmem:[%s170 + $0x1a4] sm:$0xff]
      %v238 = vld [vmem:[%s170 + $0x1ac] sm:$0xf]
      %v239 = vld [vmem:[%s170 + $0x1b0] sm:$0xff]
      %v240 = vld [vmem:[%s170 + $0x1b8] sm:$0xff]
      %v241 = vld [vmem:[%s170 + $0x1c0] sm:$0xff]
      %v242 = vld [vmem:[%s170 + $0x1c8] sm:$0xff]
      %v243 = vld [vmem:[%s170 + $0x1d0] sm:$0xf]
      %v244 = vld [vmem:[%s170 + $0x1d4] sm:$0xff]
      %v245 = vld [vmem:[%s170 + $0x1dc] sm:$0xff]
      %v246 = vld [vmem:[%s170 + $0x1e4] sm:$0xff]
      %v247 = vld [vmem:[%s170 + $0x1ec] sm:$0xff]
      %v248 = vld [vmem:[%s170 + $0x1f4] sm:$0xf]
      %v249 = vld [vmem:[%s170 + $0x1f8] sm:$0xff]
      %v250 = vld [vmem:[%s170 + $0x200] sm:$0xff]
      %v251 = vld [vmem:[%s170 + $0x208] sm:$0xff]
      %v252 = vld [vmem:[%s170 + $0x210] sm:$0xff]
      %v253 = vld [vmem:[%s170 + $0x218] sm:$0xf]
      %v254 = vld [vmem:[%s170 + $0x21c] sm:$0xff]
      %v255 = vld [vmem:[%s170 + $0x224] sm:$0xff]
      %v256 = vld [vmem:[%s170 + $0x22c] sm:$0xff]
      %v257 = vld [vmem:[%s170 + $0x234] sm:$0xff]
      %v258 = vld [vmem:[%s170 + $0x23c] sm:$0xf]
      %v259 = vld [vmem:[%s170 + $0x240] sm:$0xff]
      %v260 = vld [vmem:[%s170 + $0x248] sm:$0xff]
      %v261 = vld [vmem:[%s170 + $0x250] sm:$0xff]
      %v262 = vld [vmem:[%s170 + $0x258] sm:$0xff]
      %v263 = vld [vmem:[%s170 + $0x260] sm:$0xf]
      %v264 = vld [vmem:[%s170 + $0x264] sm:$0xff]
      %v265 = vld [vmem:[%s170 + $0x26c] sm:$0xff]
      %v266 = vld [vmem:[%s170 + $0x274] sm:$0xff]
      %v267 = vld [vmem:[%s170 + $0x27c] sm:$0xff]
      %v268 = vld [vmem:[%s170 + $0x284] sm:$0xf]
      %v269 = vld [vmem:[%s170 + $0x288] sm:$0xff]
      %v270 = vld [vmem:[%s170 + $0x290] sm:$0xff]
      %v271 = vld [vmem:[%s170 + $0x298] sm:$0xff]
      %v272 = vld [vmem:[%s170 + $0x2a0] sm:$0xff]
      %v273 = vld [vmem:[%s170 + $0x2a8] sm:$0xf]
      %v274 = vld [vmem:[%s170 + $0x2ac] sm:$0xff]
      %v275 = vld [vmem:[%s170 + $0x2b4] sm:$0xff]
      %v276 = vld [vmem:[%s170 + $0x2bc] sm:$0xff]
      %v277 = vld [vmem:[%s170 + $0x2c4] sm:$0xff]
      %v278 = vld [vmem:[%s170 + $0x2cc] sm:$0xf]
      %v279 = vld [vmem:[%s170 + $0x2d0] sm:$0xff]
      %v280 = vld [vmem:[%s170 + $0x2d8] sm:$0xff]
      %v281 = vld [vmem:[%s170 + $0x2e0] sm:$0xff]
      %v282 = vld [vmem:[%s170 + $0x2e8] sm:$0xff]
      %v283 = vld [vmem:[%s170 + $0x2f0] sm:$0xf]
      %v284 = vld [vmem:[%s170 + $0x2f4] sm:$0xff]
      %v285 = vld [vmem:[%s170 + $0x2fc] sm:$0xff]
      %v286 = vld [vmem:[%s170 + $0x304] sm:$0xff]
      %v287 = vld [vmem:[%s170 + $0x30c] sm:$0xff]
      %v288 = vld [vmem:[%s170 + $0x314] sm:$0xf]
      %v289 = vld [vmem:[%s170 + $0x318] sm:$0xff]
      %v290 = vld [vmem:[%s170 + $0x320] sm:$0xff]
      %v291 = vld [vmem:[%s170 + $0x328] sm:$0xff]
      %v292 = vld [vmem:[%s170 + $0x330] sm:$0xff]
      %v293 = vld [vmem:[%s170 + $0x338] sm:$0xf]
      %v294 = vld [vmem:[%s170 + $0x33c] sm:$0xff]
      %v295 = vld [vmem:[%s170 + $0x344] sm:$0xff]
      %v296 = vld [vmem:[%s170 + $0x34c] sm:$0xff]
      %v297 = vld [vmem:[%s170 + $0x354] sm:$0xff]
      %v298 = vld [vmem:[%s170 + $0x35c] sm:$0xf]
      %v299 = vld [vmem:[%s170 + $0x360] sm:$0xff]
      %v300 = vld [vmem:[%s170 + $0x368] sm:$0xff]
      %v301 = vld [vmem:[%s170 + $0x370] sm:$0xff]
      %v302 = vld [vmem:[%s170 + $0x378] sm:$0xff]
      %v303 = vld [vmem:[%s170 + $0x380] sm:$0xf]
      %v304 = vld [vmem:[%s170 + $0x384] sm:$0xff]
      %v305 = vld [vmem:[%s170 + $0x38c] sm:$0xff]
      %v306 = vld [vmem:[%s170 + $0x394] sm:$0xff]
      %v307 = vld [vmem:[%s170 + $0x39c] sm:$0xff]
      %v308 = vld [vmem:[%s170 + $0x3a4] sm:$0xf]
      %v309 = vld [vmem:[%s170 + $0x3a8] sm:$0xff]
      %v310 = vld [vmem:[%s170 + $0x3b0] sm:$0xff]
      %v311 = vld [vmem:[%s170 + $0x3b8] sm:$0xff]
      %v312 = vld [vmem:[%s170 + $0x3c0] sm:$0xff]
      %v313 = vld [vmem:[%s170 + $0x3c8] sm:$0xf]
      %v314 = vld [vmem:[%s170 + $0x3cc] sm:$0xff]
      %v315 = vld [vmem:[%s170 + $0x3d4] sm:$0xff]
      %v316 = vld [vmem:[%s170 + $0x3dc] sm:$0xff]
      %v317 = vld [vmem:[%s170 + $0x3e4] sm:$0xff]
      %v318 = vld [vmem:[%s170 + $0x3ec] sm:$0xf]
      %v319 = vld [vmem:[%s170 + $0x3f0] sm:$0xff]
      %v320 = vld [vmem:[%s170 + $0x3f8] sm:$0xff]
      %v321 = vld [vmem:[%s170 + $0x400] sm:$0xff]
      %v322 = vld [vmem:[%s170 + $0x408] sm:$0xff]
      %v323 = vld [vmem:[%s170 + $0x410] sm:$0xf]
      %v324 = vld [vmem:[%s170 + $0x414] sm:$0xff]
      %v325 = vld [vmem:[%s170 + $0x41c] sm:$0xff]
      %v326 = vld [vmem:[%s170 + $0x424] sm:$0xff]
      %v327 = vld [vmem:[%s170 + $0x42c] sm:$0xff]
      %v328 = vld [vmem:[%s170 + $0x434] sm:$0xf]
      %v329 = vld [vmem:[%s170 + $0x438] sm:$0xff]
      %v330 = vld [vmem:[%s170 + $0x440] sm:$0xff]
      %v331 = vld [vmem:[%s170 + $0x448] sm:$0xff]
      %v332 = vld [vmem:[%s170 + $0x450] sm:$0xff]
      %v333 = vld [vmem:[%s170 + $0x458] sm:$0xf]
      %v334 = vld [vmem:[%s170 + $0x45c] sm:$0xff]
      %v335 = vld [vmem:[%s170 + $0x464] sm:$0xff]
      %v336 = vld [vmem:[%s170 + $0x46c] sm:$0xff]
      %v337 = vld [vmem:[%s170 + $0x474] sm:$0xff]
      %v338 = vld [vmem:[%s170 + $0x47c] sm:$0xf]
      %v339 = vld [vmem:[%s2] sm:$0xf]
      %v340 = vld [vmem:[%s2 + $0x4] sm:$0xf]
      %v341 = vld [vmem:[%s2 + $0x8] sm:$0xf]
      %v342 = vld [vmem:[%s2 + $0xc] sm:$0xf]
      %v343 = vld [vmem:[%s2 + $0x10] sm:$0xf]
      %v344 = vld [vmem:[%s2 + $0x14] sm:$0xf]
      %v345 = vld [vmem:[%s2 + $0x18] sm:$0xf]
      %v346 = vld [vmem:[%s2 + $0x1c] sm:$0xf]
      %v347 = vld [vmem:[%s2 + $0x20] sm:$0xf]
      %v348 = vld [vmem:[%s2 + $0x24] sm:$0xf]
      %v349 = vld [vmem:[%s2 + $0x28] sm:$0xf]
      %v350 = vld [vmem:[%s2 + $0x2c] sm:$0xf]
      %v351 = vld [vmem:[%s2 + $0x30] sm:$0xf]
      %v352 = vld [vmem:[%s2 + $0x34] sm:$0xf]
      %v353 = vld [vmem:[%s2 + $0x38] sm:$0xf]
      %v354 = vld [vmem:[%s2 + $0x3c] sm:$0xf]
      %v355 = vld [vmem:[%s2 + $0x40] sm:$0xf]
      %v356 = vld [vmem:[%s2 + $0x44] sm:$0xf]
      %v357 = vld [vmem:[%s2 + $0x48] sm:$0xf]
      %v358 = vld [vmem:[%s2 + $0x4c] sm:$0xf]
      %v359 = vld [vmem:[%s2 + $0x50] sm:$0xf]
      %v360 = vld [vmem:[%s2 + $0x54] sm:$0xf]
      %v361 = vld [vmem:[%s2 + $0x58] sm:$0xf]
      %v362 = vld [vmem:[%s2 + $0x5c] sm:$0xf]
      %v363 = vld [vmem:[%s2 + $0x60] sm:$0xf]
      %v364 = vld [vmem:[%s2 + $0x64] sm:$0xf]
      %v365 = vld [vmem:[%s2 + $0x68] sm:$0xf]
      %v366 = vld [vmem:[%s2 + $0x6c] sm:$0xf]
      %v367 = vld [vmem:[%s2 + $0x70] sm:$0xf]
      %v368 = vld [vmem:[%s2 + $0x74] sm:$0xf]
      %v369 = vld [vmem:[%s2 + $0x78] sm:$0xf]
      %v370 = vld [vmem:[%s2 + $0x7c] sm:$0xf]
      %v371 = vld [vmem:[%s2 + $0x80] sm:$0xf]
      %v372 = vld [vmem:[%s2 + $0x84] sm:$0xf]
      %v373 = vld [vmem:[%s2 + $0x88] sm:$0xf]
      %v374 = vld [vmem:[%s2 + $0x8c] sm:$0xf]
      %v375 = vld [vmem:[%s2 + $0x90] sm:$0xf]
      %v376 = vld [vmem:[%s2 + $0x94] sm:$0xf]
      %v377 = vld [vmem:[%s2 + $0x98] sm:$0xf]
      %v378 = vld [vmem:[%s2 + $0x9c] sm:$0xf]
      %v379 = vld [vmem:[%s2 + $0xa0] sm:$0xf]
      %v380 = vld [vmem:[%s2 + $0xa4] sm:$0xf]
      %v381 = vld [vmem:[%s2 + $0xa8] sm:$0xf]
      %v382 = vld [vmem:[%s2 + $0xac] sm:$0xf]
      %v383 = vld [vmem:[%s2 + $0xb0] sm:$0xf]
      %v384 = vld [vmem:[%s2 + $0xb4] sm:$0xf]
      %v385 = vld [vmem:[%s2 + $0xb8] sm:$0xf]
      %v386 = vld [vmem:[%s2 + $0xbc] sm:$0xf]
      %v387 = vld [vmem:[%s2 + $0xc0] sm:$0xf]
      %v388 = vld [vmem:[%s2 + $0xc4] sm:$0xf]
      %v389 = vld [vmem:[%s2 + $0xc8] sm:$0xf]
      %v390 = vld [vmem:[%s2 + $0xcc] sm:$0xf]
      %v391 = vld [vmem:[%s2 + $0xd0] sm:$0xf]
      %v392 = vld [vmem:[%s2 + $0xd4] sm:$0xf]
      %v393 = vld [vmem:[%s2 + $0xd8] sm:$0xf]
      %v394 = vld [vmem:[%s2 + $0xdc] sm:$0xf]
      %v395 = vld [vmem:[%s2 + $0xe0] sm:$0xf]
      %v396 = vld [vmem:[%s2 + $0xe4] sm:$0xf]
      %v397 = vld [vmem:[%s2 + $0xe8] sm:$0xf]
      %v398 = vld [vmem:[%s2 + $0xec] sm:$0xf]
      %v399 = vld [vmem:[%s2 + $0xf0] sm:$0xf]
      %v400 = vld [vmem:[%s2 + $0xf4] sm:$0xf]
      %v401 = vld [vmem:[%s2 + $0xf8] sm:$0xf]
      %v402 = vld [vmem:[%s2 + $0xfc] sm:$0xf]
      %v403 = vld [vmem:[%s2 + $0x100] sm:$0xf]
      %v404 = vld [vmem:[%s2 + $0x104] sm:$0xf]
      %v405 = vld [vmem:[%s2 + $0x108] sm:$0xf]
      %v406 = vld [vmem:[%s2 + $0x10c] sm:$0xf]
      %v407 = vld [vmem:[%s2 + $0x110] sm:$0xf]
      %v408 = vld [vmem:[%s2 + $0x114] sm:$0xf]
      %v409 = vld [vmem:[%s2 + $0x118] sm:$0xf]
      %v410 = vld [vmem:[%s2 + $0x11c] sm:$0xf]
      %v411 = vld [vmem:[%s2 + $0x120] sm:$0xf]
      %v412 = vld [vmem:[%s2 + $0x124] sm:$0xf]
      %v413 = vld [vmem:[%s2 + $0x128] sm:$0xf]
      %v414 = vld [vmem:[%s2 + $0x12c] sm:$0xf]
      %v415 = vld [vmem:[%s2 + $0x130] sm:$0xf]
      %v416 = vld [vmem:[%s2 + $0x134] sm:$0xf]
      %v417 = vld [vmem:[%s2 + $0x138] sm:$0xf]
      %v418 = vld [vmem:[%s2 + $0x13c] sm:$0xf]
      %v419 = vld [vmem:[%s2 + $0x140] sm:$0xf]
      %v420 = vld [vmem:[%s2 + $0x144] sm:$0xf]
      %v421 = vld [vmem:[%s2 + $0x148] sm:$0xf]
      %v422 = vld [vmem:[%s2 + $0x14c] sm:$0xf]
      %v423 = vld [vmem:[%s2 + $0x150] sm:$0xf]
      %v424 = vld [vmem:[%s2 + $0x154] sm:$0xf]
      %v425 = vld [vmem:[%s2 + $0x158] sm:$0xf]
      %v426 = vld [vmem:[%s2 + $0x15c] sm:$0xf]
      %v427 = vld [vmem:[%s2 + $0x160] sm:$0xf]
      %v428 = vld [vmem:[%s2 + $0x164] sm:$0xf]
      %v429 = vld [vmem:[%s2 + $0x168] sm:$0xf]
      %v430 = vld [vmem:[%s2 + $0x16c] sm:$0xf]
      %v431 = vld [vmem:[%s2 + $0x170] sm:$0xf]
      %v432 = vld [vmem:[%s2 + $0x174] sm:$0xf]
      %v433 = vld [vmem:[%s2 + $0x178] sm:$0xf]
      %v434 = vld [vmem:[%s2 + $0x17c] sm:$0xf]
      %v435 = vld [vmem:[%s2 + $0x180] sm:$0xf]
      %v436 = vld [vmem:[%s2 + $0x184] sm:$0xf]
      %v437 = vld [vmem:[%s2 + $0x188] sm:$0xf]
      %v438 = vld [vmem:[%s2 + $0x18c] sm:$0xf]
      %v439 = vld [vmem:[%s2 + $0x190] sm:$0xf]
      %v440 = vld [vmem:[%s2 + $0x194] sm:$0xf]
      %v441 = vld [vmem:[%s2 + $0x198] sm:$0xf]
      %v442 = vld [vmem:[%s2 + $0x19c] sm:$0xf]
      %v443 = vld [vmem:[%s2 + $0x1a0] sm:$0xf]
      %v444 = vld [vmem:[%s2 + $0x1a4] sm:$0xf]
      %v445 = vld [vmem:[%s2 + $0x1a8] sm:$0xf]
      %v446 = vld [vmem:[%s2 + $0x1ac] sm:$0xf]
      %v447 = vld [vmem:[%s2 + $0x1b0] sm:$0xf]
      %v448 = vld [vmem:[%s2 + $0x1b4] sm:$0xf]
      %v449 = vld [vmem:[%s2 + $0x1b8] sm:$0xf]
      %v450 = vld [vmem:[%s2 + $0x1bc] sm:$0xf]
      %v451 = vld [vmem:[%s2 + $0x1c0] sm:$0xf]
      %v452 = vld [vmem:[%s2 + $0x1c4] sm:$0xf]
      %v453 = vld [vmem:[%s2 + $0x1c8] sm:$0xf]
      %v454 = vld [vmem:[%s2 + $0x1cc] sm:$0xf]
      %v455 = vld [vmem:[%s2 + $0x1d0] sm:$0xf]
      %v456 = vld [vmem:[%s2 + $0x1d4] sm:$0xf]
      %v457 = vld [vmem:[%s2 + $0x1d8] sm:$0xf]
      %v458 = vld [vmem:[%s2 + $0x1dc] sm:$0xf]
      %v459 = vld [vmem:[%s2 + $0x1e0] sm:$0xf]
      %v460 = vld [vmem:[%s2 + $0x1e4] sm:$0xf]
      %v461 = vld [vmem:[%s2 + $0x1e8] sm:$0xf]
      %v462 = vld [vmem:[%s2 + $0x1ec] sm:$0xf]
      %v463 = vld [vmem:[%s2 + $0x1f0] sm:$0xf]
      %v464 = vld [vmem:[%s2 + $0x1f4] sm:$0xf]
      %v465 = vld [vmem:[%s2 + $0x1f8] sm:$0xf]
      %v466 = vld [vmem:[%s2 + $0x1fc] sm:$0xf]
      %v467 = vld [vmem:[%s2 + $0x200] sm:$0xf]
      %v468 = vld [vmem:[%s2 + $0x204] sm:$0xf]
      %v469 = vld [vmem:[%s2 + $0x208] sm:$0xf]
      %v470 = vld [vmem:[%s2 + $0x20c] sm:$0xf]
      %v471 = vld [vmem:[%s2 + $0x210] sm:$0xf]
      %v472 = vld [vmem:[%s2 + $0x214] sm:$0xf]
      %v473 = vld [vmem:[%s2 + $0x218] sm:$0xf]
      %v474 = vld [vmem:[%s2 + $0x21c] sm:$0xf]
      %v475 = vld [vmem:[%s2 + $0x220] sm:$0xf]
      %v476 = vld [vmem:[%s2 + $0x224] sm:$0xf]
      %v477 = vld [vmem:[%s2 + $0x228] sm:$0xf]
      %v478 = vld [vmem:[%s2 + $0x22c] sm:$0xf]
      %v479 = vld [vmem:[%s2 + $0x230] sm:$0xf]
      %v480 = vld [vmem:[%s2 + $0x234] sm:$0xf]
      %v481 = vld [vmem:[%s2 + $0x238] sm:$0xf]
      %v482 = vld [vmem:[%s2 + $0x23c] sm:$0xf]
      %v643 = vunpack.c.l.b16 %v179
      %v644 = vunpack.c.h.b16 %v179
      %v645 = vunpack.c.l.b16 %v180
      %v646 = vunpack.c.h.b16 %v180
      %v647 = vunpack.c.l.b16 %v181
      %v648 = vunpack.c.h.b16 %v181
      %v649 = vunpack.c.l.b16 %v182
      %v650 = vunpack.c.h.b16 %v182
      %v651 = vunpack.c.l.b16 %v183
      %v652 = vunpack.c.l.b16 %v184
      %v653 = vunpack.c.h.b16 %v184
      %v654 = vunpack.c.l.b16 %v185
      %v655 = vunpack.c.h.b16 %v185
      %v656 = vunpack.c.l.b16 %v186
      %v657 = vunpack.c.h.b16 %v186
      %v658 = vunpack.c.l.b16 %v187
      %v659 = vunpack.c.h.b16 %v187
      %v660 = vunpack.c.l.b16 %v188
      %v661 = vunpack.c.l.b16 %v189
      %v662 = vunpack.c.h.b16 %v189
      %v663 = vunpack.c.l.b16 %v190
      %v664 = vunpack.c.h.b16 %v190
      %v665 = vunpack.c.l.b16 %v191
      %v666 = vunpack.c.h.b16 %v191
      %v667 = vunpack.c.l.b16 %v192
      %v668 = vunpack.c.h.b16 %v192
      %v669 = vunpack.c.l.b16 %v193
      %v670 = vunpack.c.l.b16 %v194
      %v671 = vunpack.c.h.b16 %v194
      %v672 = vunpack.c.l.b16 %v195
      %v673 = vunpack.c.h.b16 %v195
      %v674 = vunpack.c.l.b16 %v196
      %v675 = vunpack.c.h.b16 %v196
      %v676 = vunpack.c.l.b16 %v197
      %v677 = vunpack.c.h.b16 %v197
      %v678 = vunpack.c.l.b16 %v198
      %v679 = vunpack.c.l.b16 %v199
      %v680 = vunpack.c.h.b16 %v199
      %v681 = vunpack.c.l.b16 %v200
      %v682 = vunpack.c.h.b16 %v200
      %v683 = vunpack.c.l.b16 %v201
      %v684 = vunpack.c.h.b16 %v201
      %v685 = vunpack.c.l.b16 %v202
      %v686 = vunpack.c.h.b16 %v202
      %v687 = vunpack.c.l.b16 %v203
      %v688 = vunpack.c.l.b16 %v204
      %v689 = vunpack.c.h.b16 %v204
      %v690 = vunpack.c.l.b16 %v205
      %v691 = vunpack.c.h.b16 %v205
      %v692 = vunpack.c.l.b16 %v206
      %v693 = vunpack.c.h.b16 %v206
      %v694 = vunpack.c.l.b16 %v207
      %v695 = vunpack.c.h.b16 %v207
      %v696 = vunpack.c.l.b16 %v208
      %v697 = vunpack.c.l.b16 %v209
      %v698 = vunpack.c.h.b16 %v209
      %v699 = vunpack.c.l.b16 %v210
      %v700 = vunpack.c.h.b16 %v210
      %v701 = vunpack.c.l.b16 %v211
      %v702 = vunpack.c.h.b16 %v211
      %v703 = vunpack.c.l.b16 %v212
      %v704 = vunpack.c.h.b16 %v212
      %v705 = vunpack.c.l.b16 %v213
      %v706 = vunpack.c.l.b16 %v214
      %v707 = vunpack.c.h.b16 %v214
      %v708 = vunpack.c.l.b16 %v215
      %v709 = vunpack.c.h.b16 %v215
      %v710 = vunpack.c.l.b16 %v216
      %v711 = vunpack.c.h.b16 %v216
      %v712 = vunpack.c.l.b16 %v217
      %v713 = vunpack.c.h.b16 %v217
      %v714 = vunpack.c.l.b16 %v218
      %v715 = vunpack.c.l.b16 %v219
      %v716 = vunpack.c.h.b16 %v219
      %v717 = vunpack.c.l.b16 %v220
      %v718 = vunpack.c.h.b16 %v220
      %v719 = vunpack.c.l.b16 %v221
      %v720 = vunpack.c.h.b16 %v221
      %v721 = vunpack.c.l.b16 %v222
      %v722 = vunpack.c.h.b16 %v222
      %v723 = vunpack.c.l.b16 %v223
      %v724 = vunpack.c.l.b16 %v224
      %v725 = vunpack.c.h.b16 %v224
      %v726 = vunpack.c.l.b16 %v225
      %v727 = vunpack.c.h.b16 %v225
      %v728 = vunpack.c.l.b16 %v226
      %v729 = vunpack.c.h.b16 %v226
      %v730 = vunpack.c.l.b16 %v227
      %v731 = vunpack.c.h.b16 %v227
      %v732 = vunpack.c.l.b16 %v228
      %v733 = vunpack.c.l.b16 %v229
      %v734 = vunpack.c.h.b16 %v229
      %v735 = vunpack.c.l.b16 %v230
      %v736 = vunpack.c.h.b16 %v230
      %v737 = vunpack.c.l.b16 %v231
      %v738 = vunpack.c.h.b16 %v231
      %v739 = vunpack.c.l.b16 %v232
      %v740 = vunpack.c.h.b16 %v232
      %v741 = vunpack.c.l.b16 %v233
      %v742 = vunpack.c.l.b16 %v234
      %v743 = vunpack.c.h.b16 %v234
      %v744 = vunpack.c.l.b16 %v235
      %v745 = vunpack.c.h.b16 %v235
      %v746 = vunpack.c.l.b16 %v236
      %v747 = vunpack.c.h.b16 %v236
      %v748 = vunpack.c.l.b16 %v237
      %v749 = vunpack.c.h.b16 %v237
      %v750 = vunpack.c.l.b16 %v238
      %v751 = vunpack.c.l.b16 %v239
      %v752 = vunpack.c.h.b16 %v239
      %v753 = vunpack.c.l.b16 %v240
      %v754 = vunpack.c.h.b16 %v240
      %v755 = vunpack.c.l.b16 %v241
      %v756 = vunpack.c.h.b16 %v241
      %v757 = vunpack.c.l.b16 %v242
      %v758 = vunpack.c.h.b16 %v242
      %v759 = vunpack.c.l.b16 %v243
      %v760 = vunpack.c.l.b16 %v244
      %v761 = vunpack.c.h.b16 %v244
      %v762 = vunpack.c.l.b16 %v245
      %v763 = vunpack.c.h.b16 %v245
      %v764 = vunpack.c.l.b16 %v246
      %v765 = vunpack.c.h.b16 %v246
      %v766 = vunpack.c.l.b16 %v247
      %v767 = vunpack.c.h.b16 %v247
      %v768 = vunpack.c.l.b16 %v248
      %v769 = vunpack.c.l.b16 %v249
      %v770 = vunpack.c.h.b16 %v249
      %v771 = vunpack.c.l.b16 %v250
      %v772 = vunpack.c.h.b16 %v250
      %v773 = vunpack.c.l.b16 %v251
      %v774 = vunpack.c.h.b16 %v251
      %v775 = vunpack.c.l.b16 %v252
      %v776 = vunpack.c.h.b16 %v252
      %v777 = vunpack.c.l.b16 %v253
      %v778 = vunpack.c.l.b16 %v254
      %v779 = vunpack.c.h.b16 %v254
      %v780 = vunpack.c.l.b16 %v255
      %v781 = vunpack.c.h.b16 %v255
      %v782 = vunpack.c.l.b16 %v256
      %v783 = vunpack.c.h.b16 %v256
      %v784 = vunpack.c.l.b16 %v257
      %v785 = vunpack.c.h.b16 %v257
      %v786 = vunpack.c.l.b16 %v258
      %v787 = vunpack.c.l.b16 %v259
      %v788 = vunpack.c.h.b16 %v259
      %v789 = vunpack.c.l.b16 %v260
      %v790 = vunpack.c.h.b16 %v260
      %v791 = vunpack.c.l.b16 %v261
      %v792 = vunpack.c.h.b16 %v261
      %v793 = vunpack.c.l.b16 %v262
      %v794 = vunpack.c.h.b16 %v262
      %v795 = vunpack.c.l.b16 %v263
      %v796 = vunpack.c.l.b16 %v264
      %v797 = vunpack.c.h.b16 %v264
      %v798 = vunpack.c.l.b16 %v265
      %v799 = vunpack.c.h.b16 %v265
      %v800 = vunpack.c.l.b16 %v266
      %v801 = vunpack.c.h.b16 %v266
      %v802 = vunpack.c.l.b16 %v267
      %v803 = vunpack.c.h.b16 %v267
      %v804 = vunpack.c.l.b16 %v268
      %v805 = vunpack.c.l.b16 %v269
      %v806 = vunpack.c.h.b16 %v269
      %v807 = vunpack.c.l.b16 %v270
      %v808 = vunpack.c.h.b16 %v270
      %v809 = vunpack.c.l.b16 %v271
      %v810 = vunpack.c.h.b16 %v271
      %v811 = vunpack.c.l.b16 %v272
      %v812 = vunpack.c.h.b16 %v272
      %v813 = vunpack.c.l.b16 %v273
      %v814 = vunpack.c.l.b16 %v274
      %v815 = vunpack.c.h.b16 %v274
      %v816 = vunpack.c.l.b16 %v275
      %v817 = vunpack.c.h.b16 %v275
      %v818 = vunpack.c.l.b16 %v276
      %v819 = vunpack.c.h.b16 %v276
      %v820 = vunpack.c.l.b16 %v277
      %v821 = vunpack.c.h.b16 %v277
      %v822 = vunpack.c.l.b16 %v278
      %v823 = vunpack.c.l.b16 %v279
      %v824 = vunpack.c.h.b16 %v279
      %v825 = vunpack.c.l.b16 %v280
      %v826 = vunpack.c.h.b16 %v280
      %v827 = vunpack.c.l.b16 %v281
      %v828 = vunpack.c.h.b16 %v281
      %v829 = vunpack.c.l.b16 %v282
      %v830 = vunpack.c.h.b16 %v282
      %v831 = vunpack.c.l.b16 %v283
      %v832 = vunpack.c.l.b16 %v284
      %v833 = vunpack.c.h.b16 %v284
      %v834 = vunpack.c.l.b16 %v285
      %v835 = vunpack.c.h.b16 %v285
      %v836 = vunpack.c.l.b16 %v286
      %v837 = vunpack.c.h.b16 %v286
      %v838 = vunpack.c.l.b16 %v287
      %v839 = vunpack.c.h.b16 %v287
      %v840 = vunpack.c.l.b16 %v288
      %v841 = vunpack.c.l.b16 %v289
      %v842 = vunpack.c.h.b16 %v289
      %v843 = vunpack.c.l.b16 %v290
      %v844 = vunpack.c.h.b16 %v290
      %v845 = vunpack.c.l.b16 %v291
      %v846 = vunpack.c.h.b16 %v291
      %v847 = vunpack.c.l.b16 %v292
      %v848 = vunpack.c.h.b16 %v292
      %v849 = vunpack.c.l.b16 %v293
      %v850 = vunpack.c.l.b16 %v294
      %v851 = vunpack.c.h.b16 %v294
      %v852 = vunpack.c.l.b16 %v295
      %v853 = vunpack.c.h.b16 %v295
      %v854 = vunpack.c.l.b16 %v296
      %v855 = vunpack.c.h.b16 %v296
      %v856 = vunpack.c.l.b16 %v297
      %v857 = vunpack.c.h.b16 %v297
      %v858 = vunpack.c.l.b16 %v298
      %v859 = vunpack.c.l.b16 %v299
      %v860 = vunpack.c.h.b16 %v299
      %v861 = vunpack.c.l.b16 %v300
      %v862 = vunpack.c.h.b16 %v300
      %v863 = vunpack.c.l.b16 %v301
      %v864 = vunpack.c.h.b16 %v301
      %v865 = vunpack.c.l.b16 %v302
      %v866 = vunpack.c.h.b16 %v302
      %v867 = vunpack.c.l.b16 %v303
      %v868 = vunpack.c.l.b16 %v304
      %v869 = vunpack.c.h.b16 %v304
      %v870 = vunpack.c.l.b16 %v305
      %v871 = vunpack.c.h.b16 %v305
      %v872 = vunpack.c.l.b16 %v306
      %v873 = vunpack.c.h.b16 %v306
      %v874 = vunpack.c.l.b16 %v307
      %v875 = vunpack.c.h.b16 %v307
      %v876 = vunpack.c.l.b16 %v308
      %v877 = vunpack.c.l.b16 %v309
      %v878 = vunpack.c.h.b16 %v309
      %v879 = vunpack.c.l.b16 %v310
      %v880 = vunpack.c.h.b16 %v310
      %v881 = vunpack.c.l.b16 %v311
      %v882 = vunpack.c.h.b16 %v311
      %v883 = vunpack.c.l.b16 %v312
      %v884 = vunpack.c.h.b16 %v312
      %v885 = vunpack.c.l.b16 %v313
      %v886 = vunpack.c.l.b16 %v314
      %v887 = vunpack.c.h.b16 %v314
      %v888 = vunpack.c.l.b16 %v315
      %v889 = vunpack.c.h.b16 %v315
      %v890 = vunpack.c.l.b16 %v316
      %v891 = vunpack.c.h.b16 %v316
      %v892 = vunpack.c.l.b16 %v317
      %v893 = vunpack.c.h.b16 %v317
      %v894 = vunpack.c.l.b16 %v318
      %v895 = vunpack.c.l.b16 %v319
      %v896 = vunpack.c.h.b16 %v319
      %v897 = vunpack.c.l.b16 %v320
      %v898 = vunpack.c.h.b16 %v320
      %v899 = vunpack.c.l.b16 %v321
      %v900 = vunpack.c.h.b16 %v321
      %v901 = vunpack.c.l.b16 %v322
      %v902 = vunpack.c.h.b16 %v322
      %v903 = vunpack.c.l.b16 %v323
      %v904 = vunpack.c.l.b16 %v324
      %v905 = vunpack.c.h.b16 %v324
      %v906 = vunpack.c.l.b16 %v325
      %v907 = vunpack.c.h.b16 %v325
      %v908 = vunpack.c.l.b16 %v326
      %v909 = vunpack.c.h.b16 %v326
      %v910 = vunpack.c.l.b16 %v327
      %v911 = vunpack.c.h.b16 %v327
      %v912 = vunpack.c.l.b16 %v328
      %v913 = vunpack.c.l.b16 %v329
      %v914 = vunpack.c.h.b16 %v329
      %v915 = vunpack.c.l.b16 %v330
      %v916 = vunpack.c.h.b16 %v330
      %v917 = vunpack.c.l.b16 %v331
      %v918 = vunpack.c.h.b16 %v331
      %v919 = vunpack.c.l.b16 %v332
      %v920 = vunpack.c.h.b16 %v332
      %v921 = vunpack.c.l.b16 %v333
      %v922 = vunpack.c.l.b16 %v334
      %v923 = vunpack.c.h.b16 %v334
      %v924 = vunpack.c.l.b16 %v335
      %v925 = vunpack.c.h.b16 %v335
      %v926 = vunpack.c.l.b16 %v336
      %v927 = vunpack.c.h.b16 %v336
      %v928 = vunpack.c.l.b16 %v337
      %v929 = vunpack.c.h.b16 %v337
      %v930 = vunpack.c.l.b16 %v338
      %v931 = vpack.c.b16 %v652, %v643
      %v932 = vpack.c.b16 %v653, %v644
      %v933 = vpack.c.b16 %v654, %v645
      %v934 = vpack.c.b16 %v655, %v646
      %v935 = vpack.c.b16 %v656, %v647
      %v936 = vpack.c.b16 %v657, %v648
      %v937 = vpack.c.b16 %v658, %v649
      %v938 = vpack.c.b16 %v659, %v650
      %v939 = vpack.c.b16 %v660, %v651
      %v940 = vpack.c.b16 %v670, %v661
      %v941 = vpack.c.b16 %v671, %v662
      %v942 = vpack.c.b16 %v672, %v663
      %v943 = vpack.c.b16 %v673, %v664
      %v944 = vpack.c.b16 %v674, %v665
      %v945 = vpack.c.b16 %v675, %v666
      %v946 = vpack.c.b16 %v676, %v667
      %v947 = vpack.c.b16 %v677, %v668
      %v948 = vpack.c.b16 %v678, %v669
      %v949 = vpack.c.b16 %v688, %v679
      %v950 = vpack.c.b16 %v689, %v680
      %v951 = vpack.c.b16 %v690, %v681
      %v952 = vpack.c.b16 %v691, %v682
      %v953 = vpack.c.b16 %v692, %v683
      %v954 = vpack.c.b16 %v693, %v684
      %v955 = vpack.c.b16 %v694, %v685
      %v956 = vpack.c.b16 %v695, %v686
      %v957 = vpack.c.b16 %v696, %v687
      %v958 = vpack.c.b16 %v706, %v697
      %v959 = vpack.c.b16 %v707, %v698
      %v960 = vpack.c.b16 %v708, %v699
      %v961 = vpack.c.b16 %v709, %v700
      %v962 = vpack.c.b16 %v710, %v701
      %v963 = vpack.c.b16 %v711, %v702
      %v964 = vpack.c.b16 %v712, %v703
      %v965 = vpack.c.b16 %v713, %v704
      %v966 = vpack.c.b16 %v714, %v705
      %v967 = vpack.c.b16 %v724, %v715
      %v968 = vpack.c.b16 %v725, %v716
      %v969 = vpack.c.b16 %v726, %v717
      %v970 = vpack.c.b16 %v727, %v718
      %v971 = vpack.c.b16 %v728, %v719
      %v972 = vpack.c.b16 %v729, %v720
      %v973 = vpack.c.b16 %v730, %v721
      %v974 = vpack.c.b16 %v731, %v722
      %v975 = vpack.c.b16 %v732, %v723
      %v976 = vpack.c.b16 %v742, %v733
      %v977 = vpack.c.b16 %v743, %v734
      %v978 = vpack.c.b16 %v744, %v735
      %v979 = vpack.c.b16 %v745, %v736
      %v980 = vpack.c.b16 %v746, %v737
      %v981 = vpack.c.b16 %v747, %v738
      %v982 = vpack.c.b16 %v748, %v739
      %v983 = vpack.c.b16 %v749, %v740
      %v984 = vpack.c.b16 %v750, %v741
      %v985 = vpack.c.b16 %v760, %v751
      %v986 = vpack.c.b16 %v761, %v752
      %v987 = vpack.c.b16 %v762, %v753
      %v988 = vpack.c.b16 %v763, %v754
      %v989 = vpack.c.b16 %v764, %v755
      %v990 = vpack.c.b16 %v765, %v756
      %v991 = vpack.c.b16 %v766, %v757
      %v992 = vpack.c.b16 %v767, %v758
      %v993 = vpack.c.b16 %v768, %v759
      %v994 = vpack.c.b16 %v778, %v769
      %v995 = vpack.c.b16 %v779, %v770
      %v996 = vpack.c.b16 %v780, %v771
      %v997 = vpack.c.b16 %v781, %v772
      %v998 = vpack.c.b16 %v782, %v773
      %v999 = vpack.c.b16 %v783, %v774
      %v1000 = vpack.c.b16 %v784, %v775
      %v1001 = vpack.c.b16 %v785, %v776
      %v1002 = vpack.c.b16 %v786, %v777
      %v1003 = vpack.c.b16 %v796, %v787
      %v1004 = vpack.c.b16 %v797, %v788
      %v1005 = vpack.c.b16 %v798, %v789
      %v1006 = vpack.c.b16 %v799, %v790
      %v1007 = vpack.c.b16 %v800, %v791
      %v1008 = vpack.c.b16 %v801, %v792
      %v1009 = vpack.c.b16 %v802, %v793
      %v1010 = vpack.c.b16 %v803, %v794
      %v1011 = vpack.c.b16 %v804, %v795
      %v1012 = vpack.c.b16 %v814, %v805
      %v1013 = vpack.c.b16 %v815, %v806
      %v1014 = vpack.c.b16 %v816, %v807
      %v1015 = vpack.c.b16 %v817, %v808
      %v1016 = vpack.c.b16 %v818, %v809
      %v1017 = vpack.c.b16 %v819, %v810
      %v1018 = vpack.c.b16 %v820, %v811
      %v1019 = vpack.c.b16 %v821, %v812
      %v1020 = vpack.c.b16 %v822, %v813
      %v1021 = vpack.c.b16 %v832, %v823
      %v1022 = vpack.c.b16 %v833, %v824
      %v1023 = vpack.c.b16 %v834, %v825
      %v1024 = vpack.c.b16 %v835, %v826
      %v1025 = vpack.c.b16 %v836, %v827
      %v1026 = vpack.c.b16 %v837, %v828
      %v1027 = vpack.c.b16 %v838, %v829
      %v1028 = vpack.c.b16 %v839, %v830
      %v1029 = vpack.c.b16 %v840, %v831
      %v1030 = vpack.c.b16 %v850, %v841
      %v1031 = vpack.c.b16 %v851, %v842
      %v1032 = vpack.c.b16 %v852, %v843
      %v1033 = vpack.c.b16 %v853, %v844
      %v1034 = vpack.c.b16 %v854, %v845
      %v1035 = vpack.c.b16 %v855, %v846
      %v1036 = vpack.c.b16 %v856, %v847
      %v1037 = vpack.c.b16 %v857, %v848
      %v1038 = vpack.c.b16 %v858, %v849
      %v1039 = vpack.c.b16 %v868, %v859
      %v1040 = vpack.c.b16 %v869, %v860
      %v1041 = vpack.c.b16 %v870, %v861
      %v1042 = vpack.c.b16 %v871, %v862
      %v1043 = vpack.c.b16 %v872, %v863
      %v1044 = vpack.c.b16 %v873, %v864
      %v1045 = vpack.c.b16 %v874, %v865
      %v1046 = vpack.c.b16 %v875, %v866
      %v1047 = vpack.c.b16 %v876, %v867
      %v1048 = vpack.c.b16 %v886, %v877
      %v1049 = vpack.c.b16 %v887, %v878
      %v1050 = vpack.c.b16 %v888, %v879
      %v1051 = vpack.c.b16 %v889, %v880
      %v1052 = vpack.c.b16 %v890, %v881
      %v1053 = vpack.c.b16 %v891, %v882
      %v1054 = vpack.c.b16 %v892, %v883
      %v1055 = vpack.c.b16 %v893, %v884
      %v1056 = vpack.c.b16 %v894, %v885
      %v1057 = vpack.c.b16 %v904, %v895
      %v1058 = vpack.c.b16 %v905, %v896
      %v1059 = vpack.c.b16 %v906, %v897
      %v1060 = vpack.c.b16 %v907, %v898
      %v1061 = vpack.c.b16 %v908, %v899
      %v1062 = vpack.c.b16 %v909, %v900
      %v1063 = vpack.c.b16 %v910, %v901
      %v1064 = vpack.c.b16 %v911, %v902
      %v1065 = vpack.c.b16 %v912, %v903
      %v1066 = vpack.c.b16 %v922, %v913
      %v1067 = vpack.c.b16 %v923, %v914
      %v1068 = vpack.c.b16 %v924, %v915
      %v1069 = vpack.c.b16 %v925, %v916
      %v1070 = vpack.c.b16 %v926, %v917
      %v1071 = vpack.c.b16 %v927, %v918
      %v1072 = vpack.c.b16 %v928, %v919
      %v1073 = vpack.c.b16 %v929, %v920
      %v1074 = vpack.c.b16 %v930, %v921
      %v1363 = vunpack.c.l.b16 %v339
      %v1364 = vunpack.c.l.b16 %v340
      %v1365 = vunpack.c.l.b16 %v341
      %v1366 = vunpack.c.l.b16 %v342
      %v1367 = vunpack.c.l.b16 %v343
      %v1368 = vunpack.c.l.b16 %v344
      %v1369 = vunpack.c.l.b16 %v345
      %v1370 = vunpack.c.l.b16 %v346
      %v1371 = vunpack.c.l.b16 %v347
      %v1372 = vunpack.c.l.b16 %v348
      %v1373 = vunpack.c.l.b16 %v349
      %v1374 = vunpack.c.l.b16 %v350
      %v1375 = vunpack.c.l.b16 %v351
      %v1376 = vunpack.c.l.b16 %v352
      %v1377 = vunpack.c.l.b16 %v353
      %v1378 = vunpack.c.l.b16 %v354
      %v1379 = vunpack.c.l.b16 %v355
      %v1380 = vunpack.c.l.b16 %v356
      %v1381 = vunpack.c.l.b16 %v357
      %v1382 = vunpack.c.l.b16 %v358
      %v1383 = vunpack.c.l.b16 %v359
      %v1384 = vunpack.c.l.b16 %v360
      %v1385 = vunpack.c.l.b16 %v361
      %v1386 = vunpack.c.l.b16 %v362
      %v1387 = vunpack.c.l.b16 %v363
      %v1388 = vunpack.c.l.b16 %v364
      %v1389 = vunpack.c.l.b16 %v365
      %v1390 = vunpack.c.l.b16 %v366
      %v1391 = vunpack.c.l.b16 %v367
      %v1392 = vunpack.c.l.b16 %v368
      %v1393 = vunpack.c.l.b16 %v369
      %v1394 = vunpack.c.l.b16 %v370
      %v1395 = vunpack.c.l.b16 %v371
      %v1396 = vunpack.c.l.b16 %v372
      %v1397 = vunpack.c.l.b16 %v373
      %v1398 = vunpack.c.l.b16 %v374
      %v1399 = vunpack.c.l.b16 %v375
      %v1400 = vunpack.c.l.b16 %v376
      %v1401 = vunpack.c.l.b16 %v377
      %v1402 = vunpack.c.l.b16 %v378
      %v1403 = vunpack.c.l.b16 %v379
      %v1404 = vunpack.c.l.b16 %v380
      %v1405 = vunpack.c.l.b16 %v381
      %v1406 = vunpack.c.l.b16 %v382
      %v1407 = vunpack.c.l.b16 %v383
      %v1408 = vunpack.c.l.b16 %v384
      %v1409 = vunpack.c.l.b16 %v385
      %v1410 = vunpack.c.l.b16 %v386
      %v1411 = vunpack.c.l.b16 %v387
      %v1412 = vunpack.c.l.b16 %v388
      %v1413 = vunpack.c.l.b16 %v389
      %v1414 = vunpack.c.l.b16 %v390
      %v1415 = vunpack.c.l.b16 %v391
      %v1416 = vunpack.c.l.b16 %v392
      %v1417 = vunpack.c.l.b16 %v393
      %v1418 = vunpack.c.l.b16 %v394
      %v1419 = vunpack.c.l.b16 %v395
      %v1420 = vunpack.c.l.b16 %v396
      %v1421 = vunpack.c.l.b16 %v397
      %v1422 = vunpack.c.l.b16 %v398
      %v1423 = vunpack.c.l.b16 %v399
      %v1424 = vunpack.c.l.b16 %v400
      %v1425 = vunpack.c.l.b16 %v401
      %v1426 = vunpack.c.l.b16 %v402
      %v1427 = vunpack.c.l.b16 %v403
      %v1428 = vunpack.c.l.b16 %v404
      %v1429 = vunpack.c.l.b16 %v405
      %v1430 = vunpack.c.l.b16 %v406
      %v1431 = vunpack.c.l.b16 %v407
      %v1432 = vunpack.c.l.b16 %v408
      %v1433 = vunpack.c.l.b16 %v409
      %v1434 = vunpack.c.l.b16 %v410
      %v1435 = vunpack.c.l.b16 %v411
      %v1436 = vunpack.c.l.b16 %v412
      %v1437 = vunpack.c.l.b16 %v413
      %v1438 = vunpack.c.l.b16 %v414
      %v1439 = vunpack.c.l.b16 %v415
      %v1440 = vunpack.c.l.b16 %v416
      %v1441 = vunpack.c.l.b16 %v417
      %v1442 = vunpack.c.l.b16 %v418
      %v1443 = vunpack.c.l.b16 %v419
      %v1444 = vunpack.c.l.b16 %v420
      %v1445 = vunpack.c.l.b16 %v421
      %v1446 = vunpack.c.l.b16 %v422
      %v1447 = vunpack.c.l.b16 %v423
      %v1448 = vunpack.c.l.b16 %v424
      %v1449 = vunpack.c.l.b16 %v425
      %v1450 = vunpack.c.l.b16 %v426
      %v1451 = vunpack.c.l.b16 %v427
      %v1452 = vunpack.c.l.b16 %v428
      %v1453 = vunpack.c.l.b16 %v429
      %v1454 = vunpack.c.l.b16 %v430
      %v1455 = vunpack.c.l.b16 %v431
      %v1456 = vunpack.c.l.b16 %v432
      %v1457 = vunpack.c.l.b16 %v433
      %v1458 = vunpack.c.l.b16 %v434
      %v1459 = vunpack.c.l.b16 %v435
      %v1460 = vunpack.c.l.b16 %v436
      %v1461 = vunpack.c.l.b16 %v437
      %v1462 = vunpack.c.l.b16 %v438
      %v1463 = vunpack.c.l.b16 %v439
      %v1464 = vunpack.c.l.b16 %v440
      %v1465 = vunpack.c.l.b16 %v441
      %v1466 = vunpack.c.l.b16 %v442
      %v1467 = vunpack.c.l.b16 %v443
      %v1468 = vunpack.c.l.b16 %v444
      %v1469 = vunpack.c.l.b16 %v445
      %v1470 = vunpack.c.l.b16 %v446
      %v1471 = vunpack.c.l.b16 %v447
      %v1472 = vunpack.c.l.b16 %v448
      %v1473 = vunpack.c.l.b16 %v449
      %v1474 = vunpack.c.l.b16 %v450
      %v1475 = vunpack.c.l.b16 %v451
      %v1476 = vunpack.c.l.b16 %v452
      %v1477 = vunpack.c.l.b16 %v453
      %v1478 = vunpack.c.l.b16 %v454
      %v1479 = vunpack.c.l.b16 %v455
      %v1480 = vunpack.c.l.b16 %v456
      %v1481 = vunpack.c.l.b16 %v457
      %v1482 = vunpack.c.l.b16 %v458
      %v1483 = vunpack.c.l.b16 %v459
      %v1484 = vunpack.c.l.b16 %v460
      %v1485 = vunpack.c.l.b16 %v461
      %v1486 = vunpack.c.l.b16 %v462
      %v1487 = vunpack.c.l.b16 %v463
      %v1488 = vunpack.c.l.b16 %v464
      %v1489 = vunpack.c.l.b16 %v465
      %v1490 = vunpack.c.l.b16 %v466
      %v1491 = vunpack.c.l.b16 %v467
      %v1492 = vunpack.c.l.b16 %v468
      %v1493 = vunpack.c.l.b16 %v469
      %v1494 = vunpack.c.l.b16 %v470
      %v1495 = vunpack.c.l.b16 %v471
      %v1496 = vunpack.c.l.b16 %v472
      %v1497 = vunpack.c.l.b16 %v473
      %v1498 = vunpack.c.l.b16 %v474
      %v1499 = vunpack.c.l.b16 %v475
      %v1500 = vunpack.c.l.b16 %v476
      %v1501 = vunpack.c.l.b16 %v477
      %v1502 = vunpack.c.l.b16 %v478
      %v1503 = vunpack.c.l.b16 %v479
      %v1504 = vunpack.c.l.b16 %v480
      %v1505 = vunpack.c.l.b16 %v481
      %v1506 = vunpack.c.l.b16 %v482
      %v1507 = vpack.c.b16 %v1364, %v1363
      %v1508 = vpack.c.b16 %v1366, %v1365
      %v1509 = vpack.c.b16 %v1368, %v1367
      %v1510 = vpack.c.b16 %v1370, %v1369
      %v1511 = vpack.c.b16 %v1372, %v1371
      %v1512 = vpack.c.b16 %v1374, %v1373
      %v1513 = vpack.c.b16 %v1376, %v1375
      %v1514 = vpack.c.b16 %v1378, %v1377
      %v1515 = vpack.c.b16 %v1380, %v1379
      %v1516 = vpack.c.b16 %v1382, %v1381
      %v1517 = vpack.c.b16 %v1384, %v1383
      %v1518 = vpack.c.b16 %v1386, %v1385
      %v1519 = vpack.c.b16 %v1388, %v1387
      %v1520 = vpack.c.b16 %v1390, %v1389
      %v1521 = vpack.c.b16 %v1392, %v1391
      %v1522 = vpack.c.b16 %v1394, %v1393
      %v1523 = vpack.c.b16 %v1396, %v1395
      %v1524 = vpack.c.b16 %v1398, %v1397
      %v1525 = vpack.c.b16 %v1400, %v1399
      %v1526 = vpack.c.b16 %v1402, %v1401
      %v1527 = vpack.c.b16 %v1404, %v1403
      %v1528 = vpack.c.b16 %v1406, %v1405
      %v1529 = vpack.c.b16 %v1408, %v1407
      %v1530 = vpack.c.b16 %v1410, %v1409
      %v1531 = vpack.c.b16 %v1412, %v1411
      %v1532 = vpack.c.b16 %v1414, %v1413
      %v1533 = vpack.c.b16 %v1416, %v1415
      %v1534 = vpack.c.b16 %v1418, %v1417
      %v1535 = vpack.c.b16 %v1420, %v1419
      %v1536 = vpack.c.b16 %v1422, %v1421
      %v1537 = vpack.c.b16 %v1424, %v1423
      %v1538 = vpack.c.b16 %v1426, %v1425
      %v1539 = vpack.c.b16 %v1428, %v1427
      %v1540 = vpack.c.b16 %v1430, %v1429
      %v1541 = vpack.c.b16 %v1432, %v1431
      %v1542 = vpack.c.b16 %v1434, %v1433
      %v1543 = vpack.c.b16 %v1436, %v1435
      %v1544 = vpack.c.b16 %v1438, %v1437
      %v1545 = vpack.c.b16 %v1440, %v1439
      %v1546 = vpack.c.b16 %v1442, %v1441
      %v1547 = vpack.c.b16 %v1444, %v1443
      %v1548 = vpack.c.b16 %v1446, %v1445
      %v1549 = vpack.c.b16 %v1448, %v1447
      %v1550 = vpack.c.b16 %v1450, %v1449
      %v1551 = vpack.c.b16 %v1452, %v1451
      %v1552 = vpack.c.b16 %v1454, %v1453
      %v1553 = vpack.c.b16 %v1456, %v1455
      %v1554 = vpack.c.b16 %v1458, %v1457
      %v1555 = vpack.c.b16 %v1460, %v1459
      %v1556 = vpack.c.b16 %v1462, %v1461
      %v1557 = vpack.c.b16 %v1464, %v1463
      %v1558 = vpack.c.b16 %v1466, %v1465
      %v1559 = vpack.c.b16 %v1468, %v1467
      %v1560 = vpack.c.b16 %v1470, %v1469
      %v1561 = vpack.c.b16 %v1472, %v1471
      %v1562 = vpack.c.b16 %v1474, %v1473
      %v1563 = vpack.c.b16 %v1476, %v1475
      %v1564 = vpack.c.b16 %v1478, %v1477
      %v1565 = vpack.c.b16 %v1480, %v1479
      %v1566 = vpack.c.b16 %v1482, %v1481
      %v1567 = vpack.c.b16 %v1484, %v1483
      %v1568 = vpack.c.b16 %v1486, %v1485
      %v1569 = vpack.c.b16 %v1488, %v1487
      %v1570 = vpack.c.b16 %v1490, %v1489
      %v1571 = vpack.c.b16 %v1492, %v1491
      %v1572 = vpack.c.b16 %v1494, %v1493
      %v1573 = vpack.c.b16 %v1496, %v1495
      %v1574 = vpack.c.b16 %v1498, %v1497
      %v1575 = vpack.c.b16 %v1500, %v1499
      %v1576 = vpack.c.b16 %v1502, %v1501
      %v1577 = vpack.c.b16 %v1504, %v1503
      %v1578 = vpack.c.b16 %v1506, %v1505
      %1651 = vmatprep.subr.bf16.mxu0 0
      %1652 = vmatpush1.bf16.msra.mxu0 %v1507
      %1653 = vmatprep.subr.bf16.mxu0 0
      %1654 = vmatpush1.bf16.msra.mxu0 %v1508
      %1655 = vmatprep.subr.bf16.mxu0 0
      %1656 = vmatpush1.bf16.msra.mxu0 %v1509
      %1657 = vmatprep.subr.bf16.mxu0 0
      %1658 = vmatpush1.bf16.msra.mxu0 %v1510
      %1659 = vmatprep.subr.bf16.mxu0 0
      %1660 = vmatpush1.bf16.msra.mxu0 %v1511
      %1661 = vmatprep.subr.bf16.mxu0 0
      %1662 = vmatpush1.bf16.msra.mxu0 %v1512
      %1663 = vmatprep.subr.bf16.mxu0 0
      %1664 = vmatpush1.bf16.msra.mxu0 %v1513
      %1665 = vmatprep.subr.bf16.mxu0 0
      %1666 = vmatpush1.bf16.msra.mxu0 %v1514
      %1667 = vmatprep.subr.bf16.mxu0 0
      %1668 = vmatpush1.bf16.msra.mxu0 %v1515
      %1669 = vmatprep.subr.bf16.mxu0 0
      %1670 = vmatpush1.bf16.msra.mxu0 %v1516
      %1671 = vmatprep.subr.bf16.mxu0 0
      %1672 = vmatpush1.bf16.msra.mxu0 %v1517
      %1673 = vmatprep.subr.bf16.mxu0 0
      %1674 = vmatpush1.bf16.msra.mxu0 %v1518
      %1675 = vmatprep.subr.bf16.mxu0 0
      %1676 = vmatpush1.bf16.msra.mxu0 %v1519
      %1677 = vmatprep.subr.bf16.mxu0 0
      %1678 = vmatpush1.bf16.msra.mxu0 %v1520
      %1679 = vmatprep.subr.bf16.mxu0 0
      %1680 = vmatpush1.bf16.msra.mxu0 %v1521
      %1681 = vmatprep.subr.bf16.mxu0 0
      %1682 = vmatpush1.bf16.msra.mxu0 %v1522
      %1683 = vmatprep.mubr.bf16.mxu0 %v932
      %1684 = vmatmul.mubr.bf16.gmra.mrb[0].mxu0 %v931
      %v1685 = vpop.f32.mrb[0].mxu0
      %v1686 = vadd.f32 0.0, %v1685
      %v1687 = vpop.f32.mrb[0].mxu0
      %v1688 = vpop.f32.mrb[0].mxu0
      %v1689 = vadd.f32 0.0, %v1688
      %v1690 = vpop.f32.mrb[0].mxu0
      %1691 = vmatprep.mubr.bf16.mxu0 %v941
      %1692 = vmatmul.mubr.bf16.gmra.mrb[0].mxu0 %v940
      %v1693 = vpop.f32.mrb[0].mxu0
      %v1694 = vadd.f32 0.0, %v1693
      %v1695 = vpop.f32.mrb[0].mxu0
      %v1696 = vpop.f32.mrb[0].mxu0
      %v1697 = vadd.f32 0.0, %v1696
      %v1698 = vpop.f32.mrb[0].mxu0
      %1699 = vmatprep.mubr.bf16.mxu0 %v950
      %1700 = vmatmul.mubr.bf16.gmra.mrb[0].mxu0 %v949
      %v1701 = vpop.f32.mrb[0].mxu0
      %v1702 = vadd.f32 0.0, %v1701
      %v1703 = vpop.f32.mrb[0].mxu0
      %v1704 = vpop.f32.mrb[0].mxu0
      %v1705 = vadd.f32 0.0, %v1704
      %v1706 = vpop.f32.mrb[0].mxu0
      %1707 = vmatprep.mubr.bf16.mxu0 %v959
      %1708 = vmatmul.mubr.bf16.gmra.mrb[0].mxu0 %v958
      %v1709 = vpop.f32.mrb[0].mxu0
      %v1710 = vadd.f32 0.0, %v1709
      %v1711 = vpop.f32.mrb[0].mxu0
      %v1712 = vpop.f32.mrb[0].mxu0
      %v1713 = vadd.f32 0.0, %v1712
      %v1714 = vpop.f32.mrb[0].mxu0
      %1715 = vmatprep.mubr.bf16.mxu0 %v968
      %1716 = vmatmul.mubr.bf16.gmra.mrb[0].mxu0 %v967
      %v1717 = vpop.f32.mrb[0].mxu0
      %v1718 = vadd.f32 0.0, %v1717
      %v1719 = vpop.f32.mrb[0].mxu0
      %v1720 = vpop.f32.mrb[0].mxu0
      %v1721 = vadd.f32 0.0, %v1720
      %v1722 = vpop.f32.mrb[0].mxu0
      %1723 = vmatprep.mubr.bf16.mxu0 %v977
      %1724 = vmatmul.mubr.bf16.gmra.mrb[0].mxu0 %v976
      %v1725 = vpop.f32.mrb[0].mxu0
      %v1726 = vadd.f32 0.0, %v1725
      %v1727 = vpop.f32.mrb[0].mxu0
      %v1728 = vpop.f32.mrb[0].mxu0
      %v1729 = vadd.f32 0.0, %v1728
      %v1730 = vpop.f32.mrb[0].mxu0
      %1731 = vmatprep.mubr.bf16.mxu0 %v986
      %1732 = vmatmul.mubr.bf16.gmra.mrb[0].mxu0 %v985
      %v1733 = vpop.f32.mrb[0].mxu0
      %v1734 = vadd.f32 0.0, %v1733
      %v1735 = vpop.f32.mrb[0].mxu0
      %v1736 = vpop.f32.mrb[0].mxu0
      %v1737 = vadd.f32 0.0, %v1736
      %v1738 = vpop.f32.mrb[0].mxu0
      %1739 = vmatprep.mubr.bf16.mxu0 %v995
      %1740 = vmatmul.mubr.bf16.gmra.mrb[0].mxu0 %v994
      %v1741 = vpop.f32.mrb[0].mxu0
      %v1742 = vadd.f32 0.0, %v1741
      %v1743 = vpop.f32.mrb[0].mxu0
      %v1744 = vpop.f32.mrb[0].mxu0
      %v1745 = vadd.f32 0.0, %v1744
      %v1746 = vpop.f32.mrb[0].mxu0
      %1747 = vmatprep.mubr.bf16.mxu0 %v1004
      %1748 = vmatmul.mubr.bf16.gmra.mrb[0].mxu0 %v1003
      %v1749 = vpop.f32.mrb[0].mxu0
      %v1750 = vadd.f32 0.0, %v1749
      %v1751 = vpop.f32.mrb[0].mxu0
      %v1752 = vpop.f32.mrb[0].mxu0
      %v1753 = vadd.f32 0.0, %v1752
      %v1754 = vpop.f32.mrb[0].mxu0
      %1755 = vmatprep.mubr.bf16.mxu0 %v1013
      %1756 = vmatmul.mubr.bf16.gmra.mrb[0].mxu0 %v1012
      %v1757 = vpop.f32.mrb[0].mxu0
      %v1758 = vadd.f32 0.0, %v1757
      %v1759 = vpop.f32.mrb[0].mxu0
      %v1760 = vpop.f32.mrb[0].mxu0
      %v1761 = vadd.f32 0.0, %v1760
      %v1762 = vpop.f32.mrb[0].mxu0
      %1763 = vmatprep.mubr.bf16.mxu0 %v1022
      %1764 = vmatmul.mubr.bf16.gmra.mrb[0].mxu0 %v1021
      %v1765 = vpop.f32.mrb[0].mxu0
      %v1766 = vadd.f32 0.0, %v1765
      %v1767 = vpop.f32.mrb[0].mxu0
      %v1768 = vpop.f32.mrb[0].mxu0
      %v1769 = vadd.f32 0.0, %v1768
      %v1770 = vpop.f32.mrb[0].mxu0
      %1771 = vmatprep.mubr.bf16.mxu0 %v1031
      %1772 = vmatmul.mubr.bf16.gmra.mrb[0].mxu0 %v1030
      %v1773 = vpop.f32.mrb[0].mxu0
      %v1774 = vadd.f32 0.0, %v1773
      %v1775 = vpop.f32.mrb[0].mxu0
      %v1776 = vpop.f32.mrb[0].mxu0
      %v1777 = vadd.f32 0.0, %v1776
      %v1778 = vpop.f32.mrb[0].mxu0
      %1779 = vmatprep.mubr.bf16.mxu0 %v1040
      %1780 = vmatmul.mubr.bf16.gmra.mrb[0].mxu0 %v1039
      %v1781 = vpop.f32.mrb[0].mxu0
      %v1782 = vadd.f32 0.0, %v1781
      %v1783 = vpop.f32.mrb[0].mxu0
      %v1784 = vpop.f32.mrb[0].mxu0
      %v1785 = vadd.f32 0.0, %v1784
      %v1786 = vpop.f32.mrb[0].mxu0
      %1787 = vmatprep.mubr.bf16.mxu0 %v1049
      %1788 = vmatmul.mubr.bf16.gmra.mrb[0].mxu0 %v1048
      %v1789 = vpop.f32.mrb[0].mxu0
      %v1790 = vadd.f32 0.0, %v1789
      %v1791 = vpop.f32.mrb[0].mxu0
      %v1792 = vpop.f32.mrb[0].mxu0
      %v1793 = vadd.f32 0.0, %v1792
      %v1794 = vpop.f32.mrb[0].mxu0
      %1795 = vmatprep.mubr.bf16.mxu0 %v1058
      %1796 = vmatmul.mubr.bf16.gmra.mrb[0].mxu0 %v1057
      %v1797 = vpop.f32.mrb[0].mxu0
      %v1798 = vadd.f32 0.0, %v1797
      %v1799 = vpop.f32.mrb[0].mxu0
      %v1800 = vpop.f32.mrb[0].mxu0
      %v1801 = vadd.f32 0.0, %v1800
      %v1802 = vpop.f32.mrb[0].mxu0
      %1803 = vmatprep.mubr.bf16.mxu0 %v1067
      %1804 = vmatmul.mubr.bf16.gmra.mrb[0].mxu0 %v1066
      %v1805 = vpop.f32.mrb[0].mxu0
      %v1806 = vadd.f32 0.0, %v1805
      %v1807 = vpop.f32.mrb[0].mxu0
      %v1808 = vpop.f32.mrb[0].mxu0
      %v1809 = vadd.f32 0.0, %v1808
      %v1810 = vpop.f32.mrb[0].mxu0
      %1811 = vdwg.mxu0
      %1812 = vmatprep.subr.bf16.mxu0 0
      %1813 = vmatpush1.bf16.msra.mxu0 %v1523
      %1814 = vmatprep.subr.bf16.mxu0 0
      %1815 = vmatpush1.bf16.msra.mxu0 %v1524
      %1816 = vmatprep.subr.bf16.mxu0 0
      %1817 = vmatpush1.bf16.msra.mxu0 %v1525
      %1818 = vmatprep.subr.bf16.mxu0 0
      %1819 = vmatpush1.bf16.msra.mxu0 %v1526
      %1820 = vmatprep.subr.bf16.mxu0 0
      %1821 = vmatpush1.bf16.msra.mxu0 %v1527
      %1822 = vmatprep.subr.bf16.mxu0 0
      %1823 = vmatpush1.bf16.msra.mxu0 %v1528
      %1824 = vmatprep.subr.bf16.mxu0 0
      %1825 = vmatpush1.bf16.msra.mxu0 %v1529
      %1826 = vmatprep.subr.bf16.mxu0 0
      %1827 = vmatpush1.bf16.msra.mxu0 %v1530
      %1828 = vmatprep.subr.bf16.mxu0 0
      %1829 = vmatpush1.bf16.msra.mxu0 %v1531
      %1830 = vmatprep.subr.bf16.mxu0 0
      %1831 = vmatpush1.bf16.msra.mxu0 %v1532
      %1832 = vmatprep.subr.bf16.mxu0 0
      %1833 = vmatpush1.bf16.msra.mxu0 %v1533
      %1834 = vmatprep.subr.bf16.mxu0 0
      %1835 = vmatpush1.bf16.msra.mxu0 %v1534
      %1836 = vmatprep.subr.bf16.mxu0 0
      %1837 = vmatpush1.bf16.msra.mxu0 %v1535
      %1838 = vmatprep.subr.bf16.mxu0 0
      %1839 = vmatpush1.bf16.msra.mxu0 %v1536
      %1840 = vmatprep.subr.bf16.mxu0 0
      %1841 = vmatpush1.bf16.msra.mxu0 %v1537
      %1842 = vmatprep.subr.bf16.mxu0 0
      %1843 = vmatpush1.bf16.msra.mxu0 %v1538
      %1844 = vmatprep.mubr.bf16.mxu0 %v934
      %1845 = vmatmul.mubr.bf16.gmra.mrb[0].mxu0 %v933
      %v1846 = vpop.f32.mrb[0].mxu0
      %v1847 = vadd.f32 %v1686, %v1846
      %v1848 = vpop.f32.mrb[0].mxu0
      %v1849 = vpop.f32.mrb[0].mxu0
      %v1850 = vadd.f32 %v1689, %v1849
      %v1851 = vpop.f32.mrb[0].mxu0
      %1852 = vmatprep.mubr.bf16.mxu0 %v943
      %1853 = vmatmul.mubr.bf16.gmra.mrb[0].mxu0 %v942
      %v1854 = vpop.f32.mrb[0].mxu0
      %v1855 = vadd.f32 %v1694, %v1854
      %v1856 = vpop.f32.mrb[0].mxu0
      %v1857 = vpop.f32.mrb[0].mxu0
      %v1858 = vadd.f32 %v1697, %v1857
      %v1859 = vpop.f32.mrb[0].mxu0
      %1860 = vmatprep.mubr.bf16.mxu0 %v952
      %1861 = vmatmul.mubr.bf16.gmra.mrb[0].mxu0 %v951
      %v1862 = vpop.f32.mrb[0].mxu0
      %v1863 = vadd.f32 %v1702, %v1862
      %v1864 = vpop.f32.mrb[0].mxu0
      %v1865 = vpop.f32.mrb[0].mxu0
      %v1866 = vadd.f32 %v1705, %v1865
      %v1867 = vpop.f32.mrb[0].mxu0
      %1868 = vmatprep.mubr.bf16.mxu0 %v961
      %1869 = vmatmul.mubr.bf16.gmra.mrb[0].mxu0 %v960
      %v1870 = vpop.f32.mrb[0].mxu0
      %v1871 = vadd.f32 %v1710, %v1870
      %v1872 = vpop.f32.mrb[0].mxu0
      %v1873 = vpop.f32.mrb[0].mxu0
      %v1874 = vadd.f32 %v1713, %v1873
      %v1875 = vpop.f32.mrb[0].mxu0
      %1876 = vmatprep.mubr.bf16.mxu0 %v970
      %1877 = vmatmul.mubr.bf16.gmra.mrb[0].mxu0 %v969
      %v1878 = vpop.f32.mrb[0].mxu0
      %v1879 = vadd.f32 %v1718, %v1878
      %v1880 = vpop.f32.mrb[0].mxu0
      %v1881 = vpop.f32.mrb[0].mxu0
      %v1882 = vadd.f32 %v1721, %v1881
      %v1883 = vpop.f32.mrb[0].mxu0
      %1884 = vmatprep.mubr.bf16.mxu0 %v979
      %1885 = vmatmul.mubr.bf16.gmra.mrb[0].mxu0 %v978
      %v1886 = vpop.f32.mrb[0].mxu0
      %v1887 = vadd.f32 %v1726, %v1886
      %v1888 = vpop.f32.mrb[0].mxu0
      %v1889 = vpop.f32.mrb[0].mxu0
      %v1890 = vadd.f32 %v1729, %v1889
      %v1891 = vpop.f32.mrb[0].mxu0
      %1892 = vmatprep.mubr.bf16.mxu0 %v988
      %1893 = vmatmul.mubr.bf16.gmra.mrb[0].mxu0 %v987
      %v1894 = vpop.f32.mrb[0].mxu0
      %v1895 = vadd.f32 %v1734, %v1894
      %v1896 = vpop.f32.mrb[0].mxu0
      %v1897 = vpop.f32.mrb[0].mxu0
      %v1898 = vadd.f32 %v1737, %v1897
      %v1899 = vpop.f32.mrb[0].mxu0
      %1900 = vmatprep.mubr.bf16.mxu0 %v997
      %1901 = vmatmul.mubr.bf16.gmra.mrb[0].mxu0 %v996
      %v1902 = vpop.f32.mrb[0].mxu0
      %v1903 = vadd.f32 %v1742, %v1902
      %v1904 = vpop.f32.mrb[0].mxu0
      %v1905 = vpop.f32.mrb[0].mxu0
      %v1906 = vadd.f32 %v1745, %v1905
      %v1907 = vpop.f32.mrb[0].mxu0
      %1908 = vmatprep.mubr.bf16.mxu0 %v1006
      %1909 = vmatmul.mubr.bf16.gmra.mrb[0].mxu0 %v1005
      %v1910 = vpop.f32.mrb[0].mxu0
      %v1911 = vadd.f32 %v1750, %v1910
      %v1912 = vpop.f32.mrb[0].mxu0
      %v1913 = vpop.f32.mrb[0].mxu0
      %v1914 = vadd.f32 %v1753, %v1913
      %v1915 = vpop.f32.mrb[0].mxu0
      %1916 = vmatprep.mubr.bf16.mxu0 %v1015
      %1917 = vmatmul.mubr.bf16.gmra.mrb[0].mxu0 %v1014
      %v1918 = vpop.f32.mrb[0].mxu0
      %v1919 = vadd.f32 %v1758, %v1918
      %v1920 = vpop.f32.mrb[0].mxu0
      %v1921 = vpop.f32.mrb[0].mxu0
      %v1922 = vadd.f32 %v1761, %v1921
      %v1923 = vpop.f32.mrb[0].mxu0
      %1924 = vmatprep.mubr.bf16.mxu0 %v1024
      %1925 = vmatmul.mubr.bf16.gmra.mrb[0].mxu0 %v1023
      %v1926 = vpop.f32.mrb[0].mxu0
      %v1927 = vadd.f32 %v1766, %v1926
      %v1928 = vpop.f32.mrb[0].mxu0
      %v1929 = vpop.f32.mrb[0].mxu0
      %v1930 = vadd.f32 %v1769, %v1929
      %v1931 = vpop.f32.mrb[0].mxu0
      %1932 = vmatprep.mubr.bf16.mxu0 %v1033
      %1933 = vmatmul.mubr.bf16.gmra.mrb[0].mxu0 %v1032
      %v1934 = vpop.f32.mrb[0].mxu0
      %v1935 = vadd.f32 %v1774, %v1934
      %v1936 = vpop.f32.mrb[0].mxu0
      %v1937 = vpop.f32.mrb[0].mxu0
      %v1938 = vadd.f32 %v1777, %v1937
      %v1939 = vpop.f32.mrb[0].mxu0
      %1940 = vmatprep.mubr.bf16.mxu0 %v1042
      %1941 = vmatmul.mubr.bf16.gmra.mrb[0].mxu0 %v1041
      %v1942 = vpop.f32.mrb[0].mxu0
      %v1943 = vadd.f32 %v1782, %v1942
      %v1944 = vpop.f32.mrb[0].mxu0
      %v1945 = vpop.f32.mrb[0].mxu0
      %v1946 = vadd.f32 %v1785, %v1945
      %v1947 = vpop.f32.mrb[0].mxu0
      %1948 = vmatprep.mubr.bf16.mxu0 %v1051
      %1949 = vmatmul.mubr.bf16.gmra.mrb[0].mxu0 %v1050
      %v1950 = vpop.f32.mrb[0].mxu0
      %v1951 = vadd.f32 %v1790, %v1950
      %v1952 = vpop.f32.mrb[0].mxu0
      %v1953 = vpop.f32.mrb[0].mxu0
      %v1954 = vadd.f32 %v1793, %v1953
      %v1955 = vpop.f32.mrb[0].mxu0
      %1956 = vmatprep.mubr.bf16.mxu0 %v1060
      %1957 = vmatmul.mubr.bf16.gmra.mrb[0].mxu0 %v1059
      %v1958 = vpop.f32.mrb[0].mxu0
      %v1959 = vadd.f32 %v1798, %v1958
      %v1960 = vpop.f32.mrb[0].mxu0
      %v1961 = vpop.f32.mrb[0].mxu0
      %v1962 = vadd.f32 %v1801, %v1961
      %v1963 = vpop.f32.mrb[0].mxu0
      %1964 = vmatprep.mubr.bf16.mxu0 %v1069
      %1965 = vmatmul.mubr.bf16.gmra.mrb[0].mxu0 %v1068
      %v1966 = vpop.f32.mrb[0].mxu0
      %v1967 = vadd.f32 %v1806, %v1966
      %v1968 = vpop.f32.mrb[0].mxu0
      %v1969 = vpop.f32.mrb[0].mxu0
      %v1970 = vadd.f32 %v1809, %v1969
      %v1971 = vpop.f32.mrb[0].mxu0
      %1972 = vdwg.mxu0
      %1973 = vmatprep.subr.bf16.mxu0 0
      %1974 = vmatpush1.bf16.msra.mxu0 %v1539
      %1975 = vmatprep.subr.bf16.mxu0 0
      %1976 = vmatpush1.bf16.msra.mxu0 %v1540
      %1977 = vmatprep.subr.bf16.mxu0 0
      %1978 = vmatpush1.bf16.msra.mxu0 %v1541
      %1979 = vmatprep.subr.bf16.mxu0 0
      %1980 = vmatpush1.bf16.msra.mxu0 %v1542
      %1981 = vmatprep.subr.bf16.mxu0 0
      %1982 = vmatpush1.bf16.msra.mxu0 %v1543
      %1983 = vmatprep.subr.bf16.mxu0 0
      %1984 = vmatpush1.bf16.msra.mxu0 %v1544
      %1985 = vmatprep.subr.bf16.mxu0 0
      %1986 = vmatpush1.bf16.msra.mxu0 %v1545
      %1987 = vmatprep.subr.bf16.mxu0 0
      %1988 = vmatpush1.bf16.msra.mxu0 %v1546
      %1989 = vmatprep.subr.bf16.mxu0 0
      %1990 = vmatpush1.bf16.msra.mxu0 %v1547
      %1991 = vmatprep.subr.bf16.mxu0 0
      %1992 = vmatpush1.bf16.msra.mxu0 %v1548
      %1993 = vmatprep.subr.bf16.mxu0 0
      %1994 = vmatpush1.bf16.msra.mxu0 %v1549
      %1995 = vmatprep.subr.bf16.mxu0 0
      %1996 = vmatpush1.bf16.msra.mxu0 %v1550
      %1997 = vmatprep.subr.bf16.mxu0 0
      %1998 = vmatpush1.bf16.msra.mxu0 %v1551
      %1999 = vmatprep.subr.bf16.mxu0 0
      %2000 = vmatpush1.bf16.msra.mxu0 %v1552
      %2001 = vmatprep.subr.bf16.mxu0 0
      %2002 = vmatpush1.bf16.msra.mxu0 %v1553
      %2003 = vmatprep.subr.bf16.mxu0 0
      %2004 = vmatpush1.bf16.msra.mxu0 %v1554
      %2005 = vmatprep.mubr.bf16.mxu0 %v936
      %2006 = vmatmul.mubr.bf16.gmra.mrb[0].mxu0 %v935
      %v2007 = vpop.f32.mrb[0].mxu0
      %v2008 = vadd.f32 %v1847, %v2007
      %v2009 = vpop.f32.mrb[0].mxu0
      %v2010 = vpop.f32.mrb[0].mxu0
      %v2011 = vadd.f32 %v1850, %v2010
      %v2012 = vpop.f32.mrb[0].mxu0
      %2013 = vmatprep.mubr.bf16.mxu0 %v945
      %2014 = vmatmul.mubr.bf16.gmra.mrb[0].mxu0 %v944
      %v2015 = vpop.f32.mrb[0].mxu0
      %v2016 = vadd.f32 %v1855, %v2015
      %v2017 = vpop.f32.mrb[0].mxu0
      %v2018 = vpop.f32.mrb[0].mxu0
      %v2019 = vadd.f32 %v1858, %v2018
      %v2020 = vpop.f32.mrb[0].mxu0
      %2021 = vmatprep.mubr.bf16.mxu0 %v954
      %2022 = vmatmul.mubr.bf16.gmra.mrb[0].mxu0 %v953
      %v2023 = vpop.f32.mrb[0].mxu0
      %v2024 = vadd.f32 %v1863, %v2023
      %v2025 = vpop.f32.mrb[0].mxu0
      %v2026 = vpop.f32.mrb[0].mxu0
      %v2027 = vadd.f32 %v1866, %v2026
      %v2028 = vpop.f32.mrb[0].mxu0
      %2029 = vmatprep.mubr.bf16.mxu0 %v963
      %2030 = vmatmul.mubr.bf16.gmra.mrb[0].mxu0 %v962
      %v2031 = vpop.f32.mrb[0].mxu0
      %v2032 = vadd.f32 %v1871, %v2031
      %v2033 = vpop.f32.mrb[0].mxu0
      %v2034 = vpop.f32.mrb[0].mxu0
      %v2035 = vadd.f32 %v1874, %v2034
      %v2036 = vpop.f32.mrb[0].mxu0
      %2037 = vmatprep.mubr.bf16.mxu0 %v972
      %2038 = vmatmul.mubr.bf16.gmra.mrb[0].mxu0 %v971
      %v2039 = vpop.f32.mrb[0].mxu0
      %v2040 = vadd.f32 %v1879, %v2039
      %v2041 = vpop.f32.mrb[0].mxu0
      %v2042 = vpop.f32.mrb[0].mxu0
      %v2043 = vadd.f32 %v1882, %v2042
      %v2044 = vpop.f32.mrb[0].mxu0
      %2045 = vmatprep.mubr.bf16.mxu0 %v981
      %2046 = vmatmul.mubr.bf16.gmra.mrb[0].mxu0 %v980
      %v2047 = vpop.f32.mrb[0].mxu0
      %v2048 = vadd.f32 %v1887, %v2047
      %v2049 = vpop.f32.mrb[0].mxu0
      %v2050 = vpop.f32.mrb[0].mxu0
      %v2051 = vadd.f32 %v1890, %v2050
      %v2052 = vpop.f32.mrb[0].mxu0
      %2053 = vmatprep.mubr.bf16.mxu0 %v990
      %2054 = vmatmul.mubr.bf16.gmra.mrb[0].mxu0 %v989
      %v2055 = vpop.f32.mrb[0].mxu0
      %v2056 = vadd.f32 %v1895, %v2055
      %v2057 = vpop.f32.mrb[0].mxu0
      %v2058 = vpop.f32.mrb[0].mxu0
      %v2059 = vadd.f32 %v1898, %v2058
      %v2060 = vpop.f32.mrb[0].mxu0
      %2061 = vmatprep.mubr.bf16.mxu0 %v999
      %2062 = vmatmul.mubr.bf16.gmra.mrb[0].mxu0 %v998
      %v2063 = vpop.f32.mrb[0].mxu0
      %v2064 = vadd.f32 %v1903, %v2063
      %v2065 = vpop.f32.mrb[0].mxu0
      %v2066 = vpop.f32.mrb[0].mxu0
      %v2067 = vadd.f32 %v1906, %v2066
      %v2068 = vpop.f32.mrb[0].mxu0
      %2069 = vmatprep.mubr.bf16.mxu0 %v1008
      %2070 = vmatmul.mubr.bf16.gmra.mrb[0].mxu0 %v1007
      %v2071 = vpop.f32.mrb[0].mxu0
      %v2072 = vadd.f32 %v1911, %v2071
      %v2073 = vpop.f32.mrb[0].mxu0
      %v2074 = vpop.f32.mrb[0].mxu0
      %v2075 = vadd.f32 %v1914, %v2074
      %v2076 = vpop.f32.mrb[0].mxu0
      %2077 = vmatprep.mubr.bf16.mxu0 %v1017
      %2078 = vmatmul.mubr.bf16.gmra.mrb[0].mxu0 %v1016
      %v2079 = vpop.f32.mrb[0].mxu0
      %v2080 = vadd.f32 %v1919, %v2079
      %v2081 = vpop.f32.mrb[0].mxu0
      %v2082 = vpop.f32.mrb[0].mxu0
      %v2083 = vadd.f32 %v1922, %v2082
      %v2084 = vpop.f32.mrb[0].mxu0
      %2085 = vmatprep.mubr.bf16.mxu0 %v1026
      %2086 = vmatmul.mubr.bf16.gmra.mrb[0].mxu0 %v1025
      %v2087 = vpop.f32.mrb[0].mxu0
      %v2088 = vadd.f32 %v1927, %v2087
      %v2089 = vpop.f32.mrb[0].mxu0
      %v2090 = vpop.f32.mrb[0].mxu0
      %v2091 = vadd.f32 %v1930, %v2090
      %v2092 = vpop.f32.mrb[0].mxu0
      %2093 = vmatprep.mubr.bf16.mxu0 %v1035
      %2094 = vmatmul.mubr.bf16.gmra.mrb[0].mxu0 %v1034
      %v2095 = vpop.f32.mrb[0].mxu0
      %v2096 = vadd.f32 %v1935, %v2095
      %v2097 = vpop.f32.mrb[0].mxu0
      %v2098 = vpop.f32.mrb[0].mxu0
      %v2099 = vadd.f32 %v1938, %v2098
      %v2100 = vpop.f32.mrb[0].mxu0
      %2101 = vmatprep.mubr.bf16.mxu0 %v1044
      %2102 = vmatmul.mubr.bf16.gmra.mrb[0].mxu0 %v1043
      %v2103 = vpop.f32.mrb[0].mxu0
      %v2104 = vadd.f32 %v1943, %v2103
      %v2105 = vpop.f32.mrb[0].mxu0
      %v2106 = vpop.f32.mrb[0].mxu0
      %v2107 = vadd.f32 %v1946, %v2106
      %v2108 = vpop.f32.mrb[0].mxu0
      %2109 = vmatprep.mubr.bf16.mxu0 %v1053
      %2110 = vmatmul.mubr.bf16.gmra.mrb[0].mxu0 %v1052
      %v2111 = vpop.f32.mrb[0].mxu0
      %v2112 = vadd.f32 %v1951, %v2111
      %v2113 = vpop.f32.mrb[0].mxu0
      %v2114 = vpop.f32.mrb[0].mxu0
      %v2115 = vadd.f32 %v1954, %v2114
      %v2116 = vpop.f32.mrb[0].mxu0
      %2117 = vmatprep.mubr.bf16.mxu0 %v1062
      %2118 = vmatmul.mubr.bf16.gmra.mrb[0].mxu0 %v1061
      %v2119 = vpop.f32.mrb[0].mxu0
      %v2120 = vadd.f32 %v1959, %v2119
      %v2121 = vpop.f32.mrb[0].mxu0
      %v2122 = vpop.f32.mrb[0].mxu0
      %v2123 = vadd.f32 %v1962, %v2122
      %v2124 = vpop.f32.mrb[0].mxu0
      %2125 = vmatprep.mubr.bf16.mxu0 %v1071
      %2126 = vmatmul.mubr.bf16.gmra.mrb[0].mxu0 %v1070
      %v2127 = vpop.f32.mrb[0].mxu0
      %v2128 = vadd.f32 %v1967, %v2127
      %v2129 = vpop.f32.mrb[0].mxu0
      %v2130 = vpop.f32.mrb[0].mxu0
      %v2131 = vadd.f32 %v1970, %v2130
      %v2132 = vpop.f32.mrb[0].mxu0
      %2133 = vdwg.mxu0
      %2134 = vmatprep.subr.bf16.mxu0 0
      %2135 = vmatpush1.bf16.msra.mxu0 %v1555
      %2136 = vmatprep.subr.bf16.mxu0 0
      %2137 = vmatpush1.bf16.msra.mxu0 %v1556
      %2138 = vmatprep.subr.bf16.mxu0 0
      %2139 = vmatpush1.bf16.msra.mxu0 %v1557
      %2140 = vmatprep.subr.bf16.mxu0 0
      %2141 = vmatpush1.bf16.msra.mxu0 %v1558
      %2142 = vmatprep.subr.bf16.mxu0 0
      %2143 = vmatpush1.bf16.msra.mxu0 %v1559
      %2144 = vmatprep.subr.bf16.mxu0 0
      %2145 = vmatpush1.bf16.msra.mxu0 %v1560
      %2146 = vmatprep.subr.bf16.mxu0 0
      %2147 = vmatpush1.bf16.msra.mxu0 %v1561
      %2148 = vmatprep.subr.bf16.mxu0 0
      %2149 = vmatpush1.bf16.msra.mxu0 %v1562
      %2150 = vmatprep.subr.bf16.mxu0 0
      %2151 = vmatpush1.bf16.msra.mxu0 %v1563
      %2152 = vmatprep.subr.bf16.mxu0 0
      %2153 = vmatpush1.bf16.msra.mxu0 %v1564
      %2154 = vmatprep.subr.bf16.mxu0 0
      %2155 = vmatpush1.bf16.msra.mxu0 %v1565
      %2156 = vmatprep.subr.bf16.mxu0 0
      %2157 = vmatpush1.bf16.msra.mxu0 %v1566
      %2158 = vmatprep.subr.bf16.mxu0 0
      %2159 = vmatpush1.bf16.msra.mxu0 %v1567
      %2160 = vmatprep.subr.bf16.mxu0 0
      %2161 = vmatpush1.bf16.msra.mxu0 %v1568
      %2162 = vmatprep.subr.bf16.mxu0 0
      %2163 = vmatpush1.bf16.msra.mxu0 %v1569
      %2164 = vmatprep.subr.bf16.mxu0 0
      %2165 = vmatpush1.bf16.msra.mxu0 %v1570
      %2166 = vmatprep.mubr.bf16.mxu0 %v938
      %2167 = vmatmul.mubr.bf16.gmra.mrb[0].mxu0 %v937
      %v2168 = vpop.f32.mrb[0].mxu0
      %v2169 = vadd.f32 %v2008, %v2168
      %v2170 = vpop.f32.mrb[0].mxu0
      %v2171 = vpop.f32.mrb[0].mxu0
      %v2172 = vadd.f32 %v2011, %v2171
      %v2173 = vpop.f32.mrb[0].mxu0
      %2174 = vmatprep.mubr.bf16.mxu0 %v947
      %2175 = vmatmul.mubr.bf16.gmra.mrb[0].mxu0 %v946
      %v2176 = vpop.f32.mrb[0].mxu0
      %v2177 = vadd.f32 %v2016, %v2176
      %v2178 = vpop.f32.mrb[0].mxu0
      %v2179 = vpop.f32.mrb[0].mxu0
      %v2180 = vadd.f32 %v2019, %v2179
      %v2181 = vpop.f32.mrb[0].mxu0
      %2182 = vmatprep.mubr.bf16.mxu0 %v956
      %2183 = vmatmul.mubr.bf16.gmra.mrb[0].mxu0 %v955
      %v2184 = vpop.f32.mrb[0].mxu0
      %v2185 = vadd.f32 %v2024, %v2184
      %v2186 = vpop.f32.mrb[0].mxu0
      %v2187 = vpop.f32.mrb[0].mxu0
      %v2188 = vadd.f32 %v2027, %v2187
      %v2189 = vpop.f32.mrb[0].mxu0
      %2190 = vmatprep.mubr.bf16.mxu0 %v965
      %2191 = vmatmul.mubr.bf16.gmra.mrb[0].mxu0 %v964
      %v2192 = vpop.f32.mrb[0].mxu0
      %v2193 = vadd.f32 %v2032, %v2192
      %v2194 = vpop.f32.mrb[0].mxu0
      %v2195 = vpop.f32.mrb[0].mxu0
      %v2196 = vadd.f32 %v2035, %v2195
      %v2197 = vpop.f32.mrb[0].mxu0
      %2198 = vmatprep.mubr.bf16.mxu0 %v974
      %2199 = vmatmul.mubr.bf16.gmra.mrb[0].mxu0 %v973
      %v2200 = vpop.f32.mrb[0].mxu0
      %v2201 = vadd.f32 %v2040, %v2200
      %v2202 = vpop.f32.mrb[0].mxu0
      %v2203 = vpop.f32.mrb[0].mxu0
      %v2204 = vadd.f32 %v2043, %v2203
      %v2205 = vpop.f32.mrb[0].mxu0
      %2206 = vmatprep.mubr.bf16.mxu0 %v983
      %2207 = vmatmul.mubr.bf16.gmra.mrb[0].mxu0 %v982
      %v2208 = vpop.f32.mrb[0].mxu0
      %v2209 = vadd.f32 %v2048, %v2208
      %v2210 = vpop.f32.mrb[0].mxu0
      %v2211 = vpop.f32.mrb[0].mxu0
      %v2212 = vadd.f32 %v2051, %v2211
      %v2213 = vpop.f32.mrb[0].mxu0
      %2214 = vmatprep.mubr.bf16.mxu0 %v992
      %2215 = vmatmul.mubr.bf16.gmra.mrb[0].mxu0 %v991
      %v2216 = vpop.f32.mrb[0].mxu0
      %v2217 = vadd.f32 %v2056, %v2216
      %v2218 = vpop.f32.mrb[0].mxu0
      %v2219 = vpop.f32.mrb[0].mxu0
      %v2220 = vadd.f32 %v2059, %v2219
      %v2221 = vpop.f32.mrb[0].mxu0
      %2222 = vmatprep.mubr.bf16.mxu0 %v1001
      %2223 = vmatmul.mubr.bf16.gmra.mrb[0].mxu0 %v1000
      %v2224 = vpop.f32.mrb[0].mxu0
      %v2225 = vadd.f32 %v2064, %v2224
      %v2226 = vpop.f32.mrb[0].mxu0
      %v2227 = vpop.f32.mrb[0].mxu0
      %v2228 = vadd.f32 %v2067, %v2227
      %v2229 = vpop.f32.mrb[0].mxu0
      %2230 = vmatprep.mubr.bf16.mxu0 %v1010
      %2231 = vmatmul.mubr.bf16.gmra.mrb[0].mxu0 %v1009
      %v2232 = vpop.f32.mrb[0].mxu0
      %v2233 = vadd.f32 %v2072, %v2232
      %v2234 = vpop.f32.mrb[0].mxu0
      %v2235 = vpop.f32.mrb[0].mxu0
      %v2236 = vadd.f32 %v2075, %v2235
      %v2237 = vpop.f32.mrb[0].mxu0
      %2238 = vmatprep.mubr.bf16.mxu0 %v1019
      %2239 = vmatmul.mubr.bf16.gmra.mrb[0].mxu0 %v1018
      %v2240 = vpop.f32.mrb[0].mxu0
      %v2241 = vadd.f32 %v2080, %v2240
      %v2242 = vpop.f32.mrb[0].mxu0
      %v2243 = vpop.f32.mrb[0].mxu0
      %v2244 = vadd.f32 %v2083, %v2243
      %v2245 = vpop.f32.mrb[0].mxu0
      %2246 = vmatprep.mubr.bf16.mxu0 %v1028
      %2247 = vmatmul.mubr.bf16.gmra.mrb[0].mxu0 %v1027
      %v2248 = vpop.f32.mrb[0].mxu0
      %v2249 = vadd.f32 %v2088, %v2248
      %v2250 = vpop.f32.mrb[0].mxu0
      %v2251 = vpop.f32.mrb[0].mxu0
      %v2252 = vadd.f32 %v2091, %v2251
      %v2253 = vpop.f32.mrb[0].mxu0
      %2254 = vmatprep.mubr.bf16.mxu0 %v1037
      %2255 = vmatmul.mubr.bf16.gmra.mrb[0].mxu0 %v1036
      %v2256 = vpop.f32.mrb[0].mxu0
      %v2257 = vadd.f32 %v2096, %v2256
      %v2258 = vpop.f32.mrb[0].mxu0
      %v2259 = vpop.f32.mrb[0].mxu0
      %v2260 = vadd.f32 %v2099, %v2259
      %v2261 = vpop.f32.mrb[0].mxu0
      %2262 = vmatprep.mubr.bf16.mxu0 %v1046
      %2263 = vmatmul.mubr.bf16.gmra.mrb[0].mxu0 %v1045
      %v2264 = vpop.f32.mrb[0].mxu0
      %v2265 = vadd.f32 %v2104, %v2264
      %v2266 = vpop.f32.mrb[0].mxu0
      %v2267 = vpop.f32.mrb[0].mxu0
      %v2268 = vadd.f32 %v2107, %v2267
      %v2269 = vpop.f32.mrb[0].mxu0
      %2270 = vmatprep.mubr.bf16.mxu0 %v1055
      %2271 = vmatmul.mubr.bf16.gmra.mrb[0].mxu0 %v1054
      %v2272 = vpop.f32.mrb[0].mxu0
      %v2273 = vadd.f32 %v2112, %v2272
      %v2274 = vpop.f32.mrb[0].mxu0
      %v2275 = vpop.f32.mrb[0].mxu0
      %v2276 = vadd.f32 %v2115, %v2275
      %v2277 = vpop.f32.mrb[0].mxu0
      %2278 = vmatprep.mubr.bf16.mxu0 %v1064
      %2279 = vmatmul.mubr.bf16.gmra.mrb[0].mxu0 %v1063
      %v2280 = vpop.f32.mrb[0].mxu0
      %v2281 = vadd.f32 %v2120, %v2280
      %v2282 = vpop.f32.mrb[0].mxu0
      %v2283 = vpop.f32.mrb[0].mxu0
      %v2284 = vadd.f32 %v2123, %v2283
      %v2285 = vpop.f32.mrb[0].mxu0
      %2286 = vmatprep.mubr.bf16.mxu0 %v1073
      %2287 = vmatmul.mubr.bf16.gmra.mrb[0].mxu0 %v1072
      %v2288 = vpop.f32.mrb[0].mxu0
      %v2289 = vadd.f32 %v2128, %v2288
      %v2290 = vpop.f32.mrb[0].mxu0
      %v2291 = vpop.f32.mrb[0].mxu0
      %v2292 = vadd.f32 %v2131, %v2291
      %v2293 = vpop.f32.mrb[0].mxu0
      %2294 = vdwg.mxu0
      %2295 = vmatprep.subr.bf16.mxu0 0
      %2296 = vmatpush1.bf16.msra.mxu0 %v1571
      %2297 = vmatprep.subr.bf16.mxu0 0
      %2298 = vmatpush1.bf16.msra.mxu0 %v1572
      %2299 = vmatprep.subr.bf16.mxu0 0
      %2300 = vmatpush1.bf16.msra.mxu0 %v1573
      %2301 = vmatprep.subr.bf16.mxu0 0
      %2302 = vmatpush1.bf16.msra.mxu0 %v1574
      %2303 = vmatprep.subr.bf16.mxu0 0
      %2304 = vmatpush1.bf16.msra.mxu0 %v1575
      %2305 = vmatprep.subr.bf16.mxu0 0
      %2306 = vmatpush1.bf16.msra.mxu0 %v1576
      %2307 = vmatprep.subr.bf16.mxu0 0
      %2308 = vmatpush1.bf16.msra.mxu0 %v1577
      %2309 = vmatprep.subr.bf16.mxu0 0
      %2310 = vmatpush1.bf16.msra.mxu0 %v1578
      %2311 = vmatprep.subr.bf16.mxu0 0
      %2312 = vmatpush1.bf16.msra.mxu0 0
      %2313 = vmatprep.subr.bf16.mxu0 0
      %2314 = vmatpush1.bf16.msra.mxu0 0
      %2315 = vmatprep.subr.bf16.mxu0 0
      %2316 = vmatpush1.bf16.msra.mxu0 0
      %2317 = vmatprep.subr.bf16.mxu0 0
      %2318 = vmatpush1.bf16.msra.mxu0 0
      %2319 = vmatprep.subr.bf16.mxu0 0
      %2320 = vmatpush1.bf16.msra.mxu0 0
      %2321 = vmatprep.subr.bf16.mxu0 0
      %2322 = vmatpush1.bf16.msra.mxu0 0
      %2323 = vmatprep.subr.bf16.mxu0 0
      %2324 = vmatpush1.bf16.msra.mxu0 0
      %2325 = vmatprep.subr.bf16.mxu0 0
      %2326 = vmatpush1.bf16.msra.mxu0 0
      %2327 = vmatprep.mubr.bf16.mxu0 0
      %2328 = vmatmul.mubr.bf16.gmra.mrb[0].mxu0 %v939
      %v2329 = vpop.f32.mrb[0].mxu0
      %v2330 = vadd.f32 %v2169, %v2329
      %v2331 = vpop.f32.mrb[0].mxu0
      %v2332 = vpop.f32.mrb[0].mxu0
      %v2333 = vadd.f32 %v2172, %v2332
      %v2334 = vpop.f32.mrb[0].mxu0
      %2335 = vmatprep.mubr.bf16.mxu0 0
      %2336 = vmatmul.mubr.bf16.gmra.mrb[0].mxu0 %v948
      %v2337 = vpop.f32.mrb[0].mxu0
      %v2338 = vadd.f32 %v2177, %v2337
      %v2339 = vpop.f32.mrb[0].mxu0
      %v2340 = vpop.f32.mrb[0].mxu0
      %v2341 = vadd.f32 %v2180, %v2340
      %v2342 = vpop.f32.mrb[0].mxu0
      %2343 = vmatprep.mubr.bf16.mxu0 0
      %2344 = vmatmul.mubr.bf16.gmra.mrb[0].mxu0 %v957
      %v2345 = vpop.f32.mrb[0].mxu0
      %v2346 = vadd.f32 %v2185, %v2345
      %v2347 = vpop.f32.mrb[0].mxu0
      %v2348 = vpop.f32.mrb[0].mxu0
      %v2349 = vadd.f32 %v2188, %v2348
      %v2350 = vpop.f32.mrb[0].mxu0
      %2351 = vmatprep.mubr.bf16.mxu0 0
      %2352 = vmatmul.mubr.bf16.gmra.mrb[0].mxu0 %v966
      %v2353 = vpop.f32.mrb[0].mxu0
      %v2354 = vadd.f32 %v2193, %v2353
      %v2355 = vpop.f32.mrb[0].mxu0
      %v2356 = vpop.f32.mrb[0].mxu0
      %v2357 = vadd.f32 %v2196, %v2356
      %v2358 = vpop.f32.mrb[0].mxu0
      %2359 = vmatprep.mubr.bf16.mxu0 0
      %2360 = vmatmul.mubr.bf16.gmra.mrb[0].mxu0 %v975
      %v2361 = vpop.f32.mrb[0].mxu0
      %v2362 = vadd.f32 %v2201, %v2361
      %v2363 = vpop.f32.mrb[0].mxu0
      %v2364 = vpop.f32.mrb[0].mxu0
      %v2365 = vadd.f32 %v2204, %v2364
      %v2366 = vpop.f32.mrb[0].mxu0
      %2367 = vmatprep.mubr.bf16.mxu0 0
      %2368 = vmatmul.mubr.bf16.gmra.mrb[0].mxu0 %v984
      %v2369 = vpop.f32.mrb[0].mxu0
      %v2370 = vadd.f32 %v2209, %v2369
      %v2371 = vpop.f32.mrb[0].mxu0
      %v2372 = vpop.f32.mrb[0].mxu0
      %v2373 = vadd.f32 %v2212, %v2372
      %v2374 = vpop.f32.mrb[0].mxu0
      %2375 = vmatprep.mubr.bf16.mxu0 0
      %2376 = vmatmul.mubr.bf16.gmra.mrb[0].mxu0 %v993
      %v2377 = vpop.f32.mrb[0].mxu0
      %v2378 = vadd.f32 %v2217, %v2377
      %v2379 = vpop.f32.mrb[0].mxu0
      %v2380 = vpop.f32.mrb[0].mxu0
      %v2381 = vadd.f32 %v2220, %v2380
      %v2382 = vpop.f32.mrb[0].mxu0
      %2383 = vmatprep.mubr.bf16.mxu0 0
      %2384 = vmatmul.mubr.bf16.gmra.mrb[0].mxu0 %v1002
      %v2385 = vpop.f32.mrb[0].mxu0
      %v2386 = vadd.f32 %v2225, %v2385
      %v2387 = vpop.f32.mrb[0].mxu0
      %v2388 = vpop.f32.mrb[0].mxu0
      %v2389 = vadd.f32 %v2228, %v2388
      %v2390 = vpop.f32.mrb[0].mxu0
      %2391 = vmatprep.mubr.bf16.mxu0 0
      %2392 = vmatmul.mubr.bf16.gmra.mrb[0].mxu0 %v1011
      %v2393 = vpop.f32.mrb[0].mxu0
      %v2394 = vadd.f32 %v2233, %v2393
      %v2395 = vpop.f32.mrb[0].mxu0
      %v2396 = vpop.f32.mrb[0].mxu0
      %v2397 = vadd.f32 %v2236, %v2396
      %v2398 = vpop.f32.mrb[0].mxu0
      %2399 = vmatprep.mubr.bf16.mxu0 0
      %2400 = vmatmul.mubr.bf16.gmra.mrb[0].mxu0 %v1020
      %v2401 = vpop.f32.mrb[0].mxu0
      %v2402 = vadd.f32 %v2241, %v2401
      %v2403 = vpop.f32.mrb[0].mxu0
      %v2404 = vpop.f32.mrb[0].mxu0
      %v2405 = vadd.f32 %v2244, %v2404
      %v2406 = vpop.f32.mrb[0].mxu0
      %2407 = vmatprep.mubr.bf16.mxu0 0
      %2408 = vmatmul.mubr.bf16.gmra.mrb[0].mxu0 %v1029
      %v2409 = vpop.f32.mrb[0].mxu0
      %v2410 = vadd.f32 %v2249, %v2409
      %v2411 = vpop.f32.mrb[0].mxu0
      %v2412 = vpop.f32.mrb[0].mxu0
      %v2413 = vadd.f32 %v2252, %v2412
      %v2414 = vpop.f32.mrb[0].mxu0
      %2415 = vmatprep.mubr.bf16.mxu0 0
      %2416 = vmatmul.mubr.bf16.gmra.mrb[0].mxu0 %v1038
      %v2417 = vpop.f32.mrb[0].mxu0
      %v2418 = vadd.f32 %v2257, %v2417
      %v2419 = vpop.f32.mrb[0].mxu0
      %v2420 = vpop.f32.mrb[0].mxu0
      %v2421 = vadd.f32 %v2260, %v2420
      %v2422 = vpop.f32.mrb[0].mxu0
      %2423 = vmatprep.mubr.bf16.mxu0 0
      %2424 = vmatmul.mubr.bf16.gmra.mrb[0].mxu0 %v1047
      %v2425 = vpop.f32.mrb[0].mxu0
      %v2426 = vadd.f32 %v2265, %v2425
      %v2427 = vpop.f32.mrb[0].mxu0
      %v2428 = vpop.f32.mrb[0].mxu0
      %v2429 = vadd.f32 %v2268, %v2428
      %v2430 = vpop.f32.mrb[0].mxu0
      %2431 = vmatprep.mubr.bf16.mxu0 0
      %2432 = vmatmul.mubr.bf16.gmra.mrb[0].mxu0 %v1056
      %v2433 = vpop.f32.mrb[0].mxu0
      %v2434 = vadd.f32 %v2273, %v2433
      %v2435 = vpop.f32.mrb[0].mxu0
      %v2436 = vpop.f32.mrb[0].mxu0
      %v2437 = vadd.f32 %v2276, %v2436
      %v2438 = vpop.f32.mrb[0].mxu0
      %2439 = vmatprep.mubr.bf16.mxu0 0
      %2440 = vmatmul.mubr.bf16.gmra.mrb[0].mxu0 %v1065
      %v2441 = vpop.f32.mrb[0].mxu0
      %v2442 = vadd.f32 %v2281, %v2441
      %v2443 = vpop.f32.mrb[0].mxu0
      %v2444 = vpop.f32.mrb[0].mxu0
      %v2445 = vadd.f32 %v2284, %v2444
      %v2446 = vpop.f32.mrb[0].mxu0
      %2447 = vmatprep.mubr.bf16.mxu0 0
      %2448 = vmatmul.mubr.bf16.gmra.mrb[0].mxu0 %v1074
      %v2449 = vpop.f32.mrb[0].mxu0
      %v2450 = vadd.f32 %v2289, %v2449
      %v2451 = vpop.f32.mrb[0].mxu0
      %v2452 = vpop.f32.mrb[0].mxu0
      %v2453 = vadd.f32 %v2292, %v2452
      %v2454 = vpop.f32.mrb[0].mxu0
      %2455 = vdwg.mxu0
      %s2456 = sld [smem:[#allocation2]]
      %vm2457 = vcmp.gt.f32.partialorder %v2330, 0.0
      %vm2458 = vcmp.gt.f32.partialorder %v2333, 0.0
      %vm2459 = vcmp.gt.f32.partialorder %v2338, 0.0
      %vm2460 = vcmp.gt.f32.partialorder %v2341, 0.0
      %vm2461 = vcmp.gt.f32.partialorder %v2346, 0.0
      %vm2462 = vcmp.gt.f32.partialorder %v2349, 0.0
      %vm2463 = vcmp.gt.f32.partialorder %v2354, 0.0
      %vm2464 = vcmp.gt.f32.partialorder %v2357, 0.0
      %vm2465 = vcmp.gt.f32.partialorder %v2362, 0.0
      %vm2466 = vcmp.gt.f32.partialorder %v2365, 0.0
      %vm2467 = vcmp.gt.f32.partialorder %v2370, 0.0
      %vm2468 = vcmp.gt.f32.partialorder %v2373, 0.0
      %vm2469 = vcmp.gt.f32.partialorder %v2378, 0.0
      %vm2470 = vcmp.gt.f32.partialorder %v2381, 0.0
      %vm2471 = vcmp.gt.f32.partialorder %v2386, 0.0
      %vm2472 = vcmp.gt.f32.partialorder %v2389, 0.0
      %vm2473 = vcmp.gt.f32.partialorder %v2394, 0.0
      %vm2474 = vcmp.gt.f32.partialorder %v2397, 0.0
      %vm2475 = vcmp.gt.f32.partialorder %v2402, 0.0
      %vm2476 = vcmp.gt.f32.partialorder %v2405, 0.0
      %vm2477 = vcmp.gt.f32.partialorder %v2410, 0.0
      %vm2478 = vcmp.gt.f32.partialorder %v2413, 0.0
      %vm2479 = vcmp.gt.f32.partialorder %v2418, 0.0
      %vm2480 = vcmp.gt.f32.partialorder %v2421, 0.0
      %vm2481 = vcmp.gt.f32.partialorder %v2426, 0.0
      %vm2482 = vcmp.gt.f32.partialorder %v2429, 0.0
      %vm2483 = vcmp.gt.f32.partialorder %v2434, 0.0
      %vm2484 = vcmp.gt.f32.partialorder %v2437, 0.0
      %vm2485 = vcmp.gt.f32.partialorder %v2442, 0.0
      %vm2486 = vcmp.gt.f32.partialorder %v2445, 0.0
      %vm2487 = vcmp.gt.f32.partialorder %v2450, 0.0
      %vm2488 = vcmp.gt.f32.partialorder %v2453, 0.0
      %v2489 = vstv %s2456
      %v2490 = vmul.f32 %v2489, %v2330
      %v2491 = vmul.f32 %v2489, %v2333
      %v2492 = vmul.f32 %v2489, %v2338
      %v2493 = vmul.f32 %v2489, %v2341
      %v2494 = vmul.f32 %v2489, %v2346
      %v2495 = vmul.f32 %v2489, %v2349
      %v2496 = vmul.f32 %v2489, %v2354
      %v2497 = vmul.f32 %v2489, %v2357
      %v2498 = vmul.f32 %v2489, %v2362
      %v2499 = vmul.f32 %v2489, %v2365
      %v2500 = vmul.f32 %v2489, %v2370
      %v2501 = vmul.f32 %v2489, %v2373
      %v2502 = vmul.f32 %v2489, %v2378
      %v2503 = vmul.f32 %v2489, %v2381
      %v2504 = vmul.f32 %v2489, %v2386
      %v2505 = vmul.f32 %v2489, %v2389
      %v2506 = vmul.f32 %v2489, %v2394
      %v2507 = vmul.f32 %v2489, %v2397
      %v2508 = vmul.f32 %v2489, %v2402
      %v2509 = vmul.f32 %v2489, %v2405
      %v2510 = vmul.f32 %v2489, %v2410
      %v2511 = vmul.f32 %v2489, %v2413
      %v2512 = vmul.f32 %v2489, %v2418
      %v2513 = vmul.f32 %v2489, %v2421
      %v2514 = vmul.f32 %v2489, %v2426
      %v2515 = vmul.f32 %v2489, %v2429
      %v2516 = vmul.f32 %v2489, %v2434
      %v2517 = vmul.f32 %v2489, %v2437
      %v2518 = vmul.f32 %v2489, %v2442
      %v2519 = vmul.f32 %v2489, %v2445
      %v2520 = vmul.f32 %v2489, %v2450
      %v2521 = vmul.f32 %v2489, %v2453
      %v2522 = vsel %vm2457, %v2330, %v2490
      %v2523 = vsel %vm2458, %v2333, %v2491
      %v2524 = vsel %vm2459, %v2338, %v2492
      %v2525 = vsel %vm2460, %v2341, %v2493
      %v2526 = vsel %vm2461, %v2346, %v2494
      %v2527 = vsel %vm2462, %v2349, %v2495
      %v2528 = vsel %vm2463, %v2354, %v2496
      %v2529 = vsel %vm2464, %v2357, %v2497
      %v2530 = vsel %vm2465, %v2362, %v2498
      %v2531 = vsel %vm2466, %v2365, %v2499
      %v2532 = vsel %vm2467, %v2370, %v2500
      %v2533 = vsel %vm2468, %v2373, %v2501
      %v2534 = vsel %vm2469, %v2378, %v2502
      %v2535 = vsel %vm2470, %v2381, %v2503
      %v2536 = vsel %vm2471, %v2386, %v2504
      %v2537 = vsel %vm2472, %v2389, %v2505
      %v2538 = vsel %vm2473, %v2394, %v2506
      %v2539 = vsel %vm2474, %v2397, %v2507
      %v2540 = vsel %vm2475, %v2402, %v2508
      %v2541 = vsel %vm2476, %v2405, %v2509
      %v2542 = vsel %vm2477, %v2410, %v2510
      %v2543 = vsel %vm2478, %v2413, %v2511
      %v2544 = vsel %vm2479, %v2418, %v2512
      %v2545 = vsel %vm2480, %v2421, %v2513
      %v2546 = vsel %vm2481, %v2426, %v2514
      %v2547 = vsel %vm2482, %v2429, %v2515
      %v2548 = vsel %vm2483, %v2434, %v2516
      %v2549 = vsel %vm2484, %v2437, %v2517
      %v2550 = vsel %vm2485, %v2442, %v2518
      %v2551 = vsel %vm2486, %v2445, %v2519
      %v2552 = vsel %vm2487, %v2450, %v2520
      %v2553 = vsel %vm2488, %v2453, %v2521
      %v2554 = vpack.c.bf16 %v2523, %v2522
      %v2555 = vpack.c.bf16 %v2525, %v2524
      %v2556 = vpack.c.bf16 %v2527, %v2526
      %v2557 = vpack.c.bf16 %v2529, %v2528
      %v2558 = vpack.c.bf16 %v2531, %v2530
      %v2559 = vpack.c.bf16 %v2533, %v2532
      %v2560 = vpack.c.bf16 %v2535, %v2534
      %v2561 = vpack.c.bf16 %v2537, %v2536
      %v2562 = vpack.c.bf16 %v2539, %v2538
      %v2563 = vpack.c.bf16 %v2541, %v2540
      %v2564 = vpack.c.bf16 %v2543, %v2542
      %v2565 = vpack.c.bf16 %v2545, %v2544
      %v2566 = vpack.c.bf16 %v2547, %v2546
      %v2567 = vpack.c.bf16 %v2549, %v2548
      %v2568 = vpack.c.bf16 %v2551, %v2550
      %v2569 = vpack.c.bf16 %v2553, %v2552
      %v2586 = vunpack.c.l.b16 %v2554
      %v2587 = vunpack.c.h.b16 %v2554
      %v2588 = vunpack.c.l.b16 %v2555
      %v2589 = vunpack.c.h.b16 %v2555
      %v2590 = vunpack.c.l.b16 %v2556
      %v2591 = vunpack.c.h.b16 %v2556
      %v2592 = vunpack.c.l.b16 %v2557
      %v2593 = vunpack.c.h.b16 %v2557
      %v2594 = vunpack.c.l.b16 %v2558
      %v2595 = vunpack.c.h.b16 %v2558
      %v2596 = vunpack.c.l.b16 %v2559
      %v2597 = vunpack.c.h.b16 %v2559
      %v2598 = vunpack.c.l.b16 %v2560
      %v2599 = vunpack.c.h.b16 %v2560
      %v2600 = vunpack.c.l.b16 %v2561
      %v2601 = vunpack.c.h.b16 %v2561
      %v2602 = vunpack.c.l.b16 %v2562
      %v2603 = vunpack.c.h.b16 %v2562
      %v2604 = vunpack.c.l.b16 %v2563
      %v2605 = vunpack.c.h.b16 %v2563
      %v2606 = vunpack.c.l.b16 %v2564
      %v2607 = vunpack.c.h.b16 %v2564
      %v2608 = vunpack.c.l.b16 %v2565
      %v2609 = vunpack.c.h.b16 %v2565
      %v2610 = vunpack.c.l.b16 %v2566
      %v2611 = vunpack.c.h.b16 %v2566
      %v2612 = vunpack.c.l.b16 %v2567
      %v2613 = vunpack.c.h.b16 %v2567
      %v2614 = vunpack.c.l.b16 %v2568
      %v2615 = vunpack.c.h.b16 %v2568
      %v2616 = vunpack.c.l.b16 %v2569
      %v2617 = vunpack.c.h.b16 %v2569
      %v2618 = vpack.c.b16 %v2586, %v2586
      %v2619 = vpack.c.b16 %v2587, %v2587
      %v2620 = vpack.c.b16 %v2588, %v2588
      %v2621 = vpack.c.b16 %v2589, %v2589
      %v2622 = vpack.c.b16 %v2590, %v2590
      %v2623 = vpack.c.b16 %v2591, %v2591
      %v2624 = vpack.c.b16 %v2592, %v2592
      %v2625 = vpack.c.b16 %v2593, %v2593
      %v2626 = vpack.c.b16 %v2594, %v2594
      %v2627 = vpack.c.b16 %v2595, %v2595
      %v2628 = vpack.c.b16 %v2596, %v2596
      %v2629 = vpack.c.b16 %v2597, %v2597
      %v2630 = vpack.c.b16 %v2598, %v2598
      %v2631 = vpack.c.b16 %v2599, %v2599
      %v2632 = vpack.c.b16 %v2600, %v2600
      %v2633 = vpack.c.b16 %v2601, %v2601
      %v2634 = vpack.c.b16 %v2602, %v2602
      %v2635 = vpack.c.b16 %v2603, %v2603
      %v2636 = vpack.c.b16 %v2604, %v2604
      %v2637 = vpack.c.b16 %v2605, %v2605
      %v2638 = vpack.c.b16 %v2606, %v2606
      %v2639 = vpack.c.b16 %v2607, %v2607
      %v2640 = vpack.c.b16 %v2608, %v2608
      %v2641 = vpack.c.b16 %v2609, %v2609
      %v2642 = vpack.c.b16 %v2610, %v2610
      %v2643 = vpack.c.b16 %v2611, %v2611
      %v2644 = vpack.c.b16 %v2612, %v2612
      %v2645 = vpack.c.b16 %v2613, %v2613
      %v2646 = vpack.c.b16 %v2614, %v2614
      %v2647 = vpack.c.b16 %v2615, %v2615
      %v2648 = vpack.c.b16 %v2616, %v2616
      %v2649 = vpack.c.b16 %v2617, %v2617
      %2682 = vst [vmem:[%s176] sm:$0xf] %v2618
      %2683 = vst [vmem:[%s176 + $0x4] sm:$0xf] %v2619
      %2684 = vst [vmem:[%s176 + $0x8] sm:$0xf] %v2620
      %2685 = vst [vmem:[%s176 + $0xc] sm:$0xf] %v2621
      %2686 = vst [vmem:[%s176 + $0x10] sm:$0xf] %v2622
      %2687 = vst [vmem:[%s176 + $0x14] sm:$0xf] %v2623
      %2688 = vst [vmem:[%s176 + $0x18] sm:$0xf] %v2624
      %2689 = vst [vmem:[%s176 + $0x1c] sm:$0xf] %v2625
      %2690 = vst [vmem:[%s176 + $0x20] sm:$0xf] %v2626
      %2691 = vst [vmem:[%s176 + $0x24] sm:$0xf] %v2627
      %2692 = vst [vmem:[%s176 + $0x28] sm:$0xf] %v2628
      %2693 = vst [vmem:[%s176 + $0x2c] sm:$0xf] %v2629
      %2694 = vst [vmem:[%s176 + $0x30] sm:$0xf] %v2630
      %2695 = vst [vmem:[%s176 + $0x34] sm:$0xf] %v2631
      %2696 = vst [vmem:[%s176 + $0x38] sm:$0xf] %v2632
      %2697 = vst [vmem:[%s176 + $0x3c] sm:$0xf] %v2633
      %2698 = vst [vmem:[%s176 + $0x40] sm:$0xf] %v2634
      %2699 = vst [vmem:[%s176 + $0x44] sm:$0xf] %v2635
      %2700 = vst [vmem:[%s176 + $0x48] sm:$0xf] %v2636
      %2701 = vst [vmem:[%s176 + $0x4c] sm:$0xf] %v2637
      %2702 = vst [vmem:[%s176 + $0x50] sm:$0xf] %v2638
      %2703 = vst [vmem:[%s176 + $0x54] sm:$0xf] %v2639
      %2704 = vst [vmem:[%s176 + $0x58] sm:$0xf] %v2640
      %2705 = vst [vmem:[%s176 + $0x5c] sm:$0xf] %v2641
      %2706 = vst [vmem:[%s176 + $0x60] sm:$0xf] %v2642
      %2707 = vst [vmem:[%s176 + $0x64] sm:$0xf] %v2643
      %2708 = vst [vmem:[%s176 + $0x68] sm:$0xf] %v2644
      %2709 = vst [vmem:[%s176 + $0x6c] sm:$0xf] %v2645
      %2710 = vst [vmem:[%s176 + $0x70] sm:$0xf] %v2646
      %2711 = vst [vmem:[%s176 + $0x74] sm:$0xf] %v2647
      %2712 = vst [vmem:[%s176 + $0x78] sm:$0xf] %v2648
      %2713 = vst [vmem:[%s176 + $0x7c] sm:$0xf] %v2649
      %s2714 = smul.u32 32, %s15
      %p2715 = scmp.lt.s32.totalorder %s2714, 63
      %s2716 = scalar_select %p2715, %s2714, 63
      %s2717 = smul.addr %s2716, 4
      %s2718 = scalar_lea.vmem %s3, %s2717
      // Predicated region
      $region33: #{resnet_block_forward.2} parent=31 // pred_check
        %p2719 = pneg %p101
      $region34: #{resnet_block_forward.2} parent=31 // pred_check_branch
        %2721 = sbr.rel (%p2719) target = $region36
      $region35: #{resnet_block_forward.2} parent=31 // pred_region
        %s2722 = smul.u32 32, %s15
      $region36: #{resnet_block_forward.2} parent=31 // pred_fallthru
        _
    $region32: #{resnet_block_forward.2} parent=5 // pred_fallthru
      _
    %p2723 = scmp.le.s32.totalorder 2, %s10
    // Predicated region
    $region37: #{resnet_block_forward.2} parent=5 // pred_check
      %p2724 = pneg %p2723
    $region38: #{resnet_block_forward.2} parent=5 // pred_check_branch
      %2726 = sbr.rel (%p2724) target = $region40
    $region39: #{resnet_block_forward.2} parent=5 // pred_region
      %s2727 = ssub.s32 %s10, 2
      // Predicated region
      $region41: #{resnet_block_forward.2} parent=39 // pred_check
        %p2728 = pneg %p107
      $region42: #{resnet_block_forward.2} parent=39 // pred_check_branch
        %2730 = sbr.rel (%p2728) target = $region44
      $region43: #{resnet_block_forward.2} parent=39 // pred_region
        %s2731 = smul.u32 32, %s16
        %p2732 = scmp.lt.s32.totalorder %s2731, 63
        %s2733 = scalar_select %p2732, %s2731, 63
        %s2734 = smul.addr %s2733, 4
        %s2735 = scalar_lea.vmem %s3, %s2734
      $region44: #{resnet_block_forward.2} parent=39 // pred_fallthru
        _
    $region40: #{resnet_block_forward.2} parent=5 // pred_fallthru
      _
  $region6: #{resnet_block_forward.2} parent=0 // loop_footer
    %s14 = sadd.s32 1, %s10
  $region7: #{resnet_block_forward.2} parent=0 // loop_footer_branch
    %9 = sbr.rel target = $region3
  $region8: #{resnet_block_forward.2} parent=0 // loop_exit
    _

// kernel: resnet_block_forward.3
$region0: #{resnet_block_forward.3}
  #allocation0 [shape = 'u32[]', space=smem, size = 0x4, offset = 0x4, fixed_abs, tag = 'smem constant byte address 0x4 - core index']
  #allocation1 [shape = 'u32[144,128]{1,0:T(1,128)}', space=vmem, size = 0x12000, scoped, tag = 'internal scratch']
  #allocation2 [shape = 'f32[1]{0:T(128)S(6)}', space=smem, size = 0x200, scoped, tag = 'scoped memory for resnet_block_forward.3']
  %s0 = inlined_call_operand.<no memory space> [shape: f32[1], index: 0, kind: input, shape index: {}]
  %s1 = inlined_call_operand.vmem [shape: bf16[512,1152], index: 1, kind: input, shape index: {}]
  %s2 = inlined_call_operand.vmem [shape: bf16[1152,128], index: 2, kind: input, shape index: {}]
  %s3 = inlined_call_operand.vmem [shape: f32[512,128], index: 3, kind: input, shape index: {}]
  %s4 = inlined_call_operand.vmem [shape: f32[4,128], index: 4, kind: input, shape index: {}]
  %s5 = inlined_call_operand.vmem [shape: f32[4,128], index: 5, kind: input, shape index: {}]
  %s6 = inlined_call_operand.hbm [shape: f32[512,128], index: 6, kind: output, shape index: {}]
  %s7 = sld [smem:[#allocation0]]
  $region57: #{resnet_block_forward.3} parent=0
    _
  %s9 = ssub.s32 1, %s7
  %s10 = scalar_select 0, %s9, %s7
  %11 = sst [smem:[#allocation2]] %s0
  $region1: #{resnet_block_forward.3} parent=0
    #allocation3 [shape = 'u8[262144]{0}', space=vmem, size = 0x40000, scoped, tag = 'output window, operand 0']
    #allocation4 [shape = 's32[2]{0}', space=sflag, size = 0x8, scoped, tag = 'scoped memory for resnet_block_forward.3']
    %12 = vsyncpa [#allocation4], 0
    %s13 = scalar_lea.sflag [#allocation4], 1
    %14 = vsyncpa %s13, 0
    loop: start=0, step=1, limit=4
    $region2: #{resnet_block_forward.3} parent=1 // loop_pre_header
      _
    $region3: #{resnet_block_forward.3} parent=1 // loop_header
      %s16 = sphi 0, %s20
      %p17 = scmp.ge.s32.totalorder %s16, 4
      %s24 = sphi 0, %s24
      %s26 = sphi 0, %s24
      %s27 = sphi 0, %s26
      %s41 = sphi 0, %s27
      %s47 = sphi 0, %s49
      %s50 = sphi 0, %s47
      %s51 = sphi 0, %s50
      %s67 = sphi 0, %s51
      %s71 = sphi 0, %s71
      %s73 = sphi 0, %s71
      %s74 = sphi 0, %s73
      %s88 = sphi 0, %s74
      %s94 = sphi 0, %s96
      %s97 = sphi 0, %s94
      %s98 = sphi 0, %s97
      %s114 = sphi 0, %s98
      %s118 = sphi 0, %s118
      %s120 = sphi 0, %s118
      %s121 = sphi 0, %s120
      %s135 = sphi 0, %s121
      %s139 = sphi 0, %s139
      %s141 = sphi 0, %s139
      %s142 = sphi 0, %s141
      %s156 = sphi 0, %s142
      %s162 = sphi 0, %s164
      %s165 = sphi 0, %s162
      %s166 = sphi 0, %s165
      %s182 = sphi 0, %s166
    $region4: #{resnet_block_forward.3} parent=1 // loop_header_branch
      %19 = sbr.rel (%p17) target = $region8
    $region5: #{resnet_block_forward.3} parent=1 // loop_body
      %s21 = ssub.s32 %s16, 1
      %s22 = ssub.s32 %s16, 2
      %s23 = sadd.s32 %s16, 1
      %s25 = sadd.s32 %s24, 1
      %p28 = scmp.eq.s32.totalorder %s16, 1
      %p29 = scmp.ne.s32.totalorder %s24, %s26
      %p30 = scmp.eq.s32.totalorder %s16, 0
      %p31 = por %p29, %p30
      %p32 = scmp.ne.s32.totalorder %s24, %s26
      %p33 = scmp.eq.s32.totalorder %s21, 1
      %p34 = por %p32, %p33
      %p35 = scmp.ne.s32.totalorder %s26, %s27
      %p36 = scmp.eq.s32.totalorder %s21, 0
      %p37 = por %p35, %p36
      %p38 = scmp.ne.s32.totalorder %s26, %s27
      %p39 = scmp.eq.s32.totalorder %s22, 1
      %p40 = por %p38, %p39
      %p42 = scmp.ne.s32.totalorder %s27, %s41
      %p43 = scmp.eq.s32.totalorder %s22, 0
      %p44 = por %p42, %p43
      %s45 = ssub.s32 %s16, %s23
      %p46 = scmp.eq.s32.totalorder %s45, 0
      %s48 = sadd.s32 %s47, 1
      %s49 = scalar_select %p46, %s47, %s48
      %p52 = pneg %p46
      %p53 = scmp.eq.s32.totalorder %s16, 1
      %p54 = por %p52, %p53
      %p55 = scmp.ne.s32.totalorder %s47, %s50
      %p56 = scmp.eq.s32.totalorder %s16, 0
      %p57 = por %p55, %p56
      %p58 = scmp.ne.s32.totalorder %s47, %s50
      %p59 = scmp.eq.s32.totalorder %s21, 1
      %p60 = por %p58, %p59
      %p61 = scmp.ne.s32.totalorder %s50, %s51
      %p62 = scmp.eq.s32.totalorder %s21, 0
      %p63 = por %p61, %p62
      %p64 = scmp.ne.s32.totalorder %s50, %s51
      %p65 = scmp.eq.s32.totalorder %s22, 1
      %p66 = por %p64, %p65
      %p68 = scmp.ne.s32.totalorder %s51, %s67
      %p69 = scmp.eq.s32.totalorder %s22, 0
      %p70 = por %p68, %p69
      %s72 = sadd.s32 %s71, 1
      %p75 = scmp.eq.s32.totalorder %s16, 1
      %p76 = scmp.ne.s32.totalorder %s71, %s73
      %p77 = scmp.eq.s32.totalorder %s16, 0
      %p78 = por %p76, %p77
      %p79 = scmp.ne.s32.totalorder %s71, %s73
      %p80 = scmp.eq.s32.totalorder %s21, 1
      %p81 = por %p79, %p80
      %p82 = scmp.ne.s32.totalorder %s73, %s74
      %p83 = scmp.eq.s32.totalorder %s21, 0
      %p84 = por %p82, %p83
      %p85 = scmp.ne.s32.totalorder %s73, %s74
      %p86 = scmp.eq.s32.totalorder %s22, 1
      %p87 = por %p85, %p86
      %p89 = scmp.ne.s32.totalorder %s74, %s88
      %p90 = scmp.eq.s32.totalorder %s22, 0
      %p91 = por %p89, %p90
      %s92 = ssub.s32 %s16, %s23
      %p93 = scmp.eq.s32.totalorder %s92, 0
      %s95 = sadd.s32 %s94, 1
      %s96 = scalar_select %p93, %s94, %s95
      %p99 = pneg %p93
      %p100 = scmp.eq.s32.totalorder %s16, 1
      %p101 = por %p99, %p100
      %p102 = scmp.ne.s32.totalorder %s94, %s97
      %p103 = scmp.eq.s32.totalorder %s16, 0
      %p104 = por %p102, %p103
      %p105 = scmp.ne.s32.totalorder %s94, %s97
      %p106 = scmp.eq.s32.totalorder %s21, 1
      %p107 = por %p105, %p106
      %p108 = scmp.ne.s32.totalorder %s97, %s98
      %p109 = scmp.eq.s32.totalorder %s21, 0
      %p110 = por %p108, %p109
      %p111 = scmp.ne.s32.totalorder %s97, %s98
      %p112 = scmp.eq.s32.totalorder %s22, 1
      %p113 = por %p111, %p112
      %p115 = scmp.ne.s32.totalorder %s98, %s114
      %p116 = scmp.eq.s32.totalorder %s22, 0
      %p117 = por %p115, %p116
      %s119 = sadd.s32 %s118, 1
      %p122 = scmp.eq.s32.totalorder %s16, 1
      %p123 = scmp.ne.s32.totalorder %s118, %s120
      %p124 = scmp.eq.s32.totalorder %s16, 0
      %p125 = por %p123, %p124
      %p126 = scmp.ne.s32.totalorder %s118, %s120
      %p127 = scmp.eq.s32.totalorder %s21, 1
      %p128 = por %p126, %p127
      %p129 = scmp.ne.s32.totalorder %s120, %s121
      %p130 = scmp.eq.s32.totalorder %s21, 0
      %p131 = por %p129, %p130
      %p132 = scmp.ne.s32.totalorder %s120, %s121
      %p133 = scmp.eq.s32.totalorder %s22, 1
      %p134 = por %p132, %p133
      %p136 = scmp.ne.s32.totalorder %s121, %s135
      %p137 = scmp.eq.s32.totalorder %s22, 0
      %p138 = por %p136, %p137
      %s140 = sadd.s32 %s139, 1
      %p143 = scmp.eq.s32.totalorder %s16, 1
      %p144 = scmp.ne.s32.totalorder %s139, %s141
      %p145 = scmp.eq.s32.totalorder %s16, 0
      %p146 = por %p144, %p145
      %p147 = scmp.ne.s32.totalorder %s139, %s141
      %p148 = scmp.eq.s32.totalorder %s21, 1
      %p149 = por %p147, %p148
      %p150 = scmp.ne.s32.totalorder %s141, %s142
      %p151 = scmp.eq.s32.totalorder %s21, 0
      %p152 = por %p150, %p151
      %p153 = scmp.ne.s32.totalorder %s141, %s142
      %p154 = scmp.eq.s32.totalorder %s22, 1
      %p155 = por %p153, %p154
      %p157 = scmp.ne.s32.totalorder %s142, %s156
      %p158 = scmp.eq.s32.totalorder %s22, 0
      %p159 = por %p157, %p158
      %s160 = ssub.s32 %s16, %s23
      %p161 = scmp.eq.s32.totalorder %s160, 0
      %s163 = sadd.s32 %s162, 1
      %s164 = scalar_select %p161, %s162, %s163
      %p167 = pneg %p161
      %p168 = scmp.eq.s32.totalorder %s16, 1
      %p169 = por %p167, %p168
      %p170 = scmp.ne.s32.totalorder %s162, %s165
      %p171 = scmp.eq.s32.totalorder %s16, 0
      %p172 = por %p170, %p171
      %p173 = scmp.ne.s32.totalorder %s162, %s165
      %p174 = scmp.eq.s32.totalorder %s21, 1
      %p175 = por %p173, %p174
      %p176 = scmp.ne.s32.totalorder %s165, %s166
      %p177 = scmp.eq.s32.totalorder %s21, 0
      %p178 = por %p176, %p177
      %p179 = scmp.ne.s32.totalorder %s165, %s166
      %p180 = scmp.eq.s32.totalorder %s22, 1
      %p181 = por %p179, %p180
      %p183 = scmp.ne.s32.totalorder %s166, %s182
      %p184 = scmp.eq.s32.totalorder %s22, 0
      %p185 = por %p183, %p184
      %p186 = scmp.le.s32.totalorder 1, %s16
      %p187 = scmp.lt.s32.totalorder %s16, 3
      %p188 = pnand %p186, %p187
      %p189 = pneg %p188
      // Predicated region
      $region9: #{resnet_block_forward.3} parent=5 // pred_check
        _
      $region10: #{resnet_block_forward.3} parent=5 // pred_check_branch
        %191 = sbr.rel (%p188) target = $region12
      $region11: #{resnet_block_forward.3} parent=5 // pred_region
        %s192 = ssub.s32 %s16, 1
        // Predicated region
        $region13: #{resnet_block_forward.3} parent=11 // pred_check
          %p193 = pneg %p37
        $region14: #{resnet_block_forward.3} parent=11 // pred_check_branch
          %195 = sbr.rel (%p193) target = $region16
        $region15: #{resnet_block_forward.3} parent=11 // pred_region
          _
        $region16: #{resnet_block_forward.3} parent=11 // pred_fallthru
          _
        // Predicated region
        $region17: #{resnet_block_forward.3} parent=11 // pred_check
          %p196 = pneg %p84
        $region18: #{resnet_block_forward.3} parent=11 // pred_check_branch
          %198 = sbr.rel (%p196) target = $region20
        $region19: #{resnet_block_forward.3} parent=11 // pred_region
          _
        $region20: #{resnet_block_forward.3} parent=11 // pred_fallthru
          _
        // Predicated region
        $region21: #{resnet_block_forward.3} parent=11 // pred_check
          %p199 = pneg %p131
        $region22: #{resnet_block_forward.3} parent=11 // pred_check_branch
          %201 = sbr.rel (%p199) target = $region24
        $region23: #{resnet_block_forward.3} parent=11 // pred_region
          _
        $region24: #{resnet_block_forward.3} parent=11 // pred_fallthru
          _
        // Predicated region
        $region25: #{resnet_block_forward.3} parent=11 // pred_check
          %p202 = pneg %p152
        $region26: #{resnet_block_forward.3} parent=11 // pred_check_branch
          %204 = sbr.rel (%p202) target = $region28
        $region27: #{resnet_block_forward.3} parent=11 // pred_region
          _
        $region28: #{resnet_block_forward.3} parent=11 // pred_fallthru
          _
      $region12: #{resnet_block_forward.3} parent=5 // pred_fallthru
        _
      %p205 = scmp.lt.s32.totalorder %s16, 2
      // Predicated region
      $region29: #{resnet_block_forward.3} parent=5 // pred_check
        %p206 = pneg %p205
      $region30: #{resnet_block_forward.3} parent=5 // pred_check_branch
        %208 = sbr.rel (%p206) target = $region32
      $region31: #{resnet_block_forward.3} parent=5 // pred_region
        // Predicated region
        $region33: #{resnet_block_forward.3} parent=31 // pred_check
          %p209 = pneg %p57
        $region34: #{resnet_block_forward.3} parent=31 // pred_check_branch
          %211 = sbr.rel (%p209) target = $region36
        $region35: #{resnet_block_forward.3} parent=31 // pred_region
          %s212 = smul.u32 32, %s16
          %p213 = scmp.lt.s32.totalorder %s212, 63
          %s214 = scalar_select %p213, %s212, 63
          %s215 = smul.addr %s214, 9
          %s216 = smul.addr %s215, 4
          %s217 = scalar_lea.vmem %s1, %s216
          %s218 = smul.u32 32, %s16
        $region36: #{resnet_block_forward.3} parent=31 // pred_fallthru
          _
        // Predicated region
        $region37: #{resnet_block_forward.3} parent=31 // pred_check
          %p219 = pneg %p104
        $region38: #{resnet_block_forward.3} parent=31 // pred_check_branch
          %221 = sbr.rel (%p219) target = $region40
        $region39: #{resnet_block_forward.3} parent=31 // pred_region
          %s222 = smul.u32 32, %s16
          %p223 = scmp.lt.s32.totalorder %s222, 63
          %s224 = scalar_select %p223, %s222, 63
          %s225 = smul.addr %s224, 8
          %s226 = scalar_lea.vmem %s3, %s225
          %s227 = smul.u32 32, %s16
        $region40: #{resnet_block_forward.3} parent=31 // pred_fallthru
          _
      $region32: #{resnet_block_forward.3} parent=5 // pred_fallthru
        _
      %p228 = scmp.le.s32.totalorder 1, %s16
      %p229 = scmp.lt.s32.totalorder %s16, 3
      %p230 = pnand %p228, %p229
      %p231 = pneg %p230
      // Predicated region
      $region41: #{resnet_block_forward.3} parent=5 // pred_check
        _
      $region42: #{resnet_block_forward.3} parent=5 // pred_check_branch
        %233 = sbr.rel (%p230) target = $region44
      $region43: #{resnet_block_forward.3} parent=5 // pred_region
        %s234 = ssub.s32 %s16, 1
        %p235 = pneg %p37
        %p236 = pneg %p34
        %s237 = smul.u32 32, %s21
        %p238 = scmp.lt.s32.totalorder %s237, 63
        %s239 = scalar_select %p238, %s237, 63
        %s240 = smul.addr %s239, 9
        %s241 = smul.addr %s240, 4
        %s242 = scalar_lea.vmem %s1, %s241
        %p243 = pneg %p63
        %p244 = pneg %p60
        %p245 = pneg %p84
        %p246 = pneg %p81
        %s247 = smul.u32 32, %s21
        %p248 = scmp.lt.s32.totalorder %s247, 63
        %s249 = scalar_select %p248, %s247, 63
        %s250 = smul.addr %s249, 8
        %s251 = scalar_lea.vmem %s3, %s250
        %p252 = pneg %p110
        %p253 = pneg %p107
        %p254 = pneg %p131
        %p255 = pneg %p128
        %p256 = pneg %p152
        %p257 = pneg %p149
        %p258 = pneg %p178
        %p259 = pneg %p175
        %s260 = sand.u32 %s165, 1
        %s261 = scalar_lea.sflag [#allocation4], %s260
        %s262 = sand.u32 %s165, 1
        %s263 = smul.addr %s262, 256
        %s264 = scalar_lea.vmem [#allocation3], %s263
        %s265 = smul.u32 32, %s21
        %p266 = scmp.lt.s32.totalorder %s265, 63
        %s267 = scalar_select %p266, %s265, 63
        %s268 = smul.addr %s267, 9
        %s269 = smul.addr %s268, 4
        %s270 = scalar_lea.vmem %s1, %s269
        %s271 = smul.u32 32, %s21
        %s272 = smul.u32 32, %s21
        %p273 = scmp.lt.s32.totalorder %s272, 63
        %s274 = scalar_select %p273, %s272, 63
        %s275 = smul.addr %s274, 8
        %s276 = scalar_lea.vmem %s3, %s275
        %s277 = smul.u32 32, %s21
        %s278 = smul.u32 32, %s21
        %s280 = sld [smem:[#allocation2]]
        %v281 = vld [vmem:[%s270] sm:$0xff]
        %v282 = vld [vmem:[%s270 + $0x8] sm:$0xff]
        %v283 = vld [vmem:[%s270 + $0x10] sm:$0xff]
        %v284 = vld [vmem:[%s270 + $0x18] sm:$0xff]
        %v285 = vld [vmem:[%s270 + $0x20] sm:$0xf]
        %v286 = vld [vmem:[%s270 + $0x24] sm:$0xff]
        %v287 = vld [vmem:[%s270 + $0x2c] sm:$0xff]
        %v288 = vld [vmem:[%s270 + $0x34] sm:$0xff]
        %v289 = vld [vmem:[%s270 + $0x3c] sm:$0xff]
        %v290 = vld [vmem:[%s270 + $0x44] sm:$0xf]
        %v291 = vld [vmem:[%s270 + $0x48] sm:$0xff]
        %v292 = vld [vmem:[%s270 + $0x50] sm:$0xff]
        %v293 = vld [vmem:[%s270 + $0x58] sm:$0xff]
        %v294 = vld [vmem:[%s270 + $0x60] sm:$0xff]
        %v295 = vld [vmem:[%s270 + $0x68] sm:$0xf]
        %v296 = vld [vmem:[%s270 + $0x6c] sm:$0xff]
        %v297 = vld [vmem:[%s270 + $0x74] sm:$0xff]
        %v298 = vld [vmem:[%s270 + $0x7c] sm:$0xff]
        %v299 = vld [vmem:[%s270 + $0x84] sm:$0xff]
        %v300 = vld [vmem:[%s270 + $0x8c] sm:$0xf]
        %v301 = vld [vmem:[%s270 + $0x90] sm:$0xff]
        %v302 = vld [vmem:[%s270 + $0x98] sm:$0xff]
        %v303 = vld [vmem:[%s270 + $0xa0] sm:$0xff]
        %v304 = vld [vmem:[%s270 + $0xa8] sm:$0xff]
        %v305 = vld [vmem:[%s270 + $0xb0] sm:$0xf]
        %v306 = vld [vmem:[%s270 + $0xb4] sm:$0xff]
        %v307 = vld [vmem:[%s270 + $0xbc] sm:$0xff]
        %v308 = vld [vmem:[%s270 + $0xc4] sm:$0xff]
        %v309 = vld [vmem:[%s270 + $0xcc] sm:$0xff]
        %v310 = vld [vmem:[%s270 + $0xd4] sm:$0xf]
        %v311 = vld [vmem:[%s270 + $0xd8] sm:$0xff]
        %v312 = vld [vmem:[%s270 + $0xe0] sm:$0xff]
        %v313 = vld [vmem:[%s270 + $0xe8] sm:$0xff]
        %v314 = vld [vmem:[%s270 + $0xf0] sm:$0xff]
        %v315 = vld [vmem:[%s270 + $0xf8] sm:$0xf]
        %v316 = vld [vmem:[%s270 + $0xfc] sm:$0xff]
        %v317 = vld [vmem:[%s270 + $0x104] sm:$0xff]
        %v318 = vld [vmem:[%s270 + $0x10c] sm:$0xff]
        %v319 = vld [vmem:[%s270 + $0x114] sm:$0xff]
        %v320 = vld [vmem:[%s270 + $0x11c] sm:$0xf]
        %v321 = vld [vmem:[%s270 + $0x120] sm:$0xff]
        %v322 = vld [vmem:[%s270 + $0x128] sm:$0xff]
        %v323 = vld [vmem:[%s270 + $0x130] sm:$0xff]
        %v324 = vld [vmem:[%s270 + $0x138] sm:$0xff]
        %v325 = vld [vmem:[%s270 + $0x140] sm:$0xf]
        %v326 = vld [vmem:[%s270 + $0x144] sm:$0xff]
        %v327 = vld [vmem:[%s270 + $0x14c] sm:$0xff]
        %v328 = vld [vmem:[%s270 + $0x154] sm:$0xff]
        %v329 = vld [vmem:[%s270 + $0x15c] sm:$0xff]
        %v330 = vld [vmem:[%s270 + $0x164] sm:$0xf]
        %v331 = vld [vmem:[%s270 + $0x168] sm:$0xff]
        %v332 = vld [vmem:[%s270 + $0x170] sm:$0xff]
        %v333 = vld [vmem:[%s270 + $0x178] sm:$0xff]
        %v334 = vld [vmem:[%s270 + $0x180] sm:$0xff]
        %v335 = vld [vmem:[%s270 + $0x188] sm:$0xf]
        %v336 = vld [vmem:[%s270 + $0x18c] sm:$0xff]
        %v337 = vld [vmem:[%s270 + $0x194] sm:$0xff]
        %v338 = vld [vmem:[%s270 + $0x19c] sm:$0xff]
        %v339 = vld [vmem:[%s270 + $0x1a4] sm:$0xff]
        %v340 = vld [vmem:[%s270 + $0x1ac] sm:$0xf]
        %v341 = vld [vmem:[%s270 + $0x1b0] sm:$0xff]
        %v342 = vld [vmem:[%s270 + $0x1b8] sm:$0xff]
        %v343 = vld [vmem:[%s270 + $0x1c0] sm:$0xff]
        %v344 = vld [vmem:[%s270 + $0x1c8] sm:$0xff]
        %v345 = vld [vmem:[%s270 + $0x1d0] sm:$0xf]
        %v346 = vld [vmem:[%s270 + $0x1d4] sm:$0xff]
        %v347 = vld [vmem:[%s270 + $0x1dc] sm:$0xff]
        %v348 = vld [vmem:[%s270 + $0x1e4] sm:$0xff]
        %v349 = vld [vmem:[%s270 + $0x1ec] sm:$0xff]
        %v350 = vld [vmem:[%s270 + $0x1f4] sm:$0xf]
        %v351 = vld [vmem:[%s270 + $0x1f8] sm:$0xff]
        %v352 = vld [vmem:[%s270 + $0x200] sm:$0xff]
        %v353 = vld [vmem:[%s270 + $0x208] sm:$0xff]
        %v354 = vld [vmem:[%s270 + $0x210] sm:$0xff]
        %v355 = vld [vmem:[%s270 + $0x218] sm:$0xf]
        %v356 = vld [vmem:[%s270 + $0x21c] sm:$0xff]
        %v357 = vld [vmem:[%s270 + $0x224] sm:$0xff]
        %v358 = vld [vmem:[%s270 + $0x22c] sm:$0xff]
        %v359 = vld [vmem:[%s270 + $0x234] sm:$0xff]
        %v360 = vld [vmem:[%s270 + $0x23c] sm:$0xf]
        %v361 = vld [vmem:[%s270 + $0x240] sm:$0xff]
        %v362 = vld [vmem:[%s270 + $0x248] sm:$0xff]
        %v363 = vld [vmem:[%s270 + $0x250] sm:$0xff]
        %v364 = vld [vmem:[%s270 + $0x258] sm:$0xff]
        %v365 = vld [vmem:[%s270 + $0x260] sm:$0xf]
        %v366 = vld [vmem:[%s270 + $0x264] sm:$0xff]
        %v367 = vld [vmem:[%s270 + $0x26c] sm:$0xff]
        %v368 = vld [vmem:[%s270 + $0x274] sm:$0xff]
        %v369 = vld [vmem:[%s270 + $0x27c] sm:$0xff]
        %v370 = vld [vmem:[%s270 + $0x284] sm:$0xf]
        %v371 = vld [vmem:[%s270 + $0x288] sm:$0xff]
        %v372 = vld [vmem:[%s270 + $0x290] sm:$0xff]
        %v373 = vld [vmem:[%s270 + $0x298] sm:$0xff]
        %v374 = vld [vmem:[%s270 + $0x2a0] sm:$0xff]
        %v375 = vld [vmem:[%s270 + $0x2a8] sm:$0xf]
        %v376 = vld [vmem:[%s270 + $0x2ac] sm:$0xff]
        %v377 = vld [vmem:[%s270 + $0x2b4] sm:$0xff]
        %v378 = vld [vmem:[%s270 + $0x2bc] sm:$0xff]
        %v379 = vld [vmem:[%s270 + $0x2c4] sm:$0xff]
        %v380 = vld [vmem:[%s270 + $0x2cc] sm:$0xf]
        %v381 = vld [vmem:[%s270 + $0x2d0] sm:$0xff]
        %v382 = vld [vmem:[%s270 + $0x2d8] sm:$0xff]
        %v383 = vld [vmem:[%s270 + $0x2e0] sm:$0xff]
        %v384 = vld [vmem:[%s270 + $0x2e8] sm:$0xff]
        %v385 = vld [vmem:[%s270 + $0x2f0] sm:$0xf]
        %v386 = vld [vmem:[%s270 + $0x2f4] sm:$0xff]
        %v387 = vld [vmem:[%s270 + $0x2fc] sm:$0xff]
        %v388 = vld [vmem:[%s270 + $0x304] sm:$0xff]
        %v389 = vld [vmem:[%s270 + $0x30c] sm:$0xff]
        %v390 = vld [vmem:[%s270 + $0x314] sm:$0xf]
        %v391 = vld [vmem:[%s270 + $0x318] sm:$0xff]
        %v392 = vld [vmem:[%s270 + $0x320] sm:$0xff]
        %v393 = vld [vmem:[%s270 + $0x328] sm:$0xff]
        %v394 = vld [vmem:[%s270 + $0x330] sm:$0xff]
        %v395 = vld [vmem:[%s270 + $0x338] sm:$0xf]
        %v396 = vld [vmem:[%s270 + $0x33c] sm:$0xff]
        %v397 = vld [vmem:[%s270 + $0x344] sm:$0xff]
        %v398 = vld [vmem:[%s270 + $0x34c] sm:$0xff]
        %v399 = vld [vmem:[%s270 + $0x354] sm:$0xff]
        %v400 = vld [vmem:[%s270 + $0x35c] sm:$0xf]
        %v401 = vld [vmem:[%s270 + $0x360] sm:$0xff]
        %v402 = vld [vmem:[%s270 + $0x368] sm:$0xff]
        %v403 = vld [vmem:[%s270 + $0x370] sm:$0xff]
        %v404 = vld [vmem:[%s270 + $0x378] sm:$0xff]
        %v405 = vld [vmem:[%s270 + $0x380] sm:$0xf]
        %v406 = vld [vmem:[%s270 + $0x384] sm:$0xff]
        %v407 = vld [vmem:[%s270 + $0x38c] sm:$0xff]
        %v408 = vld [vmem:[%s270 + $0x394] sm:$0xff]
        %v409 = vld [vmem:[%s270 + $0x39c] sm:$0xff]
        %v410 = vld [vmem:[%s270 + $0x3a4] sm:$0xf]
        %v411 = vld [vmem:[%s270 + $0x3a8] sm:$0xff]
        %v412 = vld [vmem:[%s270 + $0x3b0] sm:$0xff]
        %v413 = vld [vmem:[%s270 + $0x3b8] sm:$0xff]
        %v414 = vld [vmem:[%s270 + $0x3c0] sm:$0xff]
        %v415 = vld [vmem:[%s270 + $0x3c8] sm:$0xf]
        %v416 = vld [vmem:[%s270 + $0x3cc] sm:$0xff]
        %v417 = vld [vmem:[%s270 + $0x3d4] sm:$0xff]
        %v418 = vld [vmem:[%s270 + $0x3dc] sm:$0xff]
        %v419 = vld [vmem:[%s270 + $0x3e4] sm:$0xff]
        %v420 = vld [vmem:[%s270 + $0x3ec] sm:$0xf]
        %v421 = vld [vmem:[%s270 + $0x3f0] sm:$0xff]
        %v422 = vld [vmem:[%s270 + $0x3f8] sm:$0xff]
        %v423 = vld [vmem:[%s270 + $0x400] sm:$0xff]
        %v424 = vld [vmem:[%s270 + $0x408] sm:$0xff]
        %v425 = vld [vmem:[%s270 + $0x410] sm:$0xf]
        %v426 = vld [vmem:[%s270 + $0x414] sm:$0xff]
        %v427 = vld [vmem:[%s270 + $0x41c] sm:$0xff]
        %v428 = vld [vmem:[%s270 + $0x424] sm:$0xff]
        %v429 = vld [vmem:[%s270 + $0x42c] sm:$0xff]
        %v430 = vld [vmem:[%s270 + $0x434] sm:$0xf]
        %v431 = vld [vmem:[%s270 + $0x438] sm:$0xff]
        %v432 = vld [vmem:[%s270 + $0x440] sm:$0xff]
        %v433 = vld [vmem:[%s270 + $0x448] sm:$0xff]
        %v434 = vld [vmem:[%s270 + $0x450] sm:$0xff]
        %v435 = vld [vmem:[%s270 + $0x458] sm:$0xf]
        %v436 = vld [vmem:[%s270 + $0x45c] sm:$0xff]
        %v437 = vld [vmem:[%s270 + $0x464] sm:$0xff]
        %v438 = vld [vmem:[%s270 + $0x46c] sm:$0xff]
        %v439 = vld [vmem:[%s270 + $0x474] sm:$0xff]
        %v440 = vld [vmem:[%s270 + $0x47c] sm:$0xf]
        %v441 = vld [vmem:[%s2] sm:$0xf]
        %v442 = vld [vmem:[%s2 + $0x4] sm:$0xf]
        %v443 = vld [vmem:[%s2 + $0x8] sm:$0xf]
        %v444 = vld [vmem:[%s2 + $0xc] sm:$0xf]
        %v445 = vld [vmem:[%s2 + $0x10] sm:$0xf]
        %v446 = vld [vmem:[%s2 + $0x14] sm:$0xf]
        %v447 = vld [vmem:[%s2 + $0x18] sm:$0xf]
        %v448 = vld [vmem:[%s2 + $0x1c] sm:$0xf]
        %v449 = vld [vmem:[%s2 + $0x20] sm:$0xf]
        %v450 = vld [vmem:[%s2 + $0x24] sm:$0xf]
        %v451 = vld [vmem:[%s2 + $0x28] sm:$0xf]
        %v452 = vld [vmem:[%s2 + $0x2c] sm:$0xf]
        %v453 = vld [vmem:[%s2 + $0x30] sm:$0xf]
        %v454 = vld [vmem:[%s2 + $0x34] sm:$0xf]
        %v455 = vld [vmem:[%s2 + $0x38] sm:$0xf]
        %v456 = vld [vmem:[%s2 + $0x3c] sm:$0xf]
        %v457 = vld [vmem:[%s2 + $0x40] sm:$0xf]
        %v458 = vld [vmem:[%s2 + $0x44] sm:$0xf]
        %v459 = vld [vmem:[%s2 + $0x48] sm:$0xf]
        %v460 = vld [vmem:[%s2 + $0x4c] sm:$0xf]
        %v461 = vld [vmem:[%s2 + $0x50] sm:$0xf]
        %v462 = vld [vmem:[%s2 + $0x54] sm:$0xf]
        %v463 = vld [vmem:[%s2 + $0x58] sm:$0xf]
        %v464 = vld [vmem:[%s2 + $0x5c] sm:$0xf]
        %v465 = vld [vmem:[%s2 + $0x60] sm:$0xf]
        %v466 = vld [vmem:[%s2 + $0x64] sm:$0xf]
        %v467 = vld [vmem:[%s2 + $0x68] sm:$0xf]
        %v468 = vld [vmem:[%s2 + $0x6c] sm:$0xf]
        %v469 = vld [vmem:[%s2 + $0x70] sm:$0xf]
        %v470 = vld [vmem:[%s2 + $0x74] sm:$0xf]
        %v471 = vld [vmem:[%s2 + $0x78] sm:$0xf]
        %v472 = vld [vmem:[%s2 + $0x7c] sm:$0xf]
        %v473 = vld [vmem:[%s2 + $0x80] sm:$0xf]
        %v474 = vld [vmem:[%s2 + $0x84] sm:$0xf]
        %v475 = vld [vmem:[%s2 + $0x88] sm:$0xf]
        %v476 = vld [vmem:[%s2 + $0x8c] sm:$0xf]
        %v477 = vld [vmem:[%s2 + $0x90] sm:$0xf]
        %v478 = vld [vmem:[%s2 + $0x94] sm:$0xf]
        %v479 = vld [vmem:[%s2 + $0x98] sm:$0xf]
        %v480 = vld [vmem:[%s2 + $0x9c] sm:$0xf]
        %v481 = vld [vmem:[%s2 + $0xa0] sm:$0xf]
        %v482 = vld [vmem:[%s2 + $0xa4] sm:$0xf]
        %v483 = vld [vmem:[%s2 + $0xa8] sm:$0xf]
        %v484 = vld [vmem:[%s2 + $0xac] sm:$0xf]
        %v485 = vld [vmem:[%s2 + $0xb0] sm:$0xf]
        %v486 = vld [vmem:[%s2 + $0xb4] sm:$0xf]
        %v487 = vld [vmem:[%s2 + $0xb8] sm:$0xf]
        %v488 = vld [vmem:[%s2 + $0xbc] sm:$0xf]
        %v489 = vld [vmem:[%s2 + $0xc0] sm:$0xf]
        %v490 = vld [vmem:[%s2 + $0xc4] sm:$0xf]
        %v491 = vld [vmem:[%s2 + $0xc8] sm:$0xf]
        %v492 = vld [vmem:[%s2 + $0xcc] sm:$0xf]
        %v493 = vld [vmem:[%s2 + $0xd0] sm:$0xf]
        %v494 = vld [vmem:[%s2 + $0xd4] sm:$0xf]
        %v495 = vld [vmem:[%s2 + $0xd8] sm:$0xf]
        %v496 = vld [vmem:[%s2 + $0xdc] sm:$0xf]
        %v497 = vld [vmem:[%s2 + $0xe0] sm:$0xf]
        %v498 = vld [vmem:[%s2 + $0xe4] sm:$0xf]
        %v499 = vld [vmem:[%s2 + $0xe8] sm:$0xf]
        %v500 = vld [vmem:[%s2 + $0xec] sm:$0xf]
        %v501 = vld [vmem:[%s2 + $0xf0] sm:$0xf]
        %v502 = vld [vmem:[%s2 + $0xf4] sm:$0xf]
        %v503 = vld [vmem:[%s2 + $0xf8] sm:$0xf]
        %v504 = vld [vmem:[%s2 + $0xfc] sm:$0xf]
        %v505 = vld [vmem:[%s2 + $0x100] sm:$0xf]
        %v506 = vld [vmem:[%s2 + $0x104] sm:$0xf]
        %v507 = vld [vmem:[%s2 + $0x108] sm:$0xf]
        %v508 = vld [vmem:[%s2 + $0x10c] sm:$0xf]
        %v509 = vld [vmem:[%s2 + $0x110] sm:$0xf]
        %v510 = vld [vmem:[%s2 + $0x114] sm:$0xf]
        %v511 = vld [vmem:[%s2 + $0x118] sm:$0xf]
        %v512 = vld [vmem:[%s2 + $0x11c] sm:$0xf]
        %v513 = vld [vmem:[%s2 + $0x120] sm:$0xf]
        %v514 = vld [vmem:[%s2 + $0x124] sm:$0xf]
        %v515 = vld [vmem:[%s2 + $0x128] sm:$0xf]
        %v516 = vld [vmem:[%s2 + $0x12c] sm:$0xf]
        %v517 = vld [vmem:[%s2 + $0x130] sm:$0xf]
        %v518 = vld [vmem:[%s2 + $0x134] sm:$0xf]
        %v519 = vld [vmem:[%s2 + $0x138] sm:$0xf]
        %v520 = vld [vmem:[%s2 + $0x13c] sm:$0xf]
        %v521 = vld [vmem:[%s2 + $0x140] sm:$0xf]
        %v522 = vld [vmem:[%s2 + $0x144] sm:$0xf]
        %v523 = vld [vmem:[%s2 + $0x148] sm:$0xf]
        %v524 = vld [vmem:[%s2 + $0x14c] sm:$0xf]
        %v525 = vld [vmem:[%s2 + $0x150] sm:$0xf]
        %v526 = vld [vmem:[%s2 + $0x154] sm:$0xf]
        %v527 = vld [vmem:[%s2 + $0x158] sm:$0xf]
        %v528 = vld [vmem:[%s2 + $0x15c] sm:$0xf]
        %v529 = vld [vmem:[%s2 + $0x160] sm:$0xf]
        %v530 = vld [vmem:[%s2 + $0x164] sm:$0xf]
        %v531 = vld [vmem:[%s2 + $0x168] sm:$0xf]
        %v532 = vld [vmem:[%s2 + $0x16c] sm:$0xf]
        %v533 = vld [vmem:[%s2 + $0x170] sm:$0xf]
        %v534 = vld [vmem:[%s2 + $0x174] sm:$0xf]
        %v535 = vld [vmem:[%s2 + $0x178] sm:$0xf]
        %v536 = vld [vmem:[%s2 + $0x17c] sm:$0xf]
        %v537 = vld [vmem:[%s2 + $0x180] sm:$0xf]
        %v538 = vld [vmem:[%s2 + $0x184] sm:$0xf]
        %v539 = vld [vmem:[%s2 + $0x188] sm:$0xf]
        %v540 = vld [vmem:[%s2 + $0x18c] sm:$0xf]
        %v541 = vld [vmem:[%s2 + $0x190] sm:$0xf]
        %v542 = vld [vmem:[%s2 + $0x194] sm:$0xf]
        %v543 = vld [vmem:[%s2 + $0x198] sm:$0xf]
        %v544 = vld [vmem:[%s2 + $0x19c] sm:$0xf]
        %v545 = vld [vmem:[%s2 + $0x1a0] sm:$0xf]
        %v546 = vld [vmem:[%s2 + $0x1a4] sm:$0xf]
        %v547 = vld [vmem:[%s2 + $0x1a8] sm:$0xf]
        %v548 = vld [vmem:[%s2 + $0x1ac] sm:$0xf]
        %v549 = vld [vmem:[%s2 + $0x1b0] sm:$0xf]
        %v550 = vld [vmem:[%s2 + $0x1b4] sm:$0xf]
        %v551 = vld [vmem:[%s2 + $0x1b8] sm:$0xf]
        %v552 = vld [vmem:[%s2 + $0x1bc] sm:$0xf]
        %v553 = vld [vmem:[%s2 + $0x1c0] sm:$0xf]
        %v554 = vld [vmem:[%s2 + $0x1c4] sm:$0xf]
        %v555 = vld [vmem:[%s2 + $0x1c8] sm:$0xf]
        %v556 = vld [vmem:[%s2 + $0x1cc] sm:$0xf]
        %v557 = vld [vmem:[%s2 + $0x1d0] sm:$0xf]
        %v558 = vld [vmem:[%s2 + $0x1d4] sm:$0xf]
        %v559 = vld [vmem:[%s2 + $0x1d8] sm:$0xf]
        %v560 = vld [vmem:[%s2 + $0x1dc] sm:$0xf]
        %v561 = vld [vmem:[%s2 + $0x1e0] sm:$0xf]
        %v562 = vld [vmem:[%s2 + $0x1e4] sm:$0xf]
        %v563 = vld [vmem:[%s2 + $0x1e8] sm:$0xf]
        %v564 = vld [vmem:[%s2 + $0x1ec] sm:$0xf]
        %v565 = vld [vmem:[%s2 + $0x1f0] sm:$0xf]
        %v566 = vld [vmem:[%s2 + $0x1f4] sm:$0xf]
        %v567 = vld [vmem:[%s2 + $0x1f8] sm:$0xf]
        %v568 = vld [vmem:[%s2 + $0x1fc] sm:$0xf]
        %v569 = vld [vmem:[%s2 + $0x200] sm:$0xf]
        %v570 = vld [vmem:[%s2 + $0x204] sm:$0xf]
        %v571 = vld [vmem:[%s2 + $0x208] sm:$0xf]
        %v572 = vld [vmem:[%s2 + $0x20c] sm:$0xf]
        %v573 = vld [vmem:[%s2 + $0x210] sm:$0xf]
        %v574 = vld [vmem:[%s2 + $0x214] sm:$0xf]
        %v575 = vld [vmem:[%s2 + $0x218] sm:$0xf]
        %v576 = vld [vmem:[%s2 + $0x21c] sm:$0xf]
        %v577 = vld [vmem:[%s2 + $0x220] sm:$0xf]
        %v578 = vld [vmem:[%s2 + $0x224] sm:$0xf]
        %v579 = vld [vmem:[%s2 + $0x228] sm:$0xf]
        %v580 = vld [vmem:[%s2 + $0x22c] sm:$0xf]
        %v581 = vld [vmem:[%s2 + $0x230] sm:$0xf]
        %v582 = vld [vmem:[%s2 + $0x234] sm:$0xf]
        %v583 = vld [vmem:[%s2 + $0x238] sm:$0xf]
        %v584 = vld [vmem:[%s2 + $0x23c] sm:$0xf]
        %v745 = vunpack.c.l.b16 %v281
        %v746 = vunpack.c.h.b16 %v281
        %v747 = vunpack.c.l.b16 %v282
        %v748 = vunpack.c.h.b16 %v282
        %v749 = vunpack.c.l.b16 %v283
        %v750 = vunpack.c.h.b16 %v283
        %v751 = vunpack.c.l.b16 %v284
        %v752 = vunpack.c.h.b16 %v284
        %v753 = vunpack.c.l.b16 %v285
        %v754 = vunpack.c.l.b16 %v286
        %v755 = vunpack.c.h.b16 %v286
        %v756 = vunpack.c.l.b16 %v287
        %v757 = vunpack.c.h.b16 %v287
        %v758 = vunpack.c.l.b16 %v288
        %v759 = vunpack.c.h.b16 %v288
        %v760 = vunpack.c.l.b16 %v289
        %v761 = vunpack.c.h.b16 %v289
        %v762 = vunpack.c.l.b16 %v290
        %v763 = vunpack.c.l.b16 %v291
        %v764 = vunpack.c.h.b16 %v291
        %v765 = vunpack.c.l.b16 %v292
        %v766 = vunpack.c.h.b16 %v292
        %v767 = vunpack.c.l.b16 %v293
        %v768 = vunpack.c.h.b16 %v293
        %v769 = vunpack.c.l.b16 %v294
        %v770 = vunpack.c.h.b16 %v294
        %v771 = vunpack.c.l.b16 %v295
        %v772 = vunpack.c.l.b16 %v296
        %v773 = vunpack.c.h.b16 %v296
        %v774 = vunpack.c.l.b16 %v297
        %v775 = vunpack.c.h.b16 %v297
        %v776 = vunpack.c.l.b16 %v298
        %v777 = vunpack.c.h.b16 %v298
        %v778 = vunpack.c.l.b16 %v299
        %v779 = vunpack.c.h.b16 %v299
        %v780 = vunpack.c.l.b16 %v300
        %v781 = vunpack.c.l.b16 %v301
        %v782 = vunpack.c.h.b16 %v301
        %v783 = vunpack.c.l.b16 %v302
        %v784 = vunpack.c.h.b16 %v302
        %v785 = vunpack.c.l.b16 %v303
        %v786 = vunpack.c.h.b16 %v303
        %v787 = vunpack.c.l.b16 %v304
        %v788 = vunpack.c.h.b16 %v304
        %v789 = vunpack.c.l.b16 %v305
        %v790 = vunpack.c.l.b16 %v306
        %v791 = vunpack.c.h.b16 %v306
        %v792 = vunpack.c.l.b16 %v307
        %v793 = vunpack.c.h.b16 %v307
        %v794 = vunpack.c.l.b16 %v308
        %v795 = vunpack.c.h.b16 %v308
        %v796 = vunpack.c.l.b16 %v309
        %v797 = vunpack.c.h.b16 %v309
        %v798 = vunpack.c.l.b16 %v310
        %v799 = vunpack.c.l.b16 %v311
        %v800 = vunpack.c.h.b16 %v311
        %v801 = vunpack.c.l.b16 %v312
        %v802 = vunpack.c.h.b16 %v312
        %v803 = vunpack.c.l.b16 %v313
        %v804 = vunpack.c.h.b16 %v313
        %v805 = vunpack.c.l.b16 %v314
        %v806 = vunpack.c.h.b16 %v314
        %v807 = vunpack.c.l.b16 %v315
        %v808 = vunpack.c.l.b16 %v316
        %v809 = vunpack.c.h.b16 %v316
        %v810 = vunpack.c.l.b16 %v317
        %v811 = vunpack.c.h.b16 %v317
        %v812 = vunpack.c.l.b16 %v318
        %v813 = vunpack.c.h.b16 %v318
        %v814 = vunpack.c.l.b16 %v319
        %v815 = vunpack.c.h.b16 %v319
        %v816 = vunpack.c.l.b16 %v320
        %v817 = vunpack.c.l.b16 %v321
        %v818 = vunpack.c.h.b16 %v321
        %v819 = vunpack.c.l.b16 %v322
        %v820 = vunpack.c.h.b16 %v322
        %v821 = vunpack.c.l.b16 %v323
        %v822 = vunpack.c.h.b16 %v323
        %v823 = vunpack.c.l.b16 %v324
        %v824 = vunpack.c.h.b16 %v324
        %v825 = vunpack.c.l.b16 %v325
        %v826 = vunpack.c.l.b16 %v326
        %v827 = vunpack.c.h.b16 %v326
        %v828 = vunpack.c.l.b16 %v327
        %v829 = vunpack.c.h.b16 %v327
        %v830 = vunpack.c.l.b16 %v328
        %v831 = vunpack.c.h.b16 %v328
        %v832 = vunpack.c.l.b16 %v329
        %v833 = vunpack.c.h.b16 %v329
        %v834 = vunpack.c.l.b16 %v330
        %v835 = vunpack.c.l.b16 %v331
        %v836 = vunpack.c.h.b16 %v331
        %v837 = vunpack.c.l.b16 %v332
        %v838 = vunpack.c.h.b16 %v332
        %v839 = vunpack.c.l.b16 %v333
        %v840 = vunpack.c.h.b16 %v333
        %v841 = vunpack.c.l.b16 %v334
        %v842 = vunpack.c.h.b16 %v334
        %v843 = vunpack.c.l.b16 %v335
        %v844 = vunpack.c.l.b16 %v336
        %v845 = vunpack.c.h.b16 %v336
        %v846 = vunpack.c.l.b16 %v337
        %v847 = vunpack.c.h.b16 %v337
        %v848 = vunpack.c.l.b16 %v338
        %v849 = vunpack.c.h.b16 %v338
        %v850 = vunpack.c.l.b16 %v339
        %v851 = vunpack.c.h.b16 %v339
        %v852 = vunpack.c.l.b16 %v340
        %v853 = vunpack.c.l.b16 %v341
        %v854 = vunpack.c.h.b16 %v341
        %v855 = vunpack.c.l.b16 %v342
        %v856 = vunpack.c.h.b16 %v342
        %v857 = vunpack.c.l.b16 %v343
        %v858 = vunpack.c.h.b16 %v343
        %v859 = vunpack.c.l.b16 %v344
        %v860 = vunpack.c.h.b16 %v344
        %v861 = vunpack.c.l.b16 %v345
        %v862 = vunpack.c.l.b16 %v346
        %v863 = vunpack.c.h.b16 %v346
        %v864 = vunpack.c.l.b16 %v347
        %v865 = vunpack.c.h.b16 %v347
        %v866 = vunpack.c.l.b16 %v348
        %v867 = vunpack.c.h.b16 %v348
        %v868 = vunpack.c.l.b16 %v349
        %v869 = vunpack.c.h.b16 %v349
        %v870 = vunpack.c.l.b16 %v350
        %v871 = vunpack.c.l.b16 %v351
        %v872 = vunpack.c.h.b16 %v351
        %v873 = vunpack.c.l.b16 %v352
        %v874 = vunpack.c.h.b16 %v352
        %v875 = vunpack.c.l.b16 %v353
        %v876 = vunpack.c.h.b16 %v353
        %v877 = vunpack.c.l.b16 %v354
        %v878 = vunpack.c.h.b16 %v354
        %v879 = vunpack.c.l.b16 %v355
        %v880 = vunpack.c.l.b16 %v356
        %v881 = vunpack.c.h.b16 %v356
        %v882 = vunpack.c.l.b16 %v357
        %v883 = vunpack.c.h.b16 %v357
        %v884 = vunpack.c.l.b16 %v358
        %v885 = vunpack.c.h.b16 %v358
        %v886 = vunpack.c.l.b16 %v359
        %v887 = vunpack.c.h.b16 %v359
        %v888 = vunpack.c.l.b16 %v360
        %v889 = vunpack.c.l.b16 %v361
        %v890 = vunpack.c.h.b16 %v361
        %v891 = vunpack.c.l.b16 %v362
        %v892 = vunpack.c.h.b16 %v362
        %v893 = vunpack.c.l.b16 %v363
        %v894 = vunpack.c.h.b16 %v363
        %v895 = vunpack.c.l.b16 %v364
        %v896 = vunpack.c.h.b16 %v364
        %v897 = vunpack.c.l.b16 %v365
        %v898 = vunpack.c.l.b16 %v366
        %v899 = vunpack.c.h.b16 %v366
        %v900 = vunpack.c.l.b16 %v367
        %v901 = vunpack.c.h.b16 %v367
        %v902 = vunpack.c.l.b16 %v368
        %v903 = vunpack.c.h.b16 %v368
        %v904 = vunpack.c.l.b16 %v369
        %v905 = vunpack.c.h.b16 %v369
        %v906 = vunpack.c.l.b16 %v370
        %v907 = vunpack.c.l.b16 %v371
        %v908 = vunpack.c.h.b16 %v371
        %v909 = vunpack.c.l.b16 %v372
        %v910 = vunpack.c.h.b16 %v372
        %v911 = vunpack.c.l.b16 %v373
        %v912 = vunpack.c.h.b16 %v373
        %v913 = vunpack.c.l.b16 %v374
        %v914 = vunpack.c.h.b16 %v374
        %v915 = vunpack.c.l.b16 %v375
        %v916 = vunpack.c.l.b16 %v376
        %v917 = vunpack.c.h.b16 %v376
        %v918 = vunpack.c.l.b16 %v377
        %v919 = vunpack.c.h.b16 %v377
        %v920 = vunpack.c.l.b16 %v378
        %v921 = vunpack.c.h.b16 %v378
        %v922 = vunpack.c.l.b16 %v379
        %v923 = vunpack.c.h.b16 %v379
        %v924 = vunpack.c.l.b16 %v380
        %v925 = vunpack.c.l.b16 %v381
        %v926 = vunpack.c.h.b16 %v381
        %v927 = vunpack.c.l.b16 %v382
        %v928 = vunpack.c.h.b16 %v382
        %v929 = vunpack.c.l.b16 %v383
        %v930 = vunpack.c.h.b16 %v383
        %v931 = vunpack.c.l.b16 %v384
        %v932 = vunpack.c.h.b16 %v384
        %v933 = vunpack.c.l.b16 %v385
        %v934 = vunpack.c.l.b16 %v386
        %v935 = vunpack.c.h.b16 %v386
        %v936 = vunpack.c.l.b16 %v387
        %v937 = vunpack.c.h.b16 %v387
        %v938 = vunpack.c.l.b16 %v388
        %v939 = vunpack.c.h.b16 %v388
        %v940 = vunpack.c.l.b16 %v389
        %v941 = vunpack.c.h.b16 %v389
        %v942 = vunpack.c.l.b16 %v390
        %v943 = vunpack.c.l.b16 %v391
        %v944 = vunpack.c.h.b16 %v391
        %v945 = vunpack.c.l.b16 %v392
        %v946 = vunpack.c.h.b16 %v392
        %v947 = vunpack.c.l.b16 %v393
        %v948 = vunpack.c.h.b16 %v393
        %v949 = vunpack.c.l.b16 %v394
        %v950 = vunpack.c.h.b16 %v394
        %v951 = vunpack.c.l.b16 %v395
        %v952 = vunpack.c.l.b16 %v396
        %v953 = vunpack.c.h.b16 %v396
        %v954 = vunpack.c.l.b16 %v397
        %v955 = vunpack.c.h.b16 %v397
        %v956 = vunpack.c.l.b16 %v398
        %v957 = vunpack.c.h.b16 %v398
        %v958 = vunpack.c.l.b16 %v399
        %v959 = vunpack.c.h.b16 %v399
        %v960 = vunpack.c.l.b16 %v400
        %v961 = vunpack.c.l.b16 %v401
        %v962 = vunpack.c.h.b16 %v401
        %v963 = vunpack.c.l.b16 %v402
        %v964 = vunpack.c.h.b16 %v402
        %v965 = vunpack.c.l.b16 %v403
        %v966 = vunpack.c.h.b16 %v403
        %v967 = vunpack.c.l.b16 %v404
        %v968 = vunpack.c.h.b16 %v404
        %v969 = vunpack.c.l.b16 %v405
        %v970 = vunpack.c.l.b16 %v406
        %v971 = vunpack.c.h.b16 %v406
        %v972 = vunpack.c.l.b16 %v407
        %v973 = vunpack.c.h.b16 %v407
        %v974 = vunpack.c.l.b16 %v408
        %v975 = vunpack.c.h.b16 %v408
        %v976 = vunpack.c.l.b16 %v409
        %v977 = vunpack.c.h.b16 %v409
        %v978 = vunpack.c.l.b16 %v410
        %v979 = vunpack.c.l.b16 %v411
        %v980 = vunpack.c.h.b16 %v411
        %v981 = vunpack.c.l.b16 %v412
        %v982 = vunpack.c.h.b16 %v412
        %v983 = vunpack.c.l.b16 %v413
        %v984 = vunpack.c.h.b16 %v413
        %v985 = vunpack.c.l.b16 %v414
        %v986 = vunpack.c.h.b16 %v414
        %v987 = vunpack.c.l.b16 %v415
        %v988 = vunpack.c.l.b16 %v416
        %v989 = vunpack.c.h.b16 %v416
        %v990 = vunpack.c.l.b16 %v417
        %v991 = vunpack.c.h.b16 %v417
        %v992 = vunpack.c.l.b16 %v418
        %v993 = vunpack.c.h.b16 %v418
        %v994 = vunpack.c.l.b16 %v419
        %v995 = vunpack.c.h.b16 %v419
        %v996 = vunpack.c.l.b16 %v420
        %v997 = vunpack.c.l.b16 %v421
        %v998 = vunpack.c.h.b16 %v421
        %v999 = vunpack.c.l.b16 %v422
        %v1000 = vunpack.c.h.b16 %v422
        %v1001 = vunpack.c.l.b16 %v423
        %v1002 = vunpack.c.h.b16 %v423
        %v1003 = vunpack.c.l.b16 %v424
        %v1004 = vunpack.c.h.b16 %v424
        %v1005 = vunpack.c.l.b16 %v425
        %v1006 = vunpack.c.l.b16 %v426
        %v1007 = vunpack.c.h.b16 %v426
        %v1008 = vunpack.c.l.b16 %v427
        %v1009 = vunpack.c.h.b16 %v427
        %v1010 = vunpack.c.l.b16 %v428
        %v1011 = vunpack.c.h.b16 %v428
        %v1012 = vunpack.c.l.b16 %v429
        %v1013 = vunpack.c.h.b16 %v429
        %v1014 = vunpack.c.l.b16 %v430
        %v1015 = vunpack.c.l.b16 %v431
        %v1016 = vunpack.c.h.b16 %v431
        %v1017 = vunpack.c.l.b16 %v432
        %v1018 = vunpack.c.h.b16 %v432
        %v1019 = vunpack.c.l.b16 %v433
        %v1020 = vunpack.c.h.b16 %v433
        %v1021 = vunpack.c.l.b16 %v434
        %v1022 = vunpack.c.h.b16 %v434
        %v1023 = vunpack.c.l.b16 %v435
        %v1024 = vunpack.c.l.b16 %v436
        %v1025 = vunpack.c.h.b16 %v436
        %v1026 = vunpack.c.l.b16 %v437
        %v1027 = vunpack.c.h.b16 %v437
        %v1028 = vunpack.c.l.b16 %v438
        %v1029 = vunpack.c.h.b16 %v438
        %v1030 = vunpack.c.l.b16 %v439
        %v1031 = vunpack.c.h.b16 %v439
        %v1032 = vunpack.c.l.b16 %v440
        %v1033 = vpack.c.b16 %v754, %v745
        %v1034 = vpack.c.b16 %v755, %v746
        %v1035 = vpack.c.b16 %v756, %v747
        %v1036 = vpack.c.b16 %v757, %v748
        %v1037 = vpack.c.b16 %v758, %v749
        %v1038 = vpack.c.b16 %v759, %v750
        %v1039 = vpack.c.b16 %v760, %v751
        %v1040 = vpack.c.b16 %v761, %v752
        %v1041 = vpack.c.b16 %v762, %v753
        %v1042 = vpack.c.b16 %v772, %v763
        %v1043 = vpack.c.b16 %v773, %v764
        %v1044 = vpack.c.b16 %v774, %v765
        %v1045 = vpack.c.b16 %v775, %v766
        %v1046 = vpack.c.b16 %v776, %v767
        %v1047 = vpack.c.b16 %v777, %v768
        %v1048 = vpack.c.b16 %v778, %v769
        %v1049 = vpack.c.b16 %v779, %v770
        %v1050 = vpack.c.b16 %v780, %v771
        %v1051 = vpack.c.b16 %v790, %v781
        %v1052 = vpack.c.b16 %v791, %v782
        %v1053 = vpack.c.b16 %v792, %v783
        %v1054 = vpack.c.b16 %v793, %v784
        %v1055 = vpack.c.b16 %v794, %v785
        %v1056 = vpack.c.b16 %v795, %v786
        %v1057 = vpack.c.b16 %v796, %v787
        %v1058 = vpack.c.b16 %v797, %v788
        %v1059 = vpack.c.b16 %v798, %v789
        %v1060 = vpack.c.b16 %v808, %v799
        %v1061 = vpack.c.b16 %v809, %v800
        %v1062 = vpack.c.b16 %v810, %v801
        %v1063 = vpack.c.b16 %v811, %v802
        %v1064 = vpack.c.b16 %v812, %v803
        %v1065 = vpack.c.b16 %v813, %v804
        %v1066 = vpack.c.b16 %v814, %v805
        %v1067 = vpack.c.b16 %v815, %v806
        %v1068 = vpack.c.b16 %v816, %v807
        %v1069 = vpack.c.b16 %v826, %v817
        %v1070 = vpack.c.b16 %v827, %v818
        %v1071 = vpack.c.b16 %v828, %v819
        %v1072 = vpack.c.b16 %v829, %v820
        %v1073 = vpack.c.b16 %v830, %v821
        %v1074 = vpack.c.b16 %v831, %v822
        %v1075 = vpack.c.b16 %v832, %v823
        %v1076 = vpack.c.b16 %v833, %v824
        %v1077 = vpack.c.b16 %v834, %v825
        %v1078 = vpack.c.b16 %v844, %v835
        %v1079 = vpack.c.b16 %v845, %v836
        %v1080 = vpack.c.b16 %v846, %v837
        %v1081 = vpack.c.b16 %v847, %v838
        %v1082 = vpack.c.b16 %v848, %v839
        %v1083 = vpack.c.b16 %v849, %v840
        %v1084 = vpack.c.b16 %v850, %v841
        %v1085 = vpack.c.b16 %v851, %v842
        %v1086 = vpack.c.b16 %v852, %v843
        %v1087 = vpack.c.b16 %v862, %v853
        %v1088 = vpack.c.b16 %v863, %v854
        %v1089 = vpack.c.b16 %v864, %v855
        %v1090 = vpack.c.b16 %v865, %v856
        %v1091 = vpack.c.b16 %v866, %v857
        %v1092 = vpack.c.b16 %v867, %v858
        %v1093 = vpack.c.b16 %v868, %v859
        %v1094 = vpack.c.b16 %v869, %v860
        %v1095 = vpack.c.b16 %v870, %v861
        %v1096 = vpack.c.b16 %v880, %v871
        %v1097 = vpack.c.b16 %v881, %v872
        %v1098 = vpack.c.b16 %v882, %v873
        %v1099 = vpack.c.b16 %v883, %v874
        %v1100 = vpack.c.b16 %v884, %v875
        %v1101 = vpack.c.b16 %v885, %v876
        %v1102 = vpack.c.b16 %v886, %v877
        %v1103 = vpack.c.b16 %v887, %v878
        %v1104 = vpack.c.b16 %v888, %v879
        %v1105 = vpack.c.b16 %v898, %v889
        %v1106 = vpack.c.b16 %v899, %v890
        %v1107 = vpack.c.b16 %v900, %v891
        %v1108 = vpack.c.b16 %v901, %v892
        %v1109 = vpack.c.b16 %v902, %v893
        %v1110 = vpack.c.b16 %v903, %v894
        %v1111 = vpack.c.b16 %v904, %v895
        %v1112 = vpack.c.b16 %v905, %v896
        %v1113 = vpack.c.b16 %v906, %v897
        %v1114 = vpack.c.b16 %v916, %v907
        %v1115 = vpack.c.b16 %v917, %v908
        %v1116 = vpack.c.b16 %v918, %v909
        %v1117 = vpack.c.b16 %v919, %v910
        %v1118 = vpack.c.b16 %v920, %v911
        %v1119 = vpack.c.b16 %v921, %v912
        %v1120 = vpack.c.b16 %v922, %v913
        %v1121 = vpack.c.b16 %v923, %v914
        %v1122 = vpack.c.b16 %v924, %v915
        %v1123 = vpack.c.b16 %v934, %v925
        %v1124 = vpack.c.b16 %v935, %v926
        %v1125 = vpack.c.b16 %v936, %v927
        %v1126 = vpack.c.b16 %v937, %v928
        %v1127 = vpack.c.b16 %v938, %v929
        %v1128 = vpack.c.b16 %v939, %v930
        %v1129 = vpack.c.b16 %v940, %v931
        %v1130 = vpack.c.b16 %v941, %v932
        %v1131 = vpack.c.b16 %v942, %v933
        %v1132 = vpack.c.b16 %v952, %v943
        %v1133 = vpack.c.b16 %v953, %v944
        %v1134 = vpack.c.b16 %v954, %v945
        %v1135 = vpack.c.b16 %v955, %v946
        %v1136 = vpack.c.b16 %v956, %v947
        %v1137 = vpack.c.b16 %v957, %v948
        %v1138 = vpack.c.b16 %v958, %v949
        %v1139 = vpack.c.b16 %v959, %v950
        %v1140 = vpack.c.b16 %v960, %v951
        %v1141 = vpack.c.b16 %v970, %v961
        %v1142 = vpack.c.b16 %v971, %v962
        %v1143 = vpack.c.b16 %v972, %v963
        %v1144 = vpack.c.b16 %v973, %v964
        %v1145 = vpack.c.b16 %v974, %v965
        %v1146 = vpack.c.b16 %v975, %v966
        %v1147 = vpack.c.b16 %v976, %v967
        %v1148 = vpack.c.b16 %v977, %v968
        %v1149 = vpack.c.b16 %v978, %v969
        %v1150 = vpack.c.b16 %v988, %v979
        %v1151 = vpack.c.b16 %v989, %v980
        %v1152 = vpack.c.b16 %v990, %v981
        %v1153 = vpack.c.b16 %v991, %v982
        %v1154 = vpack.c.b16 %v992, %v983
        %v1155 = vpack.c.b16 %v993, %v984
        %v1156 = vpack.c.b16 %v994, %v985
        %v1157 = vpack.c.b16 %v995, %v986
        %v1158 = vpack.c.b16 %v996, %v987
        %v1159 = vpack.c.b16 %v1006, %v997
        %v1160 = vpack.c.b16 %v1007, %v998
        %v1161 = vpack.c.b16 %v1008, %v999
        %v1162 = vpack.c.b16 %v1009, %v1000
        %v1163 = vpack.c.b16 %v1010, %v1001
        %v1164 = vpack.c.b16 %v1011, %v1002
        %v1165 = vpack.c.b16 %v1012, %v1003
        %v1166 = vpack.c.b16 %v1013, %v1004
        %v1167 = vpack.c.b16 %v1014, %v1005
        %v1168 = vpack.c.b16 %v1024, %v1015
        %v1169 = vpack.c.b16 %v1025, %v1016
        %v1170 = vpack.c.b16 %v1026, %v1017
        %v1171 = vpack.c.b16 %v1027, %v1018
        %v1172 = vpack.c.b16 %v1028, %v1019
        %v1173 = vpack.c.b16 %v1029, %v1020
        %v1174 = vpack.c.b16 %v1030, %v1021
        %v1175 = vpack.c.b16 %v1031, %v1022
        %v1176 = vpack.c.b16 %v1032, %v1023
        %v1465 = vunpack.c.l.b16 %v441
        %v1466 = vunpack.c.l.b16 %v442
        %v1467 = vunpack.c.l.b16 %v443
        %v1468 = vunpack.c.l.b16 %v444
        %v1469 = vunpack.c.l.b16 %v445
        %v1470 = vunpack.c.l.b16 %v446
        %v1471 = vunpack.c.l.b16 %v447
        %v1472 = vunpack.c.l.b16 %v448
        %v1473 = vunpack.c.l.b16 %v449
        %v1474 = vunpack.c.l.b16 %v450
        %v1475 = vunpack.c.l.b16 %v451
        %v1476 = vunpack.c.l.b16 %v452
        %v1477 = vunpack.c.l.b16 %v453
        %v1478 = vunpack.c.l.b16 %v454
        %v1479 = vunpack.c.l.b16 %v455
        %v1480 = vunpack.c.l.b16 %v456
        %v1481 = vunpack.c.l.b16 %v457
        %v1482 = vunpack.c.l.b16 %v458
        %v1483 = vunpack.c.l.b16 %v459
        %v1484 = vunpack.c.l.b16 %v460
        %v1485 = vunpack.c.l.b16 %v461
        %v1486 = vunpack.c.l.b16 %v462
        %v1487 = vunpack.c.l.b16 %v463
        %v1488 = vunpack.c.l.b16 %v464
        %v1489 = vunpack.c.l.b16 %v465
        %v1490 = vunpack.c.l.b16 %v466
        %v1491 = vunpack.c.l.b16 %v467
        %v1492 = vunpack.c.l.b16 %v468
        %v1493 = vunpack.c.l.b16 %v469
        %v1494 = vunpack.c.l.b16 %v470
        %v1495 = vunpack.c.l.b16 %v471
        %v1496 = vunpack.c.l.b16 %v472
        %v1497 = vunpack.c.l.b16 %v473
        %v1498 = vunpack.c.l.b16 %v474
        %v1499 = vunpack.c.l.b16 %v475
        %v1500 = vunpack.c.l.b16 %v476
        %v1501 = vunpack.c.l.b16 %v477
        %v1502 = vunpack.c.l.b16 %v478
        %v1503 = vunpack.c.l.b16 %v479
        %v1504 = vunpack.c.l.b16 %v480
        %v1505 = vunpack.c.l.b16 %v481
        %v1506 = vunpack.c.l.b16 %v482
        %v1507 = vunpack.c.l.b16 %v483
        %v1508 = vunpack.c.l.b16 %v484
        %v1509 = vunpack.c.l.b16 %v485
        %v1510 = vunpack.c.l.b16 %v486
        %v1511 = vunpack.c.l.b16 %v487
        %v1512 = vunpack.c.l.b16 %v488
        %v1513 = vunpack.c.l.b16 %v489
        %v1514 = vunpack.c.l.b16 %v490
        %v1515 = vunpack.c.l.b16 %v491
        %v1516 = vunpack.c.l.b16 %v492
        %v1517 = vunpack.c.l.b16 %v493
        %v1518 = vunpack.c.l.b16 %v494
        %v1519 = vunpack.c.l.b16 %v495
        %v1520 = vunpack.c.l.b16 %v496
        %v1521 = vunpack.c.l.b16 %v497
        %v1522 = vunpack.c.l.b16 %v498
        %v1523 = vunpack.c.l.b16 %v499
        %v1524 = vunpack.c.l.b16 %v500
        %v1525 = vunpack.c.l.b16 %v501
        %v1526 = vunpack.c.l.b16 %v502
        %v1527 = vunpack.c.l.b16 %v503
        %v1528 = vunpack.c.l.b16 %v504
        %v1529 = vunpack.c.l.b16 %v505
        %v1530 = vunpack.c.l.b16 %v506
        %v1531 = vunpack.c.l.b16 %v507
        %v1532 = vunpack.c.l.b16 %v508
        %v1533 = vunpack.c.l.b16 %v509
        %v1534 = vunpack.c.l.b16 %v510
        %v1535 = vunpack.c.l.b16 %v511
        %v1536 = vunpack.c.l.b16 %v512
        %v1537 = vunpack.c.l.b16 %v513
        %v1538 = vunpack.c.l.b16 %v514
        %v1539 = vunpack.c.l.b16 %v515
        %v1540 = vunpack.c.l.b16 %v516
        %v1541 = vunpack.c.l.b16 %v517
        %v1542 = vunpack.c.l.b16 %v518
        %v1543 = vunpack.c.l.b16 %v519
        %v1544 = vunpack.c.l.b16 %v520
        %v1545 = vunpack.c.l.b16 %v521
        %v1546 = vunpack.c.l.b16 %v522
        %v1547 = vunpack.c.l.b16 %v523
        %v1548 = vunpack.c.l.b16 %v524
        %v1549 = vunpack.c.l.b16 %v525
        %v1550 = vunpack.c.l.b16 %v526
        %v1551 = vunpack.c.l.b16 %v527
        %v1552 = vunpack.c.l.b16 %v528
        %v1553 = vunpack.c.l.b16 %v529
        %v1554 = vunpack.c.l.b16 %v530
        %v1555 = vunpack.c.l.b16 %v531
        %v1556 = vunpack.c.l.b16 %v532
        %v1557 = vunpack.c.l.b16 %v533
        %v1558 = vunpack.c.l.b16 %v534
        %v1559 = vunpack.c.l.b16 %v535
        %v1560 = vunpack.c.l.b16 %v536
        %v1561 = vunpack.c.l.b16 %v537
        %v1562 = vunpack.c.l.b16 %v538
        %v1563 = vunpack.c.l.b16 %v539
        %v1564 = vunpack.c.l.b16 %v540
        %v1565 = vunpack.c.l.b16 %v541
        %v1566 = vunpack.c.l.b16 %v542
        %v1567 = vunpack.c.l.b16 %v543
        %v1568 = vunpack.c.l.b16 %v544
        %v1569 = vunpack.c.l.b16 %v545
        %v1570 = vunpack.c.l.b16 %v546
        %v1571 = vunpack.c.l.b16 %v547
        %v1572 = vunpack.c.l.b16 %v548
        %v1573 = vunpack.c.l.b16 %v549
        %v1574 = vunpack.c.l.b16 %v550
        %v1575 = vunpack.c.l.b16 %v551
        %v1576 = vunpack.c.l.b16 %v552
        %v1577 = vunpack.c.l.b16 %v553
        %v1578 = vunpack.c.l.b16 %v554
        %v1579 = vunpack.c.l.b16 %v555
        %v1580 = vunpack.c.l.b16 %v556
        %v1581 = vunpack.c.l.b16 %v557
        %v1582 = vunpack.c.l.b16 %v558
        %v1583 = vunpack.c.l.b16 %v559
        %v1584 = vunpack.c.l.b16 %v560
        %v1585 = vunpack.c.l.b16 %v561
        %v1586 = vunpack.c.l.b16 %v562
        %v1587 = vunpack.c.l.b16 %v563
        %v1588 = vunpack.c.l.b16 %v564
        %v1589 = vunpack.c.l.b16 %v565
        %v1590 = vunpack.c.l.b16 %v566
        %v1591 = vunpack.c.l.b16 %v567
        %v1592 = vunpack.c.l.b16 %v568
        %v1593 = vunpack.c.l.b16 %v569
        %v1594 = vunpack.c.l.b16 %v570
        %v1595 = vunpack.c.l.b16 %v571
        %v1596 = vunpack.c.l.b16 %v572
        %v1597 = vunpack.c.l.b16 %v573
        %v1598 = vunpack.c.l.b16 %v574
        %v1599 = vunpack.c.l.b16 %v575
        %v1600 = vunpack.c.l.b16 %v576
        %v1601 = vunpack.c.l.b16 %v577
        %v1602 = vunpack.c.l.b16 %v578
        %v1603 = vunpack.c.l.b16 %v579
        %v1604 = vunpack.c.l.b16 %v580
        %v1605 = vunpack.c.l.b16 %v581
        %v1606 = vunpack.c.l.b16 %v582
        %v1607 = vunpack.c.l.b16 %v583
        %v1608 = vunpack.c.l.b16 %v584
        %v1609 = vpack.c.b16 %v1466, %v1465
        %v1610 = vpack.c.b16 %v1468, %v1467
        %v1611 = vpack.c.b16 %v1470, %v1469
        %v1612 = vpack.c.b16 %v1472, %v1471
        %v1613 = vpack.c.b16 %v1474, %v1473
        %v1614 = vpack.c.b16 %v1476, %v1475
        %v1615 = vpack.c.b16 %v1478, %v1477
        %v1616 = vpack.c.b16 %v1480, %v1479
        %v1617 = vpack.c.b16 %v1482, %v1481
        %v1618 = vpack.c.b16 %v1484, %v1483
        %v1619 = vpack.c.b16 %v1486, %v1485
        %v1620 = vpack.c.b16 %v1488, %v1487
        %v1621 = vpack.c.b16 %v1490, %v1489
        %v1622 = vpack.c.b16 %v1492, %v1491
        %v1623 = vpack.c.b16 %v1494, %v1493
        %v1624 = vpack.c.b16 %v1496, %v1495
        %v1625 = vpack.c.b16 %v1498, %v1497
        %v1626 = vpack.c.b16 %v1500, %v1499
        %v1627 = vpack.c.b16 %v1502, %v1501
        %v1628 = vpack.c.b16 %v1504, %v1503
        %v1629 = vpack.c.b16 %v1506, %v1505
        %v1630 = vpack.c.b16 %v1508, %v1507
        %v1631 = vpack.c.b16 %v1510, %v1509
        %v1632 = vpack.c.b16 %v1512, %v1511
        %v1633 = vpack.c.b16 %v1514, %v1513
        %v1634 = vpack.c.b16 %v1516, %v1515
        %v1635 = vpack.c.b16 %v1518, %v1517
        %v1636 = vpack.c.b16 %v1520, %v1519
        %v1637 = vpack.c.b16 %v1522, %v1521
        %v1638 = vpack.c.b16 %v1524, %v1523
        %v1639 = vpack.c.b16 %v1526, %v1525
        %v1640 = vpack.c.b16 %v1528, %v1527
        %v1641 = vpack.c.b16 %v1530, %v1529
        %v1642 = vpack.c.b16 %v1532, %v1531
        %v1643 = vpack.c.b16 %v1534, %v1533
        %v1644 = vpack.c.b16 %v1536, %v1535
        %v1645 = vpack.c.b16 %v1538, %v1537
        %v1646 = vpack.c.b16 %v1540, %v1539
        %v1647 = vpack.c.b16 %v1542, %v1541
        %v1648 = vpack.c.b16 %v1544, %v1543
        %v1649 = vpack.c.b16 %v1546, %v1545
        %v1650 = vpack.c.b16 %v1548, %v1547
        %v1651 = vpack.c.b16 %v1550, %v1549
        %v1652 = vpack.c.b16 %v1552, %v1551
        %v1653 = vpack.c.b16 %v1554, %v1553
        %v1654 = vpack.c.b16 %v1556, %v1555
        %v1655 = vpack.c.b16 %v1558, %v1557
        %v1656 = vpack.c.b16 %v1560, %v1559
        %v1657 = vpack.c.b16 %v1562, %v1561
        %v1658 = vpack.c.b16 %v1564, %v1563
        %v1659 = vpack.c.b16 %v1566, %v1565
        %v1660 = vpack.c.b16 %v1568, %v1567
        %v1661 = vpack.c.b16 %v1570, %v1569
        %v1662 = vpack.c.b16 %v1572, %v1571
        %v1663 = vpack.c.b16 %v1574, %v1573
        %v1664 = vpack.c.b16 %v1576, %v1575
        %v1665 = vpack.c.b16 %v1578, %v1577
        %v1666 = vpack.c.b16 %v1580, %v1579
        %v1667 = vpack.c.b16 %v1582, %v1581
        %v1668 = vpack.c.b16 %v1584, %v1583
        %v1669 = vpack.c.b16 %v1586, %v1585
        %v1670 = vpack.c.b16 %v1588, %v1587
        %v1671 = vpack.c.b16 %v1590, %v1589
        %v1672 = vpack.c.b16 %v1592, %v1591
        %v1673 = vpack.c.b16 %v1594, %v1593
        %v1674 = vpack.c.b16 %v1596, %v1595
        %v1675 = vpack.c.b16 %v1598, %v1597
        %v1676 = vpack.c.b16 %v1600, %v1599
        %v1677 = vpack.c.b16 %v1602, %v1601
        %v1678 = vpack.c.b16 %v1604, %v1603
        %v1679 = vpack.c.b16 %v1606, %v1605
        %v1680 = vpack.c.b16 %v1608, %v1607
        %1753 = vmatprep.subr.bf16.mxu0 0
        %1754 = vmatpush1.bf16.msra.mxu0 %v1609
        %1755 = vmatprep.subr.bf16.mxu0 0
        %1756 = vmatpush1.bf16.msra.mxu0 %v1610
        %1757 = vmatprep.subr.bf16.mxu0 0
        %1758 = vmatpush1.bf16.msra.mxu0 %v1611
        %1759 = vmatprep.subr.bf16.mxu0 0
        %1760 = vmatpush1.bf16.msra.mxu0 %v1612
        %1761 = vmatprep.subr.bf16.mxu0 0
        %1762 = vmatpush1.bf16.msra.mxu0 %v1613
        %1763 = vmatprep.subr.bf16.mxu0 0
        %1764 = vmatpush1.bf16.msra.mxu0 %v1614
        %1765 = vmatprep.subr.bf16.mxu0 0
        %1766 = vmatpush1.bf16.msra.mxu0 %v1615
        %1767 = vmatprep.subr.bf16.mxu0 0
        %1768 = vmatpush1.bf16.msra.mxu0 %v1616
        %1769 = vmatprep.subr.bf16.mxu0 0
        %1770 = vmatpush1.bf16.msra.mxu0 %v1617
        %1771 = vmatprep.subr.bf16.mxu0 0
        %1772 = vmatpush1.bf16.msra.mxu0 %v1618
        %1773 = vmatprep.subr.bf16.mxu0 0
        %1774 = vmatpush1.bf16.msra.mxu0 %v1619
        %1775 = vmatprep.subr.bf16.mxu0 0
        %1776 = vmatpush1.bf16.msra.mxu0 %v1620
        %1777 = vmatprep.subr.bf16.mxu0 0
        %1778 = vmatpush1.bf16.msra.mxu0 %v1621
        %1779 = vmatprep.subr.bf16.mxu0 0
        %1780 = vmatpush1.bf16.msra.mxu0 %v1622
        %1781 = vmatprep.subr.bf16.mxu0 0
        %1782 = vmatpush1.bf16.msra.mxu0 %v1623
        %1783 = vmatprep.subr.bf16.mxu0 0
        %1784 = vmatpush1.bf16.msra.mxu0 %v1624
        %1785 = vmatprep.mubr.bf16.mxu0 %v1034
        %1786 = vmatmul.mubr.bf16.gmra.mrb[0].mxu0 %v1033
        %v1787 = vpop.f32.mrb[0].mxu0
        %v1788 = vadd.f32 0.0, %v1787
        %v1789 = vpop.f32.mrb[0].mxu0
        %v1790 = vpop.f32.mrb[0].mxu0
        %v1791 = vadd.f32 0.0, %v1790
        %v1792 = vpop.f32.mrb[0].mxu0
        %1793 = vmatprep.mubr.bf16.mxu0 %v1043
        %1794 = vmatmul.mubr.bf16.gmra.mrb[0].mxu0 %v1042
        %v1795 = vpop.f32.mrb[0].mxu0
        %v1796 = vadd.f32 0.0, %v1795
        %v1797 = vpop.f32.mrb[0].mxu0
        %v1798 = vpop.f32.mrb[0].mxu0
        %v1799 = vadd.f32 0.0, %v1798
        %v1800 = vpop.f32.mrb[0].mxu0
        %1801 = vmatprep.mubr.bf16.mxu0 %v1052
        %1802 = vmatmul.mubr.bf16.gmra.mrb[0].mxu0 %v1051
        %v1803 = vpop.f32.mrb[0].mxu0
        %v1804 = vadd.f32 0.0, %v1803
        %v1805 = vpop.f32.mrb[0].mxu0
        %v1806 = vpop.f32.mrb[0].mxu0
        %v1807 = vadd.f32 0.0, %v1806
        %v1808 = vpop.f32.mrb[0].mxu0
        %1809 = vmatprep.mubr.bf16.mxu0 %v1061
        %1810 = vmatmul.mubr.bf16.gmra.mrb[0].mxu0 %v1060
        %v1811 = vpop.f32.mrb[0].mxu0
        %v1812 = vadd.f32 0.0, %v1811
        %v1813 = vpop.f32.mrb[0].mxu0
        %v1814 = vpop.f32.mrb[0].mxu0
        %v1815 = vadd.f32 0.0, %v1814
        %v1816 = vpop.f32.mrb[0].mxu0
        %1817 = vmatprep.mubr.bf16.mxu0 %v1070
        %1818 = vmatmul.mubr.bf16.gmra.mrb[0].mxu0 %v1069
        %v1819 = vpop.f32.mrb[0].mxu0
        %v1820 = vadd.f32 0.0, %v1819
        %v1821 = vpop.f32.mrb[0].mxu0
        %v1822 = vpop.f32.mrb[0].mxu0
        %v1823 = vadd.f32 0.0, %v1822
        %v1824 = vpop.f32.mrb[0].mxu0
        %1825 = vmatprep.mubr.bf16.mxu0 %v1079
        %1826 = vmatmul.mubr.bf16.gmra.mrb[0].mxu0 %v1078
        %v1827 = vpop.f32.mrb[0].mxu0
        %v1828 = vadd.f32 0.0, %v1827
        %v1829 = vpop.f32.mrb[0].mxu0
        %v1830 = vpop.f32.mrb[0].mxu0
        %v1831 = vadd.f32 0.0, %v1830
        %v1832 = vpop.f32.mrb[0].mxu0
        %1833 = vmatprep.mubr.bf16.mxu0 %v1088
        %1834 = vmatmul.mubr.bf16.gmra.mrb[0].mxu0 %v1087
        %v1835 = vpop.f32.mrb[0].mxu0
        %v1836 = vadd.f32 0.0, %v1835
        %v1837 = vpop.f32.mrb[0].mxu0
        %v1838 = vpop.f32.mrb[0].mxu0
        %v1839 = vadd.f32 0.0, %v1838
        %v1840 = vpop.f32.mrb[0].mxu0
        %1841 = vmatprep.mubr.bf16.mxu0 %v1097
        %1842 = vmatmul.mubr.bf16.gmra.mrb[0].mxu0 %v1096
        %v1843 = vpop.f32.mrb[0].mxu0
        %v1844 = vadd.f32 0.0, %v1843
        %v1845 = vpop.f32.mrb[0].mxu0
        %v1846 = vpop.f32.mrb[0].mxu0
        %v1847 = vadd.f32 0.0, %v1846
        %v1848 = vpop.f32.mrb[0].mxu0
        %1849 = vmatprep.mubr.bf16.mxu0 %v1106
        %1850 = vmatmul.mubr.bf16.gmra.mrb[0].mxu0 %v1105
        %v1851 = vpop.f32.mrb[0].mxu0
        %v1852 = vadd.f32 0.0, %v1851
        %v1853 = vpop.f32.mrb[0].mxu0
        %v1854 = vpop.f32.mrb[0].mxu0
        %v1855 = vadd.f32 0.0, %v1854
        %v1856 = vpop.f32.mrb[0].mxu0
        %1857 = vmatprep.mubr.bf16.mxu0 %v1115
        %1858 = vmatmul.mubr.bf16.gmra.mrb[0].mxu0 %v1114
        %v1859 = vpop.f32.mrb[0].mxu0
        %v1860 = vadd.f32 0.0, %v1859
        %v1861 = vpop.f32.mrb[0].mxu0
        %v1862 = vpop.f32.mrb[0].mxu0
        %v1863 = vadd.f32 0.0, %v1862
        %v1864 = vpop.f32.mrb[0].mxu0
        %1865 = vmatprep.mubr.bf16.mxu0 %v1124
        %1866 = vmatmul.mubr.bf16.gmra.mrb[0].mxu0 %v1123
        %v1867 = vpop.f32.mrb[0].mxu0
        %v1868 = vadd.f32 0.0, %v1867
        %v1869 = vpop.f32.mrb[0].mxu0
        %v1870 = vpop.f32.mrb[0].mxu0
        %v1871 = vadd.f32 0.0, %v1870
        %v1872 = vpop.f32.mrb[0].mxu0
        %1873 = vmatprep.mubr.bf16.mxu0 %v1133
        %1874 = vmatmul.mubr.bf16.gmra.mrb[0].mxu0 %v1132
        %v1875 = vpop.f32.mrb[0].mxu0
        %v1876 = vadd.f32 0.0, %v1875
        %v1877 = vpop.f32.mrb[0].mxu0
        %v1878 = vpop.f32.mrb[0].mxu0
        %v1879 = vadd.f32 0.0, %v1878
        %v1880 = vpop.f32.mrb[0].mxu0
        %1881 = vmatprep.mubr.bf16.mxu0 %v1142
        %1882 = vmatmul.mubr.bf16.gmra.mrb[0].mxu0 %v1141
        %v1883 = vpop.f32.mrb[0].mxu0
        %v1884 = vadd.f32 0.0, %v1883
        %v1885 = vpop.f32.mrb[0].mxu0
        %v1886 = vpop.f32.mrb[0].mxu0
        %v1887 = vadd.f32 0.0, %v1886
        %v1888 = vpop.f32.mrb[0].mxu0
        %1889 = vmatprep.mubr.bf16.mxu0 %v1151
        %1890 = vmatmul.mubr.bf16.gmra.mrb[0].mxu0 %v1150
        %v1891 = vpop.f32.mrb[0].mxu0
        %v1892 = vadd.f32 0.0, %v1891
        %v1893 = vpop.f32.mrb[0].mxu0
        %v1894 = vpop.f32.mrb[0].mxu0
        %v1895 = vadd.f32 0.0, %v1894
        %v1896 = vpop.f32.mrb[0].mxu0
        %1897 = vmatprep.mubr.bf16.mxu0 %v1160
        %1898 = vmatmul.mubr.bf16.gmra.mrb[0].mxu0 %v1159
        %v1899 = vpop.f32.mrb[0].mxu0
        %v1900 = vadd.f32 0.0, %v1899
        %v1901 = vpop.f32.mrb[0].mxu0
        %v1902 = vpop.f32.mrb[0].mxu0
        %v1903 = vadd.f32 0.0, %v1902
        %v1904 = vpop.f32.mrb[0].mxu0
        %1905 = vmatprep.mubr.bf16.mxu0 %v1169
        %1906 = vmatmul.mubr.bf16.gmra.mrb[0].mxu0 %v1168
        %v1907 = vpop.f32.mrb[0].mxu0
        %v1908 = vadd.f32 0.0, %v1907
        %v1909 = vpop.f32.mrb[0].mxu0
        %v1910 = vpop.f32.mrb[0].mxu0
        %v1911 = vadd.f32 0.0, %v1910
        %v1912 = vpop.f32.mrb[0].mxu0
        %1913 = vdwg.mxu0
        %1914 = vmatprep.subr.bf16.mxu0 0
        %1915 = vmatpush1.bf16.msra.mxu0 %v1625
        %1916 = vmatprep.subr.bf16.mxu0 0
        %1917 = vmatpush1.bf16.msra.mxu0 %v1626
        %1918 = vmatprep.subr.bf16.mxu0 0
        %1919 = vmatpush1.bf16.msra.mxu0 %v1627
        %1920 = vmatprep.subr.bf16.mxu0 0
        %1921 = vmatpush1.bf16.msra.mxu0 %v1628
        %1922 = vmatprep.subr.bf16.mxu0 0
        %1923 = vmatpush1.bf16.msra.mxu0 %v1629
        %1924 = vmatprep.subr.bf16.mxu0 0
        %1925 = vmatpush1.bf16.msra.mxu0 %v1630
        %1926 = vmatprep.subr.bf16.mxu0 0
        %1927 = vmatpush1.bf16.msra.mxu0 %v1631
        %1928 = vmatprep.subr.bf16.mxu0 0
        %1929 = vmatpush1.bf16.msra.mxu0 %v1632
        %1930 = vmatprep.subr.bf16.mxu0 0
        %1931 = vmatpush1.bf16.msra.mxu0 %v1633
        %1932 = vmatprep.subr.bf16.mxu0 0
        %1933 = vmatpush1.bf16.msra.mxu0 %v1634
        %1934 = vmatprep.subr.bf16.mxu0 0
        %1935 = vmatpush1.bf16.msra.mxu0 %v1635
        %1936 = vmatprep.subr.bf16.mxu0 0
        %1937 = vmatpush1.bf16.msra.mxu0 %v1636
        %1938 = vmatprep.subr.bf16.mxu0 0
        %1939 = vmatpush1.bf16.msra.mxu0 %v1637
        %1940 = vmatprep.subr.bf16.mxu0 0
        %1941 = vmatpush1.bf16.msra.mxu0 %v1638
        %1942 = vmatprep.subr.bf16.mxu0 0
        %1943 = vmatpush1.bf16.msra.mxu0 %v1639
        %1944 = vmatprep.subr.bf16.mxu0 0
        %1945 = vmatpush1.bf16.msra.mxu0 %v1640
        %1946 = vmatprep.mubr.bf16.mxu0 %v1036
        %1947 = vmatmul.mubr.bf16.gmra.mrb[0].mxu0 %v1035
        %v1948 = vpop.f32.mrb[0].mxu0
        %v1949 = vadd.f32 %v1788, %v1948
        %v1950 = vpop.f32.mrb[0].mxu0
        %v1951 = vpop.f32.mrb[0].mxu0
        %v1952 = vadd.f32 %v1791, %v1951
        %v1953 = vpop.f32.mrb[0].mxu0
        %1954 = vmatprep.mubr.bf16.mxu0 %v1045
        %1955 = vmatmul.mubr.bf16.gmra.mrb[0].mxu0 %v1044
        %v1956 = vpop.f32.mrb[0].mxu0
        %v1957 = vadd.f32 %v1796, %v1956
        %v1958 = vpop.f32.mrb[0].mxu0
        %v1959 = vpop.f32.mrb[0].mxu0
        %v1960 = vadd.f32 %v1799, %v1959
        %v1961 = vpop.f32.mrb[0].mxu0
        %1962 = vmatprep.mubr.bf16.mxu0 %v1054
        %1963 = vmatmul.mubr.bf16.gmra.mrb[0].mxu0 %v1053
        %v1964 = vpop.f32.mrb[0].mxu0
        %v1965 = vadd.f32 %v1804, %v1964
        %v1966 = vpop.f32.mrb[0].mxu0
        %v1967 = vpop.f32.mrb[0].mxu0
        %v1968 = vadd.f32 %v1807, %v1967
        %v1969 = vpop.f32.mrb[0].mxu0
        %1970 = vmatprep.mubr.bf16.mxu0 %v1063
        %1971 = vmatmul.mubr.bf16.gmra.mrb[0].mxu0 %v1062
        %v1972 = vpop.f32.mrb[0].mxu0
        %v1973 = vadd.f32 %v1812, %v1972
        %v1974 = vpop.f32.mrb[0].mxu0
        %v1975 = vpop.f32.mrb[0].mxu0
        %v1976 = vadd.f32 %v1815, %v1975
        %v1977 = vpop.f32.mrb[0].mxu0
        %1978 = vmatprep.mubr.bf16.mxu0 %v1072
        %1979 = vmatmul.mubr.bf16.gmra.mrb[0].mxu0 %v1071
        %v1980 = vpop.f32.mrb[0].mxu0
        %v1981 = vadd.f32 %v1820, %v1980
        %v1982 = vpop.f32.mrb[0].mxu0
        %v1983 = vpop.f32.mrb[0].mxu0
        %v1984 = vadd.f32 %v1823, %v1983
        %v1985 = vpop.f32.mrb[0].mxu0
        %1986 = vmatprep.mubr.bf16.mxu0 %v1081
        %1987 = vmatmul.mubr.bf16.gmra.mrb[0].mxu0 %v1080
        %v1988 = vpop.f32.mrb[0].mxu0
        %v1989 = vadd.f32 %v1828, %v1988
        %v1990 = vpop.f32.mrb[0].mxu0
        %v1991 = vpop.f32.mrb[0].mxu0
        %v1992 = vadd.f32 %v1831, %v1991
        %v1993 = vpop.f32.mrb[0].mxu0
        %1994 = vmatprep.mubr.bf16.mxu0 %v1090
        %1995 = vmatmul.mubr.bf16.gmra.mrb[0].mxu0 %v1089
        %v1996 = vpop.f32.mrb[0].mxu0
        %v1997 = vadd.f32 %v1836, %v1996
        %v1998 = vpop.f32.mrb[0].mxu0
        %v1999 = vpop.f32.mrb[0].mxu0
        %v2000 = vadd.f32 %v1839, %v1999
        %v2001 = vpop.f32.mrb[0].mxu0
        %2002 = vmatprep.mubr.bf16.mxu0 %v1099
        %2003 = vmatmul.mubr.bf16.gmra.mrb[0].mxu0 %v1098
        %v2004 = vpop.f32.mrb[0].mxu0
        %v2005 = vadd.f32 %v1844, %v2004
        %v2006 = vpop.f32.mrb[0].mxu0
        %v2007 = vpop.f32.mrb[0].mxu0
        %v2008 = vadd.f32 %v1847, %v2007
        %v2009 = vpop.f32.mrb[0].mxu0
        %2010 = vmatprep.mubr.bf16.mxu0 %v1108
        %2011 = vmatmul.mubr.bf16.gmra.mrb[0].mxu0 %v1107
        %v2012 = vpop.f32.mrb[0].mxu0
        %v2013 = vadd.f32 %v1852, %v2012
        %v2014 = vpop.f32.mrb[0].mxu0
        %v2015 = vpop.f32.mrb[0].mxu0
        %v2016 = vadd.f32 %v1855, %v2015
        %v2017 = vpop.f32.mrb[0].mxu0
        %2018 = vmatprep.mubr.bf16.mxu0 %v1117
        %2019 = vmatmul.mubr.bf16.gmra.mrb[0].mxu0 %v1116
        %v2020 = vpop.f32.mrb[0].mxu0
        %v2021 = vadd.f32 %v1860, %v2020
        %v2022 = vpop.f32.mrb[0].mxu0
        %v2023 = vpop.f32.mrb[0].mxu0
        %v2024 = vadd.f32 %v1863, %v2023
        %v2025 = vpop.f32.mrb[0].mxu0
        %2026 = vmatprep.mubr.bf16.mxu0 %v1126
        %2027 = vmatmul.mubr.bf16.gmra.mrb[0].mxu0 %v1125
        %v2028 = vpop.f32.mrb[0].mxu0
        %v2029 = vadd.f32 %v1868, %v2028
        %v2030 = vpop.f32.mrb[0].mxu0
        %v2031 = vpop.f32.mrb[0].mxu0
        %v2032 = vadd.f32 %v1871, %v2031
        %v2033 = vpop.f32.mrb[0].mxu0
        %2034 = vmatprep.mubr.bf16.mxu0 %v1135
        %2035 = vmatmul.mubr.bf16.gmra.mrb[0].mxu0 %v1134
        %v2036 = vpop.f32.mrb[0].mxu0
        %v2037 = vadd.f32 %v1876, %v2036
        %v2038 = vpop.f32.mrb[0].mxu0
        %v2039 = vpop.f32.mrb[0].mxu0
        %v2040 = vadd.f32 %v1879, %v2039
        %v2041 = vpop.f32.mrb[0].mxu0
        %2042 = vmatprep.mubr.bf16.mxu0 %v1144
        %2043 = vmatmul.mubr.bf16.gmra.mrb[0].mxu0 %v1143
        %v2044 = vpop.f32.mrb[0].mxu0
        %v2045 = vadd.f32 %v1884, %v2044
        %v2046 = vpop.f32.mrb[0].mxu0
        %v2047 = vpop.f32.mrb[0].mxu0
        %v2048 = vadd.f32 %v1887, %v2047
        %v2049 = vpop.f32.mrb[0].mxu0
        %2050 = vmatprep.mubr.bf16.mxu0 %v1153
        %2051 = vmatmul.mubr.bf16.gmra.mrb[0].mxu0 %v1152
        %v2052 = vpop.f32.mrb[0].mxu0
        %v2053 = vadd.f32 %v1892, %v2052
        %v2054 = vpop.f32.mrb[0].mxu0
        %v2055 = vpop.f32.mrb[0].mxu0
        %v2056 = vadd.f32 %v1895, %v2055
        %v2057 = vpop.f32.mrb[0].mxu0
        %2058 = vmatprep.mubr.bf16.mxu0 %v1162
        %2059 = vmatmul.mubr.bf16.gmra.mrb[0].mxu0 %v1161
        %v2060 = vpop.f32.mrb[0].mxu0
        %v2061 = vadd.f32 %v1900, %v2060
        %v2062 = vpop.f32.mrb[0].mxu0
        %v2063 = vpop.f32.mrb[0].mxu0
        %v2064 = vadd.f32 %v1903, %v2063
        %v2065 = vpop.f32.mrb[0].mxu0
        %2066 = vmatprep.mubr.bf16.mxu0 %v1171
        %2067 = vmatmul.mubr.bf16.gmra.mrb[0].mxu0 %v1170
        %v2068 = vpop.f32.mrb[0].mxu0
        %v2069 = vadd.f32 %v1908, %v2068
        %v2070 = vpop.f32.mrb[0].mxu0
        %v2071 = vpop.f32.mrb[0].mxu0
        %v2072 = vadd.f32 %v1911, %v2071
        %v2073 = vpop.f32.mrb[0].mxu0
        %2074 = vdwg.mxu0
        %2075 = vmatprep.subr.bf16.mxu0 0
        %2076 = vmatpush1.bf16.msra.mxu0 %v1641
        %2077 = vmatprep.subr.bf16.mxu0 0
        %2078 = vmatpush1.bf16.msra.mxu0 %v1642
        %2079 = vmatprep.subr.bf16.mxu0 0
        %2080 = vmatpush1.bf16.msra.mxu0 %v1643
        %2081 = vmatprep.subr.bf16.mxu0 0
        %2082 = vmatpush1.bf16.msra.mxu0 %v1644
        %2083 = vmatprep.subr.bf16.mxu0 0
        %2084 = vmatpush1.bf16.msra.mxu0 %v1645
        %2085 = vmatprep.subr.bf16.mxu0 0
        %2086 = vmatpush1.bf16.msra.mxu0 %v1646
        %2087 = vmatprep.subr.bf16.mxu0 0
        %2088 = vmatpush1.bf16.msra.mxu0 %v1647
        %2089 = vmatprep.subr.bf16.mxu0 0
        %2090 = vmatpush1.bf16.msra.mxu0 %v1648
        %2091 = vmatprep.subr.bf16.mxu0 0
        %2092 = vmatpush1.bf16.msra.mxu0 %v1649
        %2093 = vmatprep.subr.bf16.mxu0 0
        %2094 = vmatpush1.bf16.msra.mxu0 %v1650
        %2095 = vmatprep.subr.bf16.mxu0 0
        %2096 = vmatpush1.bf16.msra.mxu0 %v1651
        %2097 = vmatprep.subr.bf16.mxu0 0
        %2098 = vmatpush1.bf16.msra.mxu0 %v1652
        %2099 = vmatprep.subr.bf16.mxu0 0
        %2100 = vmatpush1.bf16.msra.mxu0 %v1653
        %2101 = vmatprep.subr.bf16.mxu0 0
        %2102 = vmatpush1.bf16.msra.mxu0 %v1654
        %2103 = vmatprep.subr.bf16.mxu0 0
        %2104 = vmatpush1.bf16.msra.mxu0 %v1655
        %2105 = vmatprep.subr.bf16.mxu0 0
        %2106 = vmatpush1.bf16.msra.mxu0 %v1656
        %2107 = vmatprep.mubr.bf16.mxu0 %v1038
        %2108 = vmatmul.mubr.bf16.gmra.mrb[0].mxu0 %v1037
        %v2109 = vpop.f32.mrb[0].mxu0
        %v2110 = vadd.f32 %v1949, %v2109
        %v2111 = vpop.f32.mrb[0].mxu0
        %v2112 = vpop.f32.mrb[0].mxu0
        %v2113 = vadd.f32 %v1952, %v2112
        %v2114 = vpop.f32.mrb[0].mxu0
        %2115 = vmatprep.mubr.bf16.mxu0 %v1047
        %2116 = vmatmul.mubr.bf16.gmra.mrb[0].mxu0 %v1046
        %v2117 = vpop.f32.mrb[0].mxu0
        %v2118 = vadd.f32 %v1957, %v2117
        %v2119 = vpop.f32.mrb[0].mxu0
        %v2120 = vpop.f32.mrb[0].mxu0
        %v2121 = vadd.f32 %v1960, %v2120
        %v2122 = vpop.f32.mrb[0].mxu0
        %2123 = vmatprep.mubr.bf16.mxu0 %v1056
        %2124 = vmatmul.mubr.bf16.gmra.mrb[0].mxu0 %v1055
        %v2125 = vpop.f32.mrb[0].mxu0
        %v2126 = vadd.f32 %v1965, %v2125
        %v2127 = vpop.f32.mrb[0].mxu0
        %v2128 = vpop.f32.mrb[0].mxu0
        %v2129 = vadd.f32 %v1968, %v2128
        %v2130 = vpop.f32.mrb[0].mxu0
        %2131 = vmatprep.mubr.bf16.mxu0 %v1065
        %2132 = vmatmul.mubr.bf16.gmra.mrb[0].mxu0 %v1064
        %v2133 = vpop.f32.mrb[0].mxu0
        %v2134 = vadd.f32 %v1973, %v2133
        %v2135 = vpop.f32.mrb[0].mxu0
        %v2136 = vpop.f32.mrb[0].mxu0
        %v2137 = vadd.f32 %v1976, %v2136
        %v2138 = vpop.f32.mrb[0].mxu0
        %2139 = vmatprep.mubr.bf16.mxu0 %v1074
        %2140 = vmatmul.mubr.bf16.gmra.mrb[0].mxu0 %v1073
        %v2141 = vpop.f32.mrb[0].mxu0
        %v2142 = vadd.f32 %v1981, %v2141
        %v2143 = vpop.f32.mrb[0].mxu0
        %v2144 = vpop.f32.mrb[0].mxu0
        %v2145 = vadd.f32 %v1984, %v2144
        %v2146 = vpop.f32.mrb[0].mxu0
        %2147 = vmatprep.mubr.bf16.mxu0 %v1083
        %2148 = vmatmul.mubr.bf16.gmra.mrb[0].mxu0 %v1082
        %v2149 = vpop.f32.mrb[0].mxu0
        %v2150 = vadd.f32 %v1989, %v2149
        %v2151 = vpop.f32.mrb[0].mxu0
        %v2152 = vpop.f32.mrb[0].mxu0
        %v2153 = vadd.f32 %v1992, %v2152
        %v2154 = vpop.f32.mrb[0].mxu0
        %2155 = vmatprep.mubr.bf16.mxu0 %v1092
        %2156 = vmatmul.mubr.bf16.gmra.mrb[0].mxu0 %v1091
        %v2157 = vpop.f32.mrb[0].mxu0
        %v2158 = vadd.f32 %v1997, %v2157
        %v2159 = vpop.f32.mrb[0].mxu0
        %v2160 = vpop.f32.mrb[0].mxu0
        %v2161 = vadd.f32 %v2000, %v2160
        %v2162 = vpop.f32.mrb[0].mxu0
        %2163 = vmatprep.mubr.bf16.mxu0 %v1101
        %2164 = vmatmul.mubr.bf16.gmra.mrb[0].mxu0 %v1100
        %v2165 = vpop.f32.mrb[0].mxu0
        %v2166 = vadd.f32 %v2005, %v2165
        %v2167 = vpop.f32.mrb[0].mxu0
        %v2168 = vpop.f32.mrb[0].mxu0
        %v2169 = vadd.f32 %v2008, %v2168
        %v2170 = vpop.f32.mrb[0].mxu0
        %2171 = vmatprep.mubr.bf16.mxu0 %v1110
        %2172 = vmatmul.mubr.bf16.gmra.mrb[0].mxu0 %v1109
        %v2173 = vpop.f32.mrb[0].mxu0
        %v2174 = vadd.f32 %v2013, %v2173
        %v2175 = vpop.f32.mrb[0].mxu0
        %v2176 = vpop.f32.mrb[0].mxu0
        %v2177 = vadd.f32 %v2016, %v2176
        %v2178 = vpop.f32.mrb[0].mxu0
        %2179 = vmatprep.mubr.bf16.mxu0 %v1119
        %2180 = vmatmul.mubr.bf16.gmra.mrb[0].mxu0 %v1118
        %v2181 = vpop.f32.mrb[0].mxu0
        %v2182 = vadd.f32 %v2021, %v2181
        %v2183 = vpop.f32.mrb[0].mxu0
        %v2184 = vpop.f32.mrb[0].mxu0
        %v2185 = vadd.f32 %v2024, %v2184
        %v2186 = vpop.f32.mrb[0].mxu0
        %2187 = vmatprep.mubr.bf16.mxu0 %v1128
        %2188 = vmatmul.mubr.bf16.gmra.mrb[0].mxu0 %v1127
        %v2189 = vpop.f32.mrb[0].mxu0
        %v2190 = vadd.f32 %v2029, %v2189
        %v2191 = vpop.f32.mrb[0].mxu0
        %v2192 = vpop.f32.mrb[0].mxu0
        %v2193 = vadd.f32 %v2032, %v2192
        %v2194 = vpop.f32.mrb[0].mxu0
        %2195 = vmatprep.mubr.bf16.mxu0 %v1137
        %2196 = vmatmul.mubr.bf16.gmra.mrb[0].mxu0 %v1136
        %v2197 = vpop.f32.mrb[0].mxu0
        %v2198 = vadd.f32 %v2037, %v2197
        %v2199 = vpop.f32.mrb[0].mxu0
        %v2200 = vpop.f32.mrb[0].mxu0
        %v2201 = vadd.f32 %v2040, %v2200
        %v2202 = vpop.f32.mrb[0].mxu0
        %2203 = vmatprep.mubr.bf16.mxu0 %v1146
        %2204 = vmatmul.mubr.bf16.gmra.mrb[0].mxu0 %v1145
        %v2205 = vpop.f32.mrb[0].mxu0
        %v2206 = vadd.f32 %v2045, %v2205
        %v2207 = vpop.f32.mrb[0].mxu0
        %v2208 = vpop.f32.mrb[0].mxu0
        %v2209 = vadd.f32 %v2048, %v2208
        %v2210 = vpop.f32.mrb[0].mxu0
        %2211 = vmatprep.mubr.bf16.mxu0 %v1155
        %2212 = vmatmul.mubr.bf16.gmra.mrb[0].mxu0 %v1154
        %v2213 = vpop.f32.mrb[0].mxu0
        %v2214 = vadd.f32 %v2053, %v2213
        %v2215 = vpop.f32.mrb[0].mxu0
        %v2216 = vpop.f32.mrb[0].mxu0
        %v2217 = vadd.f32 %v2056, %v2216
        %v2218 = vpop.f32.mrb[0].mxu0
        %2219 = vmatprep.mubr.bf16.mxu0 %v1164
        %2220 = vmatmul.mubr.bf16.gmra.mrb[0].mxu0 %v1163
        %v2221 = vpop.f32.mrb[0].mxu0
        %v2222 = vadd.f32 %v2061, %v2221
        %v2223 = vpop.f32.mrb[0].mxu0
        %v2224 = vpop.f32.mrb[0].mxu0
        %v2225 = vadd.f32 %v2064, %v2224
        %v2226 = vpop.f32.mrb[0].mxu0
        %2227 = vmatprep.mubr.bf16.mxu0 %v1173
        %2228 = vmatmul.mubr.bf16.gmra.mrb[0].mxu0 %v1172
        %v2229 = vpop.f32.mrb[0].mxu0
        %v2230 = vadd.f32 %v2069, %v2229
        %v2231 = vpop.f32.mrb[0].mxu0
        %v2232 = vpop.f32.mrb[0].mxu0
        %v2233 = vadd.f32 %v2072, %v2232
        %v2234 = vpop.f32.mrb[0].mxu0
        %2235 = vdwg.mxu0
        %2236 = vmatprep.subr.bf16.mxu0 0
        %2237 = vmatpush1.bf16.msra.mxu0 %v1657
        %2238 = vmatprep.subr.bf16.mxu0 0
        %2239 = vmatpush1.bf16.msra.mxu0 %v1658
        %2240 = vmatprep.subr.bf16.mxu0 0
        %2241 = vmatpush1.bf16.msra.mxu0 %v1659
        %2242 = vmatprep.subr.bf16.mxu0 0
        %2243 = vmatpush1.bf16.msra.mxu0 %v1660
        %2244 = vmatprep.subr.bf16.mxu0 0
        %2245 = vmatpush1.bf16.msra.mxu0 %v1661
        %2246 = vmatprep.subr.bf16.mxu0 0
        %2247 = vmatpush1.bf16.msra.mxu0 %v1662
        %2248 = vmatprep.subr.bf16.mxu0 0
        %2249 = vmatpush1.bf16.msra.mxu0 %v1663
        %2250 = vmatprep.subr.bf16.mxu0 0
        %2251 = vmatpush1.bf16.msra.mxu0 %v1664
        %2252 = vmatprep.subr.bf16.mxu0 0
        %2253 = vmatpush1.bf16.msra.mxu0 %v1665
        %2254 = vmatprep.subr.bf16.mxu0 0
        %2255 = vmatpush1.bf16.msra.mxu0 %v1666
        %2256 = vmatprep.subr.bf16.mxu0 0
        %2257 = vmatpush1.bf16.msra.mxu0 %v1667
        %2258 = vmatprep.subr.bf16.mxu0 0
        %2259 = vmatpush1.bf16.msra.mxu0 %v1668
        %2260 = vmatprep.subr.bf16.mxu0 0
        %2261 = vmatpush1.bf16.msra.mxu0 %v1669
        %2262 = vmatprep.subr.bf16.mxu0 0
        %2263 = vmatpush1.bf16.msra.mxu0 %v1670
        %2264 = vmatprep.subr.bf16.mxu0 0
        %2265 = vmatpush1.bf16.msra.mxu0 %v1671
        %2266 = vmatprep.subr.bf16.mxu0 0
        %2267 = vmatpush1.bf16.msra.mxu0 %v1672
        %2268 = vmatprep.mubr.bf16.mxu0 %v1040
        %2269 = vmatmul.mubr.bf16.gmra.mrb[0].mxu0 %v1039
        %v2270 = vpop.f32.mrb[0].mxu0
        %v2271 = vadd.f32 %v2110, %v2270
        %v2272 = vpop.f32.mrb[0].mxu0
        %v2273 = vpop.f32.mrb[0].mxu0
        %v2274 = vadd.f32 %v2113, %v2273
        %v2275 = vpop.f32.mrb[0].mxu0
        %2276 = vmatprep.mubr.bf16.mxu0 %v1049
        %2277 = vmatmul.mubr.bf16.gmra.mrb[0].mxu0 %v1048
        %v2278 = vpop.f32.mrb[0].mxu0
        %v2279 = vadd.f32 %v2118, %v2278
        %v2280 = vpop.f32.mrb[0].mxu0
        %v2281 = vpop.f32.mrb[0].mxu0
        %v2282 = vadd.f32 %v2121, %v2281
        %v2283 = vpop.f32.mrb[0].mxu0
        %2284 = vmatprep.mubr.bf16.mxu0 %v1058
        %2285 = vmatmul.mubr.bf16.gmra.mrb[0].mxu0 %v1057
        %v2286 = vpop.f32.mrb[0].mxu0
        %v2287 = vadd.f32 %v2126, %v2286
        %v2288 = vpop.f32.mrb[0].mxu0
        %v2289 = vpop.f32.mrb[0].mxu0
        %v2290 = vadd.f32 %v2129, %v2289
        %v2291 = vpop.f32.mrb[0].mxu0
        %2292 = vmatprep.mubr.bf16.mxu0 %v1067
        %2293 = vmatmul.mubr.bf16.gmra.mrb[0].mxu0 %v1066
        %v2294 = vpop.f32.mrb[0].mxu0
        %v2295 = vadd.f32 %v2134, %v2294
        %v2296 = vpop.f32.mrb[0].mxu0
        %v2297 = vpop.f32.mrb[0].mxu0
        %v2298 = vadd.f32 %v2137, %v2297
        %v2299 = vpop.f32.mrb[0].mxu0
        %2300 = vmatprep.mubr.bf16.mxu0 %v1076
        %2301 = vmatmul.mubr.bf16.gmra.mrb[0].mxu0 %v1075
        %v2302 = vpop.f32.mrb[0].mxu0
        %v2303 = vadd.f32 %v2142, %v2302
        %v2304 = vpop.f32.mrb[0].mxu0
        %v2305 = vpop.f32.mrb[0].mxu0
        %v2306 = vadd.f32 %v2145, %v2305
        %v2307 = vpop.f32.mrb[0].mxu0
        %2308 = vmatprep.mubr.bf16.mxu0 %v1085
        %2309 = vmatmul.mubr.bf16.gmra.mrb[0].mxu0 %v1084
        %v2310 = vpop.f32.mrb[0].mxu0
        %v2311 = vadd.f32 %v2150, %v2310
        %v2312 = vpop.f32.mrb[0].mxu0
        %v2313 = vpop.f32.mrb[0].mxu0
        %v2314 = vadd.f32 %v2153, %v2313
        %v2315 = vpop.f32.mrb[0].mxu0
        %2316 = vmatprep.mubr.bf16.mxu0 %v1094
        %2317 = vmatmul.mubr.bf16.gmra.mrb[0].mxu0 %v1093
        %v2318 = vpop.f32.mrb[0].mxu0
        %v2319 = vadd.f32 %v2158, %v2318
        %v2320 = vpop.f32.mrb[0].mxu0
        %v2321 = vpop.f32.mrb[0].mxu0
        %v2322 = vadd.f32 %v2161, %v2321
        %v2323 = vpop.f32.mrb[0].mxu0
        %2324 = vmatprep.mubr.bf16.mxu0 %v1103
        %2325 = vmatmul.mubr.bf16.gmra.mrb[0].mxu0 %v1102
        %v2326 = vpop.f32.mrb[0].mxu0
        %v2327 = vadd.f32 %v2166, %v2326
        %v2328 = vpop.f32.mrb[0].mxu0
        %v2329 = vpop.f32.mrb[0].mxu0
        %v2330 = vadd.f32 %v2169, %v2329
        %v2331 = vpop.f32.mrb[0].mxu0
        %2332 = vmatprep.mubr.bf16.mxu0 %v1112
        %2333 = vmatmul.mubr.bf16.gmra.mrb[0].mxu0 %v1111
        %v2334 = vpop.f32.mrb[0].mxu0
        %v2335 = vadd.f32 %v2174, %v2334
        %v2336 = vpop.f32.mrb[0].mxu0
        %v2337 = vpop.f32.mrb[0].mxu0
        %v2338 = vadd.f32 %v2177, %v2337
        %v2339 = vpop.f32.mrb[0].mxu0
        %2340 = vmatprep.mubr.bf16.mxu0 %v1121
        %2341 = vmatmul.mubr.bf16.gmra.mrb[0].mxu0 %v1120
        %v2342 = vpop.f32.mrb[0].mxu0
        %v2343 = vadd.f32 %v2182, %v2342
        %v2344 = vpop.f32.mrb[0].mxu0
        %v2345 = vpop.f32.mrb[0].mxu0
        %v2346 = vadd.f32 %v2185, %v2345
        %v2347 = vpop.f32.mrb[0].mxu0
        %2348 = vmatprep.mubr.bf16.mxu0 %v1130
        %2349 = vmatmul.mubr.bf16.gmra.mrb[0].mxu0 %v1129
        %v2350 = vpop.f32.mrb[0].mxu0
        %v2351 = vadd.f32 %v2190, %v2350
        %v2352 = vpop.f32.mrb[0].mxu0
        %v2353 = vpop.f32.mrb[0].mxu0
        %v2354 = vadd.f32 %v2193, %v2353
        %v2355 = vpop.f32.mrb[0].mxu0
        %2356 = vmatprep.mubr.bf16.mxu0 %v1139
        %2357 = vmatmul.mubr.bf16.gmra.mrb[0].mxu0 %v1138
        %v2358 = vpop.f32.mrb[0].mxu0
        %v2359 = vadd.f32 %v2198, %v2358
        %v2360 = vpop.f32.mrb[0].mxu0
        %v2361 = vpop.f32.mrb[0].mxu0
        %v2362 = vadd.f32 %v2201, %v2361
        %v2363 = vpop.f32.mrb[0].mxu0
        %2364 = vmatprep.mubr.bf16.mxu0 %v1148
        %2365 = vmatmul.mubr.bf16.gmra.mrb[0].mxu0 %v1147
        %v2366 = vpop.f32.mrb[0].mxu0
        %v2367 = vadd.f32 %v2206, %v2366
        %v2368 = vpop.f32.mrb[0].mxu0
        %v2369 = vpop.f32.mrb[0].mxu0
        %v2370 = vadd.f32 %v2209, %v2369
        %v2371 = vpop.f32.mrb[0].mxu0
        %2372 = vmatprep.mubr.bf16.mxu0 %v1157
        %2373 = vmatmul.mubr.bf16.gmra.mrb[0].mxu0 %v1156
        %v2374 = vpop.f32.mrb[0].mxu0
        %v2375 = vadd.f32 %v2214, %v2374
        %v2376 = vpop.f32.mrb[0].mxu0
        %v2377 = vpop.f32.mrb[0].mxu0
        %v2378 = vadd.f32 %v2217, %v2377
        %v2379 = vpop.f32.mrb[0].mxu0
        %2380 = vmatprep.mubr.bf16.mxu0 %v1166
        %2381 = vmatmul.mubr.bf16.gmra.mrb[0].mxu0 %v1165
        %v2382 = vpop.f32.mrb[0].mxu0
        %v2383 = vadd.f32 %v2222, %v2382
        %v2384 = vpop.f32.mrb[0].mxu0
        %v2385 = vpop.f32.mrb[0].mxu0
        %v2386 = vadd.f32 %v2225, %v2385
        %v2387 = vpop.f32.mrb[0].mxu0
        %2388 = vmatprep.mubr.bf16.mxu0 %v1175
        %2389 = vmatmul.mubr.bf16.gmra.mrb[0].mxu0 %v1174
        %v2390 = vpop.f32.mrb[0].mxu0
        %v2391 = vadd.f32 %v2230, %v2390
        %v2392 = vpop.f32.mrb[0].mxu0
        %v2393 = vpop.f32.mrb[0].mxu0
        %v2394 = vadd.f32 %v2233, %v2393
        %v2395 = vpop.f32.mrb[0].mxu0
        %2396 = vdwg.mxu0
        %2397 = vmatprep.subr.bf16.mxu0 0
        %2398 = vmatpush1.bf16.msra.mxu0 %v1673
        %2399 = vmatprep.subr.bf16.mxu0 0
        %2400 = vmatpush1.bf16.msra.mxu0 %v1674
        %2401 = vmatprep.subr.bf16.mxu0 0
        %2402 = vmatpush1.bf16.msra.mxu0 %v1675
        %2403 = vmatprep.subr.bf16.mxu0 0
        %2404 = vmatpush1.bf16.msra.mxu0 %v1676
        %2405 = vmatprep.subr.bf16.mxu0 0
        %2406 = vmatpush1.bf16.msra.mxu0 %v1677
        %2407 = vmatprep.subr.bf16.mxu0 0
        %2408 = vmatpush1.bf16.msra.mxu0 %v1678
        %2409 = vmatprep.subr.bf16.mxu0 0
        %2410 = vmatpush1.bf16.msra.mxu0 %v1679
        %2411 = vmatprep.subr.bf16.mxu0 0
        %2412 = vmatpush1.bf16.msra.mxu0 %v1680
        %2413 = vmatprep.subr.bf16.mxu0 0
        %2414 = vmatpush1.bf16.msra.mxu0 0
        %2415 = vmatprep.subr.bf16.mxu0 0
        %2416 = vmatpush1.bf16.msra.mxu0 0
        %2417 = vmatprep.subr.bf16.mxu0 0
        %2418 = vmatpush1.bf16.msra.mxu0 0
        %2419 = vmatprep.subr.bf16.mxu0 0
        %2420 = vmatpush1.bf16.msra.mxu0 0
        %2421 = vmatprep.subr.bf16.mxu0 0
        %2422 = vmatpush1.bf16.msra.mxu0 0
        %2423 = vmatprep.subr.bf16.mxu0 0
        %2424 = vmatpush1.bf16.msra.mxu0 0
        %2425 = vmatprep.subr.bf16.mxu0 0
        %2426 = vmatpush1.bf16.msra.mxu0 0
        %2427 = vmatprep.subr.bf16.mxu0 0
        %2428 = vmatpush1.bf16.msra.mxu0 0
        %2429 = vmatprep.mubr.bf16.mxu0 0
        %2430 = vmatmul.mubr.bf16.gmra.mrb[0].mxu0 %v1041
        %v2431 = vpop.f32.mrb[0].mxu0
        %v2432 = vadd.f32 %v2271, %v2431
        %v2433 = vpop.f32.mrb[0].mxu0
        %v2434 = vpop.f32.mrb[0].mxu0
        %v2435 = vadd.f32 %v2274, %v2434
        %v2436 = vpop.f32.mrb[0].mxu0
        %2437 = vmatprep.mubr.bf16.mxu0 0
        %2438 = vmatmul.mubr.bf16.gmra.mrb[0].mxu0 %v1050
        %v2439 = vpop.f32.mrb[0].mxu0
        %v2440 = vadd.f32 %v2279, %v2439
        %v2441 = vpop.f32.mrb[0].mxu0
        %v2442 = vpop.f32.mrb[0].mxu0
        %v2443 = vadd.f32 %v2282, %v2442
        %v2444 = vpop.f32.mrb[0].mxu0
        %2445 = vmatprep.mubr.bf16.mxu0 0
        %2446 = vmatmul.mubr.bf16.gmra.mrb[0].mxu0 %v1059
        %v2447 = vpop.f32.mrb[0].mxu0
        %v2448 = vadd.f32 %v2287, %v2447
        %v2449 = vpop.f32.mrb[0].mxu0
        %v2450 = vpop.f32.mrb[0].mxu0
        %v2451 = vadd.f32 %v2290, %v2450
        %v2452 = vpop.f32.mrb[0].mxu0
        %2453 = vmatprep.mubr.bf16.mxu0 0
        %2454 = vmatmul.mubr.bf16.gmra.mrb[0].mxu0 %v1068
        %v2455 = vpop.f32.mrb[0].mxu0
        %v2456 = vadd.f32 %v2295, %v2455
        %v2457 = vpop.f32.mrb[0].mxu0
        %v2458 = vpop.f32.mrb[0].mxu0
        %v2459 = vadd.f32 %v2298, %v2458
        %v2460 = vpop.f32.mrb[0].mxu0
        %2461 = vmatprep.mubr.bf16.mxu0 0
        %2462 = vmatmul.mubr.bf16.gmra.mrb[0].mxu0 %v1077
        %v2463 = vpop.f32.mrb[0].mxu0
        %v2464 = vadd.f32 %v2303, %v2463
        %v2465 = vpop.f32.mrb[0].mxu0
        %v2466 = vpop.f32.mrb[0].mxu0
        %v2467 = vadd.f32 %v2306, %v2466
        %v2468 = vpop.f32.mrb[0].mxu0
        %2469 = vmatprep.mubr.bf16.mxu0 0
        %2470 = vmatmul.mubr.bf16.gmra.mrb[0].mxu0 %v1086
        %v2471 = vpop.f32.mrb[0].mxu0
        %v2472 = vadd.f32 %v2311, %v2471
        %v2473 = vpop.f32.mrb[0].mxu0
        %v2474 = vpop.f32.mrb[0].mxu0
        %v2475 = vadd.f32 %v2314, %v2474
        %v2476 = vpop.f32.mrb[0].mxu0
        %2477 = vmatprep.mubr.bf16.mxu0 0
        %2478 = vmatmul.mubr.bf16.gmra.mrb[0].mxu0 %v1095
        %v2479 = vpop.f32.mrb[0].mxu0
        %v2480 = vadd.f32 %v2319, %v2479
        %v2481 = vpop.f32.mrb[0].mxu0
        %v2482 = vpop.f32.mrb[0].mxu0
        %v2483 = vadd.f32 %v2322, %v2482
        %v2484 = vpop.f32.mrb[0].mxu0
        %2485 = vmatprep.mubr.bf16.mxu0 0
        %2486 = vmatmul.mubr.bf16.gmra.mrb[0].mxu0 %v1104
        %v2487 = vpop.f32.mrb[0].mxu0
        %v2488 = vadd.f32 %v2327, %v2487
        %v2489 = vpop.f32.mrb[0].mxu0
        %v2490 = vpop.f32.mrb[0].mxu0
        %v2491 = vadd.f32 %v2330, %v2490
        %v2492 = vpop.f32.mrb[0].mxu0
        %2493 = vmatprep.mubr.bf16.mxu0 0
        %2494 = vmatmul.mubr.bf16.gmra.mrb[0].mxu0 %v1113
        %v2495 = vpop.f32.mrb[0].mxu0
        %v2496 = vadd.f32 %v2335, %v2495
        %v2497 = vpop.f32.mrb[0].mxu0
        %v2498 = vpop.f32.mrb[0].mxu0
        %v2499 = vadd.f32 %v2338, %v2498
        %v2500 = vpop.f32.mrb[0].mxu0
        %2501 = vmatprep.mubr.bf16.mxu0 0
        %2502 = vmatmul.mubr.bf16.gmra.mrb[0].mxu0 %v1122
        %v2503 = vpop.f32.mrb[0].mxu0
        %v2504 = vadd.f32 %v2343, %v2503
        %v2505 = vpop.f32.mrb[0].mxu0
        %v2506 = vpop.f32.mrb[0].mxu0
        %v2507 = vadd.f32 %v2346, %v2506
        %v2508 = vpop.f32.mrb[0].mxu0
        %2509 = vmatprep.mubr.bf16.mxu0 0
        %2510 = vmatmul.mubr.bf16.gmra.mrb[0].mxu0 %v1131
        %v2511 = vpop.f32.mrb[0].mxu0
        %v2512 = vadd.f32 %v2351, %v2511
        %v2513 = vpop.f32.mrb[0].mxu0
        %v2514 = vpop.f32.mrb[0].mxu0
        %v2515 = vadd.f32 %v2354, %v2514
        %v2516 = vpop.f32.mrb[0].mxu0
        %2517 = vmatprep.mubr.bf16.mxu0 0
        %2518 = vmatmul.mubr.bf16.gmra.mrb[0].mxu0 %v1140
        %v2519 = vpop.f32.mrb[0].mxu0
        %v2520 = vadd.f32 %v2359, %v2519
        %v2521 = vpop.f32.mrb[0].mxu0
        %v2522 = vpop.f32.mrb[0].mxu0
        %v2523 = vadd.f32 %v2362, %v2522
        %v2524 = vpop.f32.mrb[0].mxu0
        %2525 = vmatprep.mubr.bf16.mxu0 0
        %2526 = vmatmul.mubr.bf16.gmra.mrb[0].mxu0 %v1149
        %v2527 = vpop.f32.mrb[0].mxu0
        %v2528 = vadd.f32 %v2367, %v2527
        %v2529 = vpop.f32.mrb[0].mxu0
        %v2530 = vpop.f32.mrb[0].mxu0
        %v2531 = vadd.f32 %v2370, %v2530
        %v2532 = vpop.f32.mrb[0].mxu0
        %2533 = vmatprep.mubr.bf16.mxu0 0
        %2534 = vmatmul.mubr.bf16.gmra.mrb[0].mxu0 %v1158
        %v2535 = vpop.f32.mrb[0].mxu0
        %v2536 = vadd.f32 %v2375, %v2535
        %v2537 = vpop.f32.mrb[0].mxu0
        %v2538 = vpop.f32.mrb[0].mxu0
        %v2539 = vadd.f32 %v2378, %v2538
        %v2540 = vpop.f32.mrb[0].mxu0
        %2541 = vmatprep.mubr.bf16.mxu0 0
        %2542 = vmatmul.mubr.bf16.gmra.mrb[0].mxu0 %v1167
        %v2543 = vpop.f32.mrb[0].mxu0
        %v2544 = vadd.f32 %v2383, %v2543
        %v2545 = vpop.f32.mrb[0].mxu0
        %v2546 = vpop.f32.mrb[0].mxu0
        %v2547 = vadd.f32 %v2386, %v2546
        %v2548 = vpop.f32.mrb[0].mxu0
        %2549 = vmatprep.mubr.bf16.mxu0 0
        %2550 = vmatmul.mubr.bf16.gmra.mrb[0].mxu0 %v1176
        %v2551 = vpop.f32.mrb[0].mxu0
        %v2552 = vadd.f32 %v2391, %v2551
        %v2553 = vpop.f32.mrb[0].mxu0
        %v2554 = vpop.f32.mrb[0].mxu0
        %v2555 = vadd.f32 %v2394, %v2554
        %v2556 = vpop.f32.mrb[0].mxu0
        %2557 = vdwg.mxu0
        %v2558 = vmul.f32 %v2432, 0.1
        %v2559 = vmul.f32 %v2435, 0.1
        %v2560 = vmul.f32 %v2440, 0.1
        %v2561 = vmul.f32 %v2443, 0.1
        %v2562 = vmul.f32 %v2448, 0.1
        %v2563 = vmul.f32 %v2451, 0.1
        %v2564 = vmul.f32 %v2456, 0.1
        %v2565 = vmul.f32 %v2459, 0.1
        %v2566 = vmul.f32 %v2464, 0.1
        %v2567 = vmul.f32 %v2467, 0.1
        %v2568 = vmul.f32 %v2472, 0.1
        %v2569 = vmul.f32 %v2475, 0.1
        %v2570 = vmul.f32 %v2480, 0.1
        %v2571 = vmul.f32 %v2483, 0.1
        %v2572 = vmul.f32 %v2488, 0.1
        %v2573 = vmul.f32 %v2491, 0.1
        %v2574 = vmul.f32 %v2496, 0.1
        %v2575 = vmul.f32 %v2499, 0.1
        %v2576 = vmul.f32 %v2504, 0.1
        %v2577 = vmul.f32 %v2507, 0.1
        %v2578 = vmul.f32 %v2512, 0.1
        %v2579 = vmul.f32 %v2515, 0.1
        %v2580 = vmul.f32 %v2520, 0.1
        %v2581 = vmul.f32 %v2523, 0.1
        %v2582 = vmul.f32 %v2528, 0.1
        %v2583 = vmul.f32 %v2531, 0.1
        %v2584 = vmul.f32 %v2536, 0.1
        %v2585 = vmul.f32 %v2539, 0.1
        %v2586 = vmul.f32 %v2544, 0.1
        %v2587 = vmul.f32 %v2547, 0.1
        %v2588 = vmul.f32 %v2552, 0.1
        %v2589 = vmul.f32 %v2555, 0.1
        %v2590 = vld [vmem:[%s276] sm:$0xff]
        %v2591 = vld [vmem:[%s276 + $0x8] sm:$0xff]
        %v2592 = vld [vmem:[%s276 + $0x10] sm:$0xff]
        %v2593 = vld [vmem:[%s276 + $0x18] sm:$0xff]
        %v2594 = vld [vmem:[%s276 + $0x20] sm:$0xff]
        %v2595 = vld [vmem:[%s276 + $0x28] sm:$0xff]
        %v2596 = vld [vmem:[%s276 + $0x30] sm:$0xff]
        %v2597 = vld [vmem:[%s276 + $0x38] sm:$0xff]
        %v2598 = vld [vmem:[%s276 + $0x40] sm:$0xff]
        %v2599 = vld [vmem:[%s276 + $0x48] sm:$0xff]
        %v2600 = vld [vmem:[%s276 + $0x50] sm:$0xff]
        %v2601 = vld [vmem:[%s276 + $0x58] sm:$0xff]
        %v2602 = vld [vmem:[%s276 + $0x60] sm:$0xff]
        %v2603 = vld [vmem:[%s276 + $0x68] sm:$0xff]
        %v2604 = vld [vmem:[%s276 + $0x70] sm:$0xff]
        %v2605 = vld [vmem:[%s276 + $0x78] sm:$0xff]
        %v2606 = vld [vmem:[%s276 + $0x80] sm:$0xff]
        %v2607 = vld [vmem:[%s276 + $0x88] sm:$0xff]
        %v2608 = vld [vmem:[%s276 + $0x90] sm:$0xff]
        %v2609 = vld [vmem:[%s276 + $0x98] sm:$0xff]
        %v2610 = vld [vmem:[%s276 + $0xa0] sm:$0xff]
        %v2611 = vld [vmem:[%s276 + $0xa8] sm:$0xff]
        %v2612 = vld [vmem:[%s276 + $0xb0] sm:$0xff]
        %v2613 = vld [vmem:[%s276 + $0xb8] sm:$0xff]
        %v2614 = vld [vmem:[%s276 + $0xc0] sm:$0xff]
        %v2615 = vld [vmem:[%s276 + $0xc8] sm:$0xff]
        %v2616 = vld [vmem:[%s276 + $0xd0] sm:$0xff]
        %v2617 = vld [vmem:[%s276 + $0xd8] sm:$0xff]
        %v2618 = vld [vmem:[%s276 + $0xe0] sm:$0xff]
        %v2619 = vld [vmem:[%s276 + $0xe8] sm:$0xff]
        %v2620 = vld [vmem:[%s276 + $0xf0] sm:$0xff]
        %v2621 = vld [vmem:[%s276 + $0xf8] sm:$0xff]
        %v2622 = vadd.f32 %v2558, %v2590
        %v2623 = vadd.f32 %v2559, %v2591
        %v2624 = vadd.f32 %v2560, %v2592
        %v2625 = vadd.f32 %v2561, %v2593
        %v2626 = vadd.f32 %v2562, %v2594
        %v2627 = vadd.f32 %v2563, %v2595
        %v2628 = vadd.f32 %v2564, %v2596
        %v2629 = vadd.f32 %v2565, %v2597
        %v2630 = vadd.f32 %v2566, %v2598
        %v2631 = vadd.f32 %v2567, %v2599
        %v2632 = vadd.f32 %v2568, %v2600
        %v2633 = vadd.f32 %v2569, %v2601
        %v2634 = vadd.f32 %v2570, %v2602
        %v2635 = vadd.f32 %v2571, %v2603
        %v2636 = vadd.f32 %v2572, %v2604
        %v2637 = vadd.f32 %v2573, %v2605
        %v2638 = vadd.f32 %v2574, %v2606
        %v2639 = vadd.f32 %v2575, %v2607
        %v2640 = vadd.f32 %v2576, %v2608
        %v2641 = vadd.f32 %v2577, %v2609
        %v2642 = vadd.f32 %v2578, %v2610
        %v2643 = vadd.f32 %v2579, %v2611
        %v2644 = vadd.f32 %v2580, %v2612
        %v2645 = vadd.f32 %v2581, %v2613
        %v2646 = vadd.f32 %v2582, %v2614
        %v2647 = vadd.f32 %v2583, %v2615
        %v2648 = vadd.f32 %v2584, %v2616
        %v2649 = vadd.f32 %v2585, %v2617
        %v2650 = vadd.f32 %v2586, %v2618
        %v2651 = vadd.f32 %v2587, %v2619
        %v2652 = vadd.f32 %v2588, %v2620
        %v2653 = vadd.f32 %v2589, %v2621
        %v2654 = vadd.f32 %v2622, %v2623
        %v2655 = vadd.f32 %v2654, %v2624
        %v2656 = vadd.f32 %v2655, %v2625
        %v2657 = vadd.f32 %v2656, %v2626
        %v2658 = vadd.f32 %v2657, %v2627
        %v2659 = vadd.f32 %v2658, %v2628
        %v2660 = vadd.f32 %v2659, %v2629
        %v2661 = vadd.f32 %v2660, %v2630
        %v2662 = vadd.f32 %v2661, %v2631
        %v2663 = vadd.f32 %v2662, %v2632
        %v2664 = vadd.f32 %v2663, %v2633
        %v2665 = vadd.f32 %v2664, %v2634
        %v2666 = vadd.f32 %v2665, %v2635
        %v2667 = vadd.f32 %v2666, %v2636
        %v2668 = vadd.f32 %v2667, %v2637
        %v2669 = vadd.f32 %v2668, %v2638
        %v2670 = vadd.f32 %v2669, %v2639
        %v2671 = vadd.f32 %v2670, %v2640
        %v2672 = vadd.f32 %v2671, %v2641
        %v2673 = vadd.f32 %v2672, %v2642
        %v2674 = vadd.f32 %v2673, %v2643
        %v2675 = vadd.f32 %v2674, %v2644
        %v2676 = vadd.f32 %v2675, %v2645
        %v2677 = vadd.f32 %v2676, %v2646
        %v2678 = vadd.f32 %v2677, %v2647
        %v2679 = vadd.f32 %v2678, %v2648
        %v2680 = vadd.f32 %v2679, %v2649
        %v2681 = vadd.f32 %v2680, %v2650
        %v2682 = vadd.f32 %v2681, %v2651
        %v2683 = vadd.f32 %v2682, %v2652
        %v2684 = vadd.f32 %v2683, %v2653
        %v2685 = vrot.slane %v2684, 4
        %v2686 = vadd.f32 %v2684, %v2685
        %v2687 = vrot.slane %v2686, 2
        %v2688 = vadd.f32 %v2686, %v2687
        %v2689 = vrot.slane %v2688, 1
        %v2690 = vadd.f32 %v2688, %v2689
        %v2691 = vrcp.pop 256.0
        %v2692 = vmul.f32 %v2690, %v2691
        %v2693 = vld [vmem:[%s4] sm:$0xf]
        %v2694 = vmul.f32 %v2692, %v2693
        %vm2695 = vcmask 1043456
        %v2696 = vsel %vm2695, %v2694, 0.0
        %2697 = vadd.xlane.f32.xlu0 %v2696
        %v2698 = vpop.xlane.xlu0 %2697
        %vm2699 = vcmp.gt.f32.partialorder %v2698, 0.0
        %v2700 = vstv %s280
        %v2701 = vmul.f32 %v2700, %v2698
        %v2702 = vsel %vm2699, %v2698, %v2701
        %v2703 = vld [vmem:[%s5] sm:$0xf]
        %v2704 = vmul.f32 %v2702, %v2703
        %v2705 = vsel %vm2695, %v2704, 0.0
        %v2706 = vrot.slane %v2705, 4
        %v2707 = vadd.f32 %v2705, %v2706
        %v2708 = vrot.slane %v2707, 2
        %v2709 = vadd.f32 %v2707, %v2708
        %v2710 = vrot.slane %v2709, 1
        %v2711 = vadd.f32 %v2709, %v2710
        %v2712 = vsub.f32 0.0, %v2711
        %v2713 = vmul.f32 %v2712, 1.442695
        %v2714 = vpow.pop %v2713
        %v2715 = vadd.f32 %v2714, 1.0
        %v2716 = vrcp.pop %v2715
        %v2717 = vmul.f32 %v2622, %v2716
        %v2718 = vmul.f32 %v2623, %v2716
        %v2719 = vmul.f32 %v2624, %v2716
        %v2720 = vmul.f32 %v2625, %v2716
        %v2721 = vmul.f32 %v2626, %v2716
        %v2722 = vmul.f32 %v2627, %v2716
        %v2723 = vmul.f32 %v2628, %v2716
        %v2724 = vmul.f32 %v2629, %v2716
        %v2725 = vmul.f32 %v2630, %v2716
        %v2726 = vmul.f32 %v2631, %v2716
        %v2727 = vmul.f32 %v2632, %v2716
        %v2728 = vmul.f32 %v2633, %v2716
        %v2729 = vmul.f32 %v2634, %v2716
        %v2730 = vmul.f32 %v2635, %v2716
        %v2731 = vmul.f32 %v2636, %v2716
        %v2732 = vmul.f32 %v2637, %v2716
        %v2733 = vmul.f32 %v2638, %v2716
        %v2734 = vmul.f32 %v2639, %v2716
        %v2735 = vmul.f32 %v2640, %v2716
        %v2736 = vmul.f32 %v2641, %v2716
        %v2737 = vmul.f32 %v2642, %v2716
        %v2738 = vmul.f32 %v2643, %v2716
        %v2739 = vmul.f32 %v2644, %v2716
        %v2740 = vmul.f32 %v2645, %v2716
        %v2741 = vmul.f32 %v2646, %v2716
        %v2742 = vmul.f32 %v2647, %v2716
        %v2743 = vmul.f32 %v2648, %v2716
        %v2744 = vmul.f32 %v2649, %v2716
        %v2745 = vmul.f32 %v2650, %v2716
        %v2746 = vmul.f32 %v2651, %v2716
        %v2747 = vmul.f32 %v2652, %v2716
        %v2748 = vmul.f32 %v2653, %v2716
        %2749 = vst [vmem:[%s264] sm:$0xff] %v2717
        %2750 = vst [vmem:[%s264 + $0x8] sm:$0xff] %v2718
        %2751 = vst [vmem:[%s264 + $0x10] sm:$0xff] %v2719
        %2752 = vst [vmem:[%s264 + $0x18] sm:$0xff] %v2720
        %2753 = vst [vmem:[%s264 + $0x20] sm:$0xff] %v2721
        %2754 = vst [vmem:[%s264 + $0x28] sm:$0xff] %v2722
        %2755 = vst [vmem:[%s264 + $0x30] sm:$0xff] %v2723
        %2756 = vst [vmem:[%s264 + $0x38] sm:$0xff] %v2724
        %2757 = vst [vmem:[%s264 + $0x40] sm:$0xff] %v2725
        %2758 = vst [vmem:[%s264 + $0x48] sm:$0xff] %v2726
        %2759 = vst [vmem:[%s264 + $0x50] sm:$0xff] %v2727
        %2760 = vst [vmem:[%s264 + $0x58] sm:$0xff] %v2728
        %2761 = vst [vmem:[%s264 + $0x60] sm:$0xff] %v2729
        %2762 = vst [vmem:[%s264 + $0x68] sm:$0xff] %v2730
        %2763 = vst [vmem:[%s264 + $0x70] sm:$0xff] %v2731
        %2764 = vst [vmem:[%s264 + $0x78] sm:$0xff] %v2732
        %2765 = vst [vmem:[%s264 + $0x80] sm:$0xff] %v2733
        %2766 = vst [vmem:[%s264 + $0x88] sm:$0xff] %v2734
        %2767 = vst [vmem:[%s264 + $0x90] sm:$0xff] %v2735
        %2768 = vst [vmem:[%s264 + $0x98] sm:$0xff] %v2736
        %2769 = vst [vmem:[%s264 + $0xa0] sm:$0xff] %v2737
        %2770 = vst [vmem:[%s264 + $0xa8] sm:$0xff] %v2738
        %2771 = vst [vmem:[%s264 + $0xb0] sm:$0xff] %v2739
        %2772 = vst [vmem:[%s264 + $0xb8] sm:$0xff] %v2740
        %2773 = vst [vmem:[%s264 + $0xc0] sm:$0xff] %v2741
        %2774 = vst [vmem:[%s264 + $0xc8] sm:$0xff] %v2742
        %2775 = vst [vmem:[%s264 + $0xd0] sm:$0xff] %v2743
        %2776 = vst [vmem:[%s264 + $0xd8] sm:$0xff] %v2744
        %2777 = vst [vmem:[%s264 + $0xe0] sm:$0xff] %v2745
        %2778 = vst [vmem:[%s264 + $0xe8] sm:$0xff] %v2746
        %2779 = vst [vmem:[%s264 + $0xf0] sm:$0xff] %v2747
        %2780 = vst [vmem:[%s264 + $0xf8] sm:$0xff] %v2748
        %s2781 = sand.u32 %s165, 1
        %s2782 = scalar_lea.sflag [#allocation4], %s2781
        %s2783 = sand.u32 %s165, 1
        %s2784 = smul.addr %s2783, 256
        %s2785 = scalar_lea.vmem [#allocation3], %s2784
        // Predicated region
        $region45: #{resnet_block_forward.3} parent=43 // pred_check
          %p2786 = pneg %p175
        $region46: #{resnet_block_forward.3} parent=43 // pred_check_branch
          %2788 = sbr.rel (%p2786) target = $region48
        $region47: #{resnet_block_forward.3} parent=43 // pred_region
          %s2789 = smul.u32 32, %s21
          %s2791 = ssub.s32 4096, 4096
          %2792 = vsyncadd %s2782, %s2791
          %s2793 = smul.addr %s2789, 128
          %s2794 = scalar_lea.hbm %s6, %s2793
          %s2795 = sshll.u32 %s2785, 4
          %s2796 = int_to_ptr.vmem [resolvable:$true] %s2795
          %2801 = dma.vmem_to_hbm [thread:$0]  %s2796, 4096, %s2794, %s2782, 128, 128, 8
        $region48: #{resnet_block_forward.3} parent=43 // pred_fallthru
          _
      $region44: #{resnet_block_forward.3} parent=5 // pred_fallthru
        _
      %p2802 = scmp.le.s32.totalorder 2, %s16
      // Predicated region
      $region49: #{resnet_block_forward.3} parent=5 // pred_check
        %p2803 = pneg %p2802
      $region50: #{resnet_block_forward.3} parent=5 // pred_check_branch
        %2805 = sbr.rel (%p2803) target = $region52
      $region51: #{resnet_block_forward.3} parent=5 // pred_region
        %s2806 = ssub.s32 %s16, 2
        // Predicated region
        $region53: #{resnet_block_forward.3} parent=51 // pred_check
          %p2807 = pneg %p181
        $region54: #{resnet_block_forward.3} parent=51 // pred_check_branch
          %2809 = sbr.rel (%p2807) target = $region56
        $region55: #{resnet_block_forward.3} parent=51 // pred_region
          %s2810 = sand.u32 %s166, 1
          %s2811 = scalar_lea.sflag [#allocation4], %s2810
          %s2812 = sand.u32 %s166, 1
          %s2813 = smul.addr %s2812, 256
          %s2814 = scalar_lea.vmem [#allocation3], %s2813
          %2815 = dma.done %s2811, 4096
        $region56: #{resnet_block_forward.3} parent=51 // pred_fallthru
          _
      $region52: #{resnet_block_forward.3} parent=5 // pred_fallthru
        _
    $region6: #{resnet_block_forward.3} parent=1 // loop_footer
      %s20 = sadd.s32 1, %s16
    $region7: #{resnet_block_forward.3} parent=1 // loop_footer_branch
      %15 = sbr.rel target = $region3
    $region8: #{resnet_block_forward.3} parent=1 // loop_exit
      _
    %2816 = vsyncpa [#allocation4], 1
    %s2817 = scalar_lea.sflag [#allocation4], 1
    %2818 = vsyncpa %s2817, 1

</llo_original>
